<compile_context>
chip_gen: v7x
topology: tpu7x:2x2x1
jax: 0.10.0
libtpu: 0.0.40
codegen_flags: <defaults>
</compile_context>

<pallas_src>
import functools
import math

import jax
import jax.numpy as jnp
from jax.experimental import pallas as pl
from jax.experimental.pallas import tpu as pltpu

BN_EPS = 1e-5


def _swish(x):
    # x * sigmoid(x), with sigmoid(x) = 0.5*(1 + tanh(x/2)) -> one EUP tanh.
    return x * (0.5 * (1.0 + jnp.tanh(0.5 * x)))


def get_padding_size(oi, s, k, d):
    return math.ceil(0.5 * ((oi - 1) * s - oi + k + (k - 1) * (d - 1)))


# ----------------------------- fused kernel ---------------------------------

def _tcn_kernel(x_ref, *refs, layer_cfgs):
    """Whole-network forward on one NH (=N*H) lane tile.

    x_ref:   (W_in, C_in, TILE_NH)   input activations, NH on lanes
    refs:    flat per-layer folded weights/biases, then out_ref
    out_ref: (W_out, C_out, TILE_NH)

    Internal layout per layer: a single (C, W*TILE_NH) f32 slab; the W columns
    sit consecutively on the lane axis so dilated tap shifts, maxpool windows
    and the residual are static, 128-aligned lane slices.
    """
    params = refs[:-1]
    out_ref = refs[-1]
    nh = x_ref.shape[-1]
    w_in = x_ref.shape[0]

    # (W, C, NH) block -> (C, W*NH) slab (lane-axis concat of 128-aligned pieces)
    cur = jnp.concatenate([x_ref[w].astype(jnp.float32) for w in range(w_in)], axis=1)
    w_cur = w_in

    pidx = 0
    for cfg in layer_cfgs:
        k, d, pad = cfg["k"], cfg["d"], cfg["pad"]
        c_in = cur.shape[0]
        w_out = w_cur + 2 * pad - d * (k - 1)

        if cfg["kind"] == "cnnmax":
            # Conv2d(ic, oc, (1,k), dil=(1,d)) + folded BN + Swish
            wf = params[pidx][...]       # (oc, k*ic), columns ordered (tap j, channel)
            bf = params[pidx + 1][...]   # (oc, 1)
            pidx += 2
            if pad:
                zero = jnp.zeros((c_in, pad * nh), jnp.float32)
                xp = jnp.concatenate([zero, cur, zero], axis=1)
            else:
                xp = cur
            if c_in == 1:
                # single input channel: broadcast MACs on the VPU (no tiny-K matmul)
                acc = bf
                for j in range(k):
                    acc = acc + wf[:, j:j + 1] * xp[:, j * d * nh:(j * d + w_out) * nh]
            else:
                # im2col over the k dilated taps -> ONE wide bf16 MXU matmul
                rhs = jnp.concatenate(
                    [xp[:, j * d * nh:(j * d + w_out) * nh] for j in range(k)], axis=0)
                acc = jnp.dot(wf.astype(jnp.bfloat16), rhs.astype(jnp.bfloat16),
                              preferred_element_type=jnp.float32) + bf
            cur = _swish(acc)
        else:
            # TemporalBlock: 1x1 conv -> depthwise dilated (1,k) conv -> 1x1 conv
            w1f = params[pidx][...]       # (exp, cin)   BN1 folded
            b1f = params[pidx + 1][...]   # (exp, 1)
            wdf = params[pidx + 2][...]   # (exp, k)     BN2 folded
            bdf = params[pidx + 3][...]   # (exp, 1)
            w2f = params[pidx + 4][...]   # (cout, exp)  BN3 folded
            b2f = params[pidx + 5][...]   # (cout, 1)
            pidx += 6
            exp_ch = w1f.shape[0]

            # 1x1 expansion conv: ONE wide bf16 matmul over the real columns only.
            y1 = _swish(jnp.dot(w1f.astype(jnp.bfloat16), cur.astype(jnp.bfloat16),
                                preferred_element_type=jnp.float32) + b1f)
            if pad:
                # pad1 -> DSConv1 order: expansion output of a zero column is the
                # constant swish(b1'); computed once, no matmul/EUP work wasted.
                y1_pad = jnp.broadcast_to(_swish(b1f), (exp_ch, pad * nh))
                y1 = jnp.concatenate([y1_pad, y1, y1_pad], axis=1)

            # depthwise dilated conv along W: static lane-aligned tap slices,
            # per-tap weight broadcast happens exactly once per layer.
            acc = jnp.broadcast_to(bdf, (exp_ch, w_out * nh))
            for j in range(k):
                acc = acc + wdf[:, j:j + 1] * y1[:, j * d * nh:(j * d + w_out) * nh]
            y2 = _swish(acc)

            # 1x1 projection conv: ONE wide bf16 matmul
            y3 = _swish(jnp.dot(w2f.astype(jnp.bfloat16), y2.astype(jnp.bfloat16),
                                preferred_element_type=jnp.float32) + b2f)

            if cfg["max_pooling"]:
                # MaxPool2d((1,2),(1,2)) along W (floor division drops an odd tail)
                w_half = w_out // 2
                y3 = jnp.concatenate(
                    [jnp.maximum(y3[:, (2 * w) * nh:(2 * w + 1) * nh],
                                 y3[:, (2 * w + 1) * nh:(2 * w + 2) * nh])
                     for w in range(w_half)], axis=1)
                w_out = w_half
            if cfg["do_res"]:
                # residual uses the original (unpadded) input; widths match
                y3 = _swish(y3 + cur)
            cur = y3
        w_cur = w_out

    # lane-dense (C_out, TILE_NH) stores, one per output column
    for w in range(w_cur):
        out_ref[w] = cur[:, w * nh:(w + 1) * nh].astype(out_ref.dtype)


# ----------------------------- parameter init --------------------------------

def _xavier_uniform(key, shape):
    # shape = (oc, ic_per_group, kh, kw) -- PyTorch conv weight layout
    oc, ic_g, kh, kw = shape
    fan_in = ic_g * kh * kw
    fan_out = oc * kh * kw
    bound = math.sqrt(6.0 / (fan_in + fan_out))
    return jax.random.uniform(key, shape, jnp.float32, -bound, bound)


def _conv_bias(key, oc, fan_in):
    bound = 1.0 / math.sqrt(fan_in)
    return jax.random.uniform(key, (oc, 1), jnp.float32, -bound, bound)


def _bn_fold(c):
    # PyTorch BatchNorm2d init: gamma=1, beta=0, running_mean=0, running_var=1
    gamma = jnp.ones((c, 1), jnp.float32)
    beta = jnp.zeros((c, 1), jnp.float32)
    mean = jnp.zeros((c, 1), jnp.float32)
    var = jnp.ones((c, 1), jnp.float32)
    scale = gamma / jnp.sqrt(var + BN_EPS)
    shift = beta - mean * scale
    return scale, shift


class TemporalConvNet2DPallas:
    def __init__(self, key, num_inputs, kernel_sizes, dilation_sizes,
                 input_scalings, num_channels, input_ch=1, dropout=0.2):
        # dropout kept for signature parity; never used in the reference forward.
        self.cfgs = []
        self.params = []
        self.out_ch = num_channels[-1]
        input_size = num_inputs
        for i, (k, d, scal) in enumerate(zip(kernel_sizes, dilation_sizes, input_scalings)):
            in_ch = input_ch if i == 0 else num_channels[i - 1]
            out_ch = num_channels[i]
            pad = get_padding_size(input_size, 1, k, d)
            max_pooling = scal < 1
            if i == 0:
                key, k1, k2 = jax.random.split(key, 3)
                w = _xavier_uniform(k1, (out_ch, in_ch, 1, k))
                b = _conv_bias(k2, out_ch, in_ch * k)
                s, t = _bn_fold(out_ch)
                # (oc, k*ic) with columns ordered (tap j, input channel) + BN folded in
                w2d = jnp.transpose(w[:, :, 0, :], (0, 2, 1)).reshape(out_ch, k * in_ch)
                self.cfgs.append(dict(kind="cnnmax", k=k, d=d, pad=pad,
                                      max_pooling=False, do_res=False))
                self.params += [s * w2d, s * b + t]
            else:
                exp_ch = in_ch
                do_res = in_ch == out_ch
                assert not (do_res and max_pooling)
                key, k1, k2, k3, k4, k5, k6 = jax.random.split(key, 7)
                w1 = _xavier_uniform(k1, (exp_ch, in_ch, 1, 1))[:, :, 0, 0]
                b1 = _conv_bias(k2, exp_ch, in_ch)
                wd = _xavier_uniform(k3, (exp_ch, 1, 1, k))[:, 0, 0, :]   # depthwise (exp,k)
                bd = _conv_bias(k4, exp_ch, k)
                w2 = _xavier_uniform(k5, (out_ch, exp_ch, 1, 1))[:, :, 0, 0]
                b2 = _conv_bias(k6, out_ch, exp_ch)
                s1, t1 = _bn_fold(exp_ch)
                s2, t2 = _bn_fold(exp_ch)
                s3, t3 = _bn_fold(out_ch)
                self.cfgs.append(dict(kind="tblock", k=k, d=d, pad=pad,
                                      max_pooling=max_pooling, do_res=do_res))
                # fold BN into weights/biases: w' = s*w ; b' = s*b + t
                self.params += [s1 * w1, s1 * b1 + t1,
                                s2 * wd, s2 * bd + t2,
                                s3 * w2, s3 * b2 + t3]
            input_size = math.ceil(input_size * scal)
        self.cfgs = tuple(self.cfgs)

    def __call__(self, x_nchw):
        n, c, h, w = x_nchw.shape
        nh = n * h

        # lane tile: multiple of 128; keep >=2 grid steps whenever there is
        # enough work (megacore / v7x) while amortizing the ~0.35us/step
        # overhead with bigger tiles on large inputs.
        if nh >= 8192:
            tile_nh = 1024
        elif nh >= 1024:
            tile_nh = 512
        elif nh >= 512:
            tile_nh = 256
        else:
            tile_nh = 128
        nh_pad = pl.cdiv(nh, tile_nh) * tile_nh

        # working set is a few MiB/step; only raise the scoped-VMEM limit for
        # the large tiles, and stay well under v7x's 64 MiB physical VMEM.
        vmem_limit = 48 * 1024 * 1024 if tile_nh >= 512 else 32 * 1024 * 1024

        # static W trajectory through the network
        w_cur = w
        for cfg in self.cfgs:
            w_conv = w_cur + 2 * cfg["pad"] - cfg["d"] * (cfg["k"] - 1)
            if cfg["do_res"]:
                assert w_conv == w_cur, "residual requires width-preserving conv"
            w_cur = w_conv // 2 if cfg["max_pooling"] else w_conv
        w_out = w_cur

        # (N, C, H, W) -> (W, C, N*H): temporal axis leading, NH on lanes.
        x_t = jnp.transpose(x_nchw, (3, 1, 0, 2)).reshape(w, c, nh)
        if nh_pad != nh:
            x_t = jnp.pad(x_t, ((0, 0), (0, 0), (0, nh_pad - nh)))

        in_specs = [pl.BlockSpec((w, c, tile_nh), lambda i: (0, 0, i))]
        for p in self.params:
            in_specs.append(pl.BlockSpec(p.shape, lambda i: (0, 0)))
        out_spec = pl.BlockSpec((w_out, self.out_ch, tile_nh), lambda i: (0, 0, i))

        kern = functools.partial(_tcn_kernel, layer_cfgs=self.cfgs)
        y = pl.pallas_call(
            kern,
            out_shape=jax.ShapeDtypeStruct((w_out, self.out_ch, nh_pad), jnp.float32),
            grid_spec=pltpu.PrefetchScalarGridSpec(
                num_scalar_prefetch=0,
                grid=(nh_pad // tile_nh,),
                in_specs=in_specs,
                out_specs=out_spec,
            ),
            compiler_params=pltpu.CompilerParams(
                dimension_semantics=("parallel",),
                vmem_limit_bytes=vmem_limit,
            ),
        )(x_t, *self.params)

        y = y[..., :nh]                                   # drop NH padding lanes
        y = y.reshape(w_out, self.out_ch, n, h)
        return jnp.transpose(y, (2, 1, 3, 0))             # back to NCHW


if __name__ == "__main__":
    key = jax.random.PRNGKey(0)
    key, xkey, pkey = jax.random.split(key, 3)

    N, C_IN, H, W = 2, 1, 128, 16                         # NH = 256 -> 2 parallel grid steps
    x = jax.random.normal(xkey, (N, C_IN, H, W), jnp.float32)

    net = TemporalConvNet2DPallas(
        pkey,
        num_inputs=W,
        kernel_sizes=[3, 3, 3],
        dilation_sizes=[1, 2, 2],
        input_scalings=[1, 0.5, 1],
        num_channels=[16, 32, 32],
        input_ch=C_IN,
    )

    y = net(x)
    jax.block_until_ready(y)
    assert y.shape == (N, 32, H, 8), y.shape
    assert bool(jnp.all(jnp.isfinite(y)))
    print("KERNEL_OK")
</pallas_src>

<mosaic_0001>
module attributes {stable_mosaic.version = 11 : i64} {
  func.func @_tcn_kernel(%arg0: i32, %arg1: memref<16x1x128xf32, #tpu.memory_space<vmem>>, %arg2: memref<16x3xf32, #tpu.memory_space<vmem>>, %arg3: memref<16x1xf32, #tpu.memory_space<vmem>>, %arg4: memref<16x16xf32, #tpu.memory_space<vmem>>, %arg5: memref<16x1xf32, #tpu.memory_space<vmem>>, %arg6: memref<16x3xf32, #tpu.memory_space<vmem>>, %arg7: memref<16x1xf32, #tpu.memory_space<vmem>>, %arg8: memref<32x16xf32, #tpu.memory_space<vmem>>, %arg9: memref<32x1xf32, #tpu.memory_space<vmem>>, %arg10: memref<32x32xf32, #tpu.memory_space<vmem>>, %arg11: memref<32x1xf32, #tpu.memory_space<vmem>>, %arg12: memref<32x3xf32, #tpu.memory_space<vmem>>, %arg13: memref<32x1xf32, #tpu.memory_space<vmem>>, %arg14: memref<32x32xf32, #tpu.memory_space<vmem>>, %arg15: memref<32x1xf32, #tpu.memory_space<vmem>>, %arg16: memref<8x32x128xf32, #tpu.memory_space<vmem>>) attributes {dimension_semantics = [#tpu.dimension_semantics<parallel>], iteration_bounds = array<i64: 2>, scalar_prefetch = 0 : i64, scratch_operands = 0 : i64, tpu.core_type = #tpu.core_type<tc>, window_params = [{transform_indices = @transform_0, window_bounds = array<i64: 16, 1, 128>}, {pipeline_mode = #tpu.pipeline_mode<synchronous>, transform_indices = @transform_1, window_bounds = array<i64: 16, 3>}, {pipeline_mode = #tpu.pipeline_mode<synchronous>, transform_indices = @transform_2, window_bounds = array<i64: 16, 1>}, {pipeline_mode = #tpu.pipeline_mode<synchronous>, transform_indices = @transform_3, window_bounds = array<i64: 16, 16>}, {pipeline_mode = #tpu.pipeline_mode<synchronous>, transform_indices = @transform_4, window_bounds = array<i64: 16, 1>}, {pipeline_mode = #tpu.pipeline_mode<synchronous>, transform_indices = @transform_5, window_bounds = array<i64: 16, 3>}, {pipeline_mode = #tpu.pipeline_mode<synchronous>, transform_indices = @transform_6, window_bounds = array<i64: 16, 1>}, {pipeline_mode = #tpu.pipeline_mode<synchronous>, transform_indices = @transform_7, window_bounds = array<i64: 32, 16>}, {pipeline_mode = #tpu.pipeline_mode<synchronous>, transform_indices = @transform_8, window_bounds = array<i64: 32, 1>}, {pipeline_mode = #tpu.pipeline_mode<synchronous>, transform_indices = @transform_9, window_bounds = array<i64: 32, 32>}, {pipeline_mode = #tpu.pipeline_mode<synchronous>, transform_indices = @transform_10, window_bounds = array<i64: 32, 1>}, {pipeline_mode = #tpu.pipeline_mode<synchronous>, transform_indices = @transform_11, window_bounds = array<i64: 32, 3>}, {pipeline_mode = #tpu.pipeline_mode<synchronous>, transform_indices = @transform_12, window_bounds = array<i64: 32, 1>}, {pipeline_mode = #tpu.pipeline_mode<synchronous>, transform_indices = @transform_13, window_bounds = array<i64: 32, 32>}, {pipeline_mode = #tpu.pipeline_mode<synchronous>, transform_indices = @transform_14, window_bounds = array<i64: 32, 1>}, {transform_indices = @transform_15, window_bounds = array<i64: 8, 32, 128>}]} {
    %c0 = arith.constant 0 : index
    %c0_0 = arith.constant 0 : index
    %c0_1 = arith.constant 0 : index
    %0 = vector.load %arg1[%c0, %c0_0, %c0_1] : memref<16x1x128xf32, #tpu.memory_space<vmem>>, vector<1x1x128xf32>
    %1 = vector.shape_cast %0 : vector<1x1x128xf32> to vector<1x128xf32>
    %c1 = arith.constant 1 : index
    %c0_2 = arith.constant 0 : index
    %c0_3 = arith.constant 0 : index
    %2 = vector.load %arg1[%c1, %c0_2, %c0_3] : memref<16x1x128xf32, #tpu.memory_space<vmem>>, vector<1x1x128xf32>
    %3 = vector.shape_cast %2 : vector<1x1x128xf32> to vector<1x128xf32>
    %c2 = arith.constant 2 : index
    %c0_4 = arith.constant 0 : index
    %c0_5 = arith.constant 0 : index
    %4 = vector.load %arg1[%c2, %c0_4, %c0_5] : memref<16x1x128xf32, #tpu.memory_space<vmem>>, vector<1x1x128xf32>
    %5 = vector.shape_cast %4 : vector<1x1x128xf32> to vector<1x128xf32>
    %c3 = arith.constant 3 : index
    %c0_6 = arith.constant 0 : index
    %c0_7 = arith.constant 0 : index
    %6 = vector.load %arg1[%c3, %c0_6, %c0_7] : memref<16x1x128xf32, #tpu.memory_space<vmem>>, vector<1x1x128xf32>
    %7 = vector.shape_cast %6 : vector<1x1x128xf32> to vector<1x128xf32>
    %c4 = arith.constant 4 : index
    %c0_8 = arith.constant 0 : index
    %c0_9 = arith.constant 0 : index
    %8 = vector.load %arg1[%c4, %c0_8, %c0_9] : memref<16x1x128xf32, #tpu.memory_space<vmem>>, vector<1x1x128xf32>
    %9 = vector.shape_cast %8 : vector<1x1x128xf32> to vector<1x128xf32>
    %c5 = arith.constant 5 : index
    %c0_10 = arith.constant 0 : index
    %c0_11 = arith.constant 0 : index
    %10 = vector.load %arg1[%c5, %c0_10, %c0_11] : memref<16x1x128xf32, #tpu.memory_space<vmem>>, vector<1x1x128xf32>
    %11 = vector.shape_cast %10 : vector<1x1x128xf32> to vector<1x128xf32>
    %c6 = arith.constant 6 : index
    %c0_12 = arith.constant 0 : index
    %c0_13 = arith.constant 0 : index
    %12 = vector.load %arg1[%c6, %c0_12, %c0_13] : memref<16x1x128xf32, #tpu.memory_space<vmem>>, vector<1x1x128xf32>
    %13 = vector.shape_cast %12 : vector<1x1x128xf32> to vector<1x128xf32>
    %c7 = arith.constant 7 : index
    %c0_14 = arith.constant 0 : index
    %c0_15 = arith.constant 0 : index
    %14 = vector.load %arg1[%c7, %c0_14, %c0_15] : memref<16x1x128xf32, #tpu.memory_space<vmem>>, vector<1x1x128xf32>
    %15 = vector.shape_cast %14 : vector<1x1x128xf32> to vector<1x128xf32>
    %c8 = arith.constant 8 : index
    %c0_16 = arith.constant 0 : index
    %c0_17 = arith.constant 0 : index
    %16 = vector.load %arg1[%c8, %c0_16, %c0_17] : memref<16x1x128xf32, #tpu.memory_space<vmem>>, vector<1x1x128xf32>
    %17 = vector.shape_cast %16 : vector<1x1x128xf32> to vector<1x128xf32>
    %c9 = arith.constant 9 : index
    %c0_18 = arith.constant 0 : index
    %c0_19 = arith.constant 0 : index
    %18 = vector.load %arg1[%c9, %c0_18, %c0_19] : memref<16x1x128xf32, #tpu.memory_space<vmem>>, vector<1x1x128xf32>
    %19 = vector.shape_cast %18 : vector<1x1x128xf32> to vector<1x128xf32>
    %c10 = arith.constant 10 : index
    %c0_20 = arith.constant 0 : index
    %c0_21 = arith.constant 0 : index
    %20 = vector.load %arg1[%c10, %c0_20, %c0_21] : memref<16x1x128xf32, #tpu.memory_space<vmem>>, vector<1x1x128xf32>
    %21 = vector.shape_cast %20 : vector<1x1x128xf32> to vector<1x128xf32>
    %c11 = arith.constant 11 : index
    %c0_22 = arith.constant 0 : index
    %c0_23 = arith.constant 0 : index
    %22 = vector.load %arg1[%c11, %c0_22, %c0_23] : memref<16x1x128xf32, #tpu.memory_space<vmem>>, vector<1x1x128xf32>
    %23 = vector.shape_cast %22 : vector<1x1x128xf32> to vector<1x128xf32>
    %c12 = arith.constant 12 : index
    %c0_24 = arith.constant 0 : index
    %c0_25 = arith.constant 0 : index
    %24 = vector.load %arg1[%c12, %c0_24, %c0_25] : memref<16x1x128xf32, #tpu.memory_space<vmem>>, vector<1x1x128xf32>
    %25 = vector.shape_cast %24 : vector<1x1x128xf32> to vector<1x128xf32>
    %c13 = arith.constant 13 : index
    %c0_26 = arith.constant 0 : index
    %c0_27 = arith.constant 0 : index
    %26 = vector.load %arg1[%c13, %c0_26, %c0_27] : memref<16x1x128xf32, #tpu.memory_space<vmem>>, vector<1x1x128xf32>
    %27 = vector.shape_cast %26 : vector<1x1x128xf32> to vector<1x128xf32>
    %c14 = arith.constant 14 : index
    %c0_28 = arith.constant 0 : index
    %c0_29 = arith.constant 0 : index
    %28 = vector.load %arg1[%c14, %c0_28, %c0_29] : memref<16x1x128xf32, #tpu.memory_space<vmem>>, vector<1x1x128xf32>
    %29 = vector.shape_cast %28 : vector<1x1x128xf32> to vector<1x128xf32>
    %c15 = arith.constant 15 : index
    %c0_30 = arith.constant 0 : index
    %c0_31 = arith.constant 0 : index
    %30 = vector.load %arg1[%c15, %c0_30, %c0_31] : memref<16x1x128xf32, #tpu.memory_space<vmem>>, vector<1x1x128xf32>
    %31 = vector.shape_cast %30 : vector<1x1x128xf32> to vector<1x128xf32>
    %32 = tpu.concatenate %1, %3, %5, %7, %9, %11, %13, %15, %17, %19, %21, %23, %25, %27, %29, %31 in 1 : vector<1x128xf32>, vector<1x128xf32>, vector<1x128xf32>, vector<1x128xf32>, vector<1x128xf32>, vector<1x128xf32>, vector<1x128xf32>, vector<1x128xf32>, vector<1x128xf32>, vector<1x128xf32>, vector<1x128xf32>, vector<1x128xf32>, vector<1x128xf32>, vector<1x128xf32>, vector<1x128xf32>, vector<1x128xf32> -> vector<1x2048xf32>
    %c0_32 = arith.constant 0 : index
    %c0_33 = arith.constant 0 : index
    %33 = vector.load %arg2[%c0_32, %c0_33] : memref<16x3xf32, #tpu.memory_space<vmem>>, vector<16x3xf32>
    %c0_34 = arith.constant 0 : index
    %c0_35 = arith.constant 0 : index
    %34 = vector.load %arg3[%c0_34, %c0_35] : memref<16x1xf32, #tpu.memory_space<vmem>>, vector<16x1xf32>
    %cst = arith.constant 0.000000e+00 : f32
    %35 = vector.broadcast %cst : f32 to vector<1x128xf32>
    %36 = tpu.concatenate %35, %32, %35 in 1 : vector<1x128xf32>, vector<1x2048xf32>, vector<1x128xf32> -> vector<1x2304xf32>
    %37 = vector.extract_strided_slice %33 {offsets = [0, 0], sizes = [16, 1], strides = [1, 1]} : vector<16x3xf32> to vector<16x1xf32>
    %38 = vector.extract_strided_slice %36 {offsets = [0, 0], sizes = [1, 2048], strides = [1, 1]} : vector<1x2304xf32> to vector<1x2048xf32>
    %39 = vector.broadcast %37 : vector<16x1xf32> to vector<16x2048xf32>
    %40 = vector.broadcast %38 : vector<1x2048xf32> to vector<16x2048xf32>
    %41 = arith.mulf %39, %40 : vector<16x2048xf32>
    %42 = vector.broadcast %34 : vector<16x1xf32> to vector<16x2048xf32>
    %43 = arith.addf %42, %41 : vector<16x2048xf32>
    %44 = vector.extract_strided_slice %33 {offsets = [0, 1], sizes = [16, 1], strides = [1, 1]} : vector<16x3xf32> to vector<16x1xf32>
    %45 = vector.extract_strided_slice %36 {offsets = [0, 128], sizes = [1, 2048], strides = [1, 1]} : vector<1x2304xf32> to vector<1x2048xf32>
    %46 = vector.broadcast %44 : vector<16x1xf32> to vector<16x2048xf32>
    %47 = vector.broadcast %45 : vector<1x2048xf32> to vector<16x2048xf32>
    %48 = arith.mulf %46, %47 : vector<16x2048xf32>
    %49 = arith.addf %43, %48 : vector<16x2048xf32>
    %50 = vector.extract_strided_slice %33 {offsets = [0, 2], sizes = [16, 1], strides = [1, 1]} : vector<16x3xf32> to vector<16x1xf32>
    %51 = vector.extract_strided_slice %36 {offsets = [0, 256], sizes = [1, 2048], strides = [1, 1]} : vector<1x2304xf32> to vector<1x2048xf32>
    %52 = vector.broadcast %50 : vector<16x1xf32> to vector<16x2048xf32>
    %53 = vector.broadcast %51 : vector<1x2048xf32> to vector<16x2048xf32>
    %54 = arith.mulf %52, %53 : vector<16x2048xf32>
    %55 = arith.addf %49, %54 : vector<16x2048xf32>
    %cst_36 = arith.constant 5.000000e-01 : f32
    %56 = vector.broadcast %cst_36 : f32 to vector<16x2048xf32>
    %57 = arith.mulf %56, %55 : vector<16x2048xf32>
    %58 = math.tanh %57 : vector<16x2048xf32>
    %cst_37 = arith.constant 1.000000e+00 : f32
    %59 = vector.broadcast %cst_37 : f32 to vector<16x2048xf32>
    %60 = arith.addf %59, %58 : vector<16x2048xf32>
    %cst_38 = arith.constant 5.000000e-01 : f32
    %61 = vector.broadcast %cst_38 : f32 to vector<16x2048xf32>
    %62 = arith.mulf %61, %60 : vector<16x2048xf32>
    %63 = arith.mulf %55, %62 : vector<16x2048xf32>
    %c0_39 = arith.constant 0 : index
    %c0_40 = arith.constant 0 : index
    %64 = vector.load %arg4[%c0_39, %c0_40] : memref<16x16xf32, #tpu.memory_space<vmem>>, vector<16x16xf32>
    %c0_41 = arith.constant 0 : index
    %c0_42 = arith.constant 0 : index
    %65 = vector.load %arg5[%c0_41, %c0_42] : memref<16x1xf32, #tpu.memory_space<vmem>>, vector<16x1xf32>
    %c0_43 = arith.constant 0 : index
    %c0_44 = arith.constant 0 : index
    %66 = vector.load %arg6[%c0_43, %c0_44] : memref<16x3xf32, #tpu.memory_space<vmem>>, vector<16x3xf32>
    %c0_45 = arith.constant 0 : index
    %c0_46 = arith.constant 0 : index
    %67 = vector.load %arg7[%c0_45, %c0_46] : memref<16x1xf32, #tpu.memory_space<vmem>>, vector<16x1xf32>
    %c0_47 = arith.constant 0 : index
    %c0_48 = arith.constant 0 : index
    %68 = vector.load %arg8[%c0_47, %c0_48] : memref<32x16xf32, #tpu.memory_space<vmem>>, vector<32x16xf32>
    %c0_49 = arith.constant 0 : index
    %c0_50 = arith.constant 0 : index
    %69 = vector.load %arg9[%c0_49, %c0_50] : memref<32x1xf32, #tpu.memory_space<vmem>>, vector<32x1xf32>
    %70 = arith.truncf %64 : vector<16x16xf32> to vector<16x16xbf16>
    %71 = arith.truncf %63 : vector<16x2048xf32> to vector<16x2048xbf16>
    %cst_51 = arith.constant dense<0.000000e+00> : vector<16x2048xf32>
    %72 = tpu.matmul %70, %71, %cst_51 {dimension_numbers = #tpu.dot_dimension_numbers<[1], [0], [0], [1], [0, 0, 1, 1], [], []>} : vector<16x16xbf16>, vector<16x2048xbf16>, vector<16x2048xf32> -> vector<16x2048xf32>
    %73 = vector.broadcast %65 : vector<16x1xf32> to vector<16x2048xf32>
    %74 = arith.addf %72, %73 : vector<16x2048xf32>
    %cst_52 = arith.constant 5.000000e-01 : f32
    %75 = vector.broadcast %cst_52 : f32 to vector<16x2048xf32>
    %76 = arith.mulf %75, %74 : vector<16x2048xf32>
    %77 = math.tanh %76 : vector<16x2048xf32>
    %cst_53 = arith.constant 1.000000e+00 : f32
    %78 = vector.broadcast %cst_53 : f32 to vector<16x2048xf32>
    %79 = arith.addf %78, %77 : vector<16x2048xf32>
    %cst_54 = arith.constant 5.000000e-01 : f32
    %80 = vector.broadcast %cst_54 : f32 to vector<16x2048xf32>
    %81 = arith.mulf %80, %79 : vector<16x2048xf32>
    %82 = arith.mulf %74, %81 : vector<16x2048xf32>
    %cst_55 = arith.constant 5.000000e-01 : f32
    %83 = vector.broadcast %cst_55 : f32 to vector<16x1xf32>
    %84 = arith.mulf %83, %65 : vector<16x1xf32>
    %85 = math.tanh %84 : vector<16x1xf32>
    %cst_56 = arith.constant 1.000000e+00 : f32
    %86 = vector.broadcast %cst_56 : f32 to vector<16x1xf32>
    %87 = arith.addf %86, %85 : vector<16x1xf32>
    %cst_57 = arith.constant 5.000000e-01 : f32
    %88 = vector.broadcast %cst_57 : f32 to vector<16x1xf32>
    %89 = arith.mulf %88, %87 : vector<16x1xf32>
    %90 = arith.mulf %65, %89 : vector<16x1xf32>
    %91 = vector.shape_cast %90 : vector<16x1xf32> to vector<16x1xf32>
    %92 = vector.broadcast %91 : vector<16x1xf32> to vector<16x256xf32>
    %93 = tpu.concatenate %92, %82, %92 in 1 : vector<16x256xf32>, vector<16x2048xf32>, vector<16x256xf32> -> vector<16x2560xf32>
    %94 = vector.shape_cast %67 : vector<16x1xf32> to vector<16x1xf32>
    %95 = vector.broadcast %94 : vector<16x1xf32> to vector<16x2048xf32>
    %96 = vector.extract_strided_slice %66 {offsets = [0, 0], sizes = [16, 1], strides = [1, 1]} : vector<16x3xf32> to vector<16x1xf32>
    %97 = vector.extract_strided_slice %93 {offsets = [0, 0], sizes = [16, 2048], strides = [1, 1]} : vector<16x2560xf32> to vector<16x2048xf32>
    %98 = vector.broadcast %96 : vector<16x1xf32> to vector<16x2048xf32>
    %99 = arith.mulf %98, %97 : vector<16x2048xf32>
    %100 = arith.addf %95, %99 : vector<16x2048xf32>
    %101 = vector.extract_strided_slice %66 {offsets = [0, 1], sizes = [16, 1], strides = [1, 1]} : vector<16x3xf32> to vector<16x1xf32>
    %102 = vector.extract_strided_slice %93 {offsets = [0, 256], sizes = [16, 2048], strides = [1, 1]} : vector<16x2560xf32> to vector<16x2048xf32>
    %103 = vector.broadcast %101 : vector<16x1xf32> to vector<16x2048xf32>
    %104 = arith.mulf %103, %102 : vector<16x2048xf32>
    %105 = arith.addf %100, %104 : vector<16x2048xf32>
    %106 = vector.extract_strided_slice %66 {offsets = [0, 2], sizes = [16, 1], strides = [1, 1]} : vector<16x3xf32> to vector<16x1xf32>
    %107 = vector.extract_strided_slice %93 {offsets = [0, 512], sizes = [16, 2048], strides = [1, 1]} : vector<16x2560xf32> to vector<16x2048xf32>
    %108 = vector.broadcast %106 : vector<16x1xf32> to vector<16x2048xf32>
    %109 = arith.mulf %108, %107 : vector<16x2048xf32>
    %110 = arith.addf %105, %109 : vector<16x2048xf32>
    %cst_58 = arith.constant 5.000000e-01 : f32
    %111 = vector.broadcast %cst_58 : f32 to vector<16x2048xf32>
    %112 = arith.mulf %111, %110 : vector<16x2048xf32>
    %113 = math.tanh %112 : vector<16x2048xf32>
    %cst_59 = arith.constant 1.000000e+00 : f32
    %114 = vector.broadcast %cst_59 : f32 to vector<16x2048xf32>
    %115 = arith.addf %114, %113 : vector<16x2048xf32>
    %cst_60 = arith.constant 5.000000e-01 : f32
    %116 = vector.broadcast %cst_60 : f32 to vector<16x2048xf32>
    %117 = arith.mulf %116, %115 : vector<16x2048xf32>
    %118 = arith.mulf %110, %117 : vector<16x2048xf32>
    %119 = arith.truncf %68 : vector<32x16xf32> to vector<32x16xbf16>
    %120 = arith.truncf %118 : vector<16x2048xf32> to vector<16x2048xbf16>
    %cst_61 = arith.constant dense<0.000000e+00> : vector<32x2048xf32>
    %121 = tpu.matmul %119, %120, %cst_61 {dimension_numbers = #tpu.dot_dimension_numbers<[1], [0], [0], [1], [0, 0, 1, 1], [], []>} : vector<32x16xbf16>, vector<16x2048xbf16>, vector<32x2048xf32> -> vector<32x2048xf32>
    %122 = vector.broadcast %69 : vector<32x1xf32> to vector<32x2048xf32>
    %123 = arith.addf %121, %122 : vector<32x2048xf32>
    %cst_62 = arith.constant 5.000000e-01 : f32
    %124 = vector.broadcast %cst_62 : f32 to vector<32x2048xf32>
    %125 = arith.mulf %124, %123 : vector<32x2048xf32>
    %126 = math.tanh %125 : vector<32x2048xf32>
    %cst_63 = arith.constant 1.000000e+00 : f32
    %127 = vector.broadcast %cst_63 : f32 to vector<32x2048xf32>
    %128 = arith.addf %127, %126 : vector<32x2048xf32>
    %cst_64 = arith.constant 5.000000e-01 : f32
    %129 = vector.broadcast %cst_64 : f32 to vector<32x2048xf32>
    %130 = arith.mulf %129, %128 : vector<32x2048xf32>
    %131 = arith.mulf %123, %130 : vector<32x2048xf32>
    %132 = vector.extract_strided_slice %131 {offsets = [0, 0], sizes = [32, 128], strides = [1, 1]} : vector<32x2048xf32> to vector<32x128xf32>
    %133 = vector.extract_strided_slice %131 {offsets = [0, 128], sizes = [32, 128], strides = [1, 1]} : vector<32x2048xf32> to vector<32x128xf32>
    %134 = arith.maximumf %132, %133 : vector<32x128xf32>
    %135 = vector.extract_strided_slice %131 {offsets = [0, 256], sizes = [32, 128], strides = [1, 1]} : vector<32x2048xf32> to vector<32x128xf32>
    %136 = vector.extract_strided_slice %131 {offsets = [0, 384], sizes = [32, 128], strides = [1, 1]} : vector<32x2048xf32> to vector<32x128xf32>
    %137 = arith.maximumf %135, %136 : vector<32x128xf32>
    %138 = vector.extract_strided_slice %131 {offsets = [0, 512], sizes = [32, 128], strides = [1, 1]} : vector<32x2048xf32> to vector<32x128xf32>
    %139 = vector.extract_strided_slice %131 {offsets = [0, 640], sizes = [32, 128], strides = [1, 1]} : vector<32x2048xf32> to vector<32x128xf32>
    %140 = arith.maximumf %138, %139 : vector<32x128xf32>
    %141 = vector.extract_strided_slice %131 {offsets = [0, 768], sizes = [32, 128], strides = [1, 1]} : vector<32x2048xf32> to vector<32x128xf32>
    %142 = vector.extract_strided_slice %131 {offsets = [0, 896], sizes = [32, 128], strides = [1, 1]} : vector<32x2048xf32> to vector<32x128xf32>
    %143 = arith.maximumf %141, %142 : vector<32x128xf32>
    %144 = vector.extract_strided_slice %131 {offsets = [0, 1024], sizes = [32, 128], strides = [1, 1]} : vector<32x2048xf32> to vector<32x128xf32>
    %145 = vector.extract_strided_slice %131 {offsets = [0, 1152], sizes = [32, 128], strides = [1, 1]} : vector<32x2048xf32> to vector<32x128xf32>
    %146 = arith.maximumf %144, %145 : vector<32x128xf32>
    %147 = vector.extract_strided_slice %131 {offsets = [0, 1280], sizes = [32, 128], strides = [1, 1]} : vector<32x2048xf32> to vector<32x128xf32>
    %148 = vector.extract_strided_slice %131 {offsets = [0, 1408], sizes = [32, 128], strides = [1, 1]} : vector<32x2048xf32> to vector<32x128xf32>
    %149 = arith.maximumf %147, %148 : vector<32x128xf32>
    %150 = vector.extract_strided_slice %131 {offsets = [0, 1536], sizes = [32, 128], strides = [1, 1]} : vector<32x2048xf32> to vector<32x128xf32>
    %151 = vector.extract_strided_slice %131 {offsets = [0, 1664], sizes = [32, 128], strides = [1, 1]} : vector<32x2048xf32> to vector<32x128xf32>
    %152 = arith.maximumf %150, %151 : vector<32x128xf32>
    %153 = vector.extract_strided_slice %131 {offsets = [0, 1792], sizes = [32, 128], strides = [1, 1]} : vector<32x2048xf32> to vector<32x128xf32>
    %154 = vector.extract_strided_slice %131 {offsets = [0, 1920], sizes = [32, 128], strides = [1, 1]} : vector<32x2048xf32> to vector<32x128xf32>
    %155 = arith.maximumf %153, %154 : vector<32x128xf32>
    %156 = tpu.concatenate %134, %137, %140, %143, %146, %149, %152, %155 in 1 : vector<32x128xf32>, vector<32x128xf32>, vector<32x128xf32>, vector<32x128xf32>, vector<32x128xf32>, vector<32x128xf32>, vector<32x128xf32>, vector<32x128xf32> -> vector<32x1024xf32>
    %c0_65 = arith.constant 0 : index
    %c0_66 = arith.constant 0 : index
    %157 = vector.load %arg10[%c0_65, %c0_66] : memref<32x32xf32, #tpu.memory_space<vmem>>, vector<32x32xf32>
    %c0_67 = arith.constant 0 : index
    %c0_68 = arith.constant 0 : index
    %158 = vector.load %arg11[%c0_67, %c0_68] : memref<32x1xf32, #tpu.memory_space<vmem>>, vector<32x1xf32>
    %c0_69 = arith.constant 0 : index
    %c0_70 = arith.constant 0 : index
    %159 = vector.load %arg12[%c0_69, %c0_70] : memref<32x3xf32, #tpu.memory_space<vmem>>, vector<32x3xf32>
    %c0_71 = arith.constant 0 : index
    %c0_72 = arith.constant 0 : index
    %160 = vector.load %arg13[%c0_71, %c0_72] : memref<32x1xf32, #tpu.memory_space<vmem>>, vector<32x1xf32>
    %c0_73 = arith.constant 0 : index
    %c0_74 = arith.constant 0 : index
    %161 = vector.load %arg14[%c0_73, %c0_74] : memref<32x32xf32, #tpu.memory_space<vmem>>, vector<32x32xf32>
    %c0_75 = arith.constant 0 : index
    %c0_76 = arith.constant 0 : index
    %162 = vector.load %arg15[%c0_75, %c0_76] : memref<32x1xf32, #tpu.memory_space<vmem>>, vector<32x1xf32>
    %163 = arith.truncf %157 : vector<32x32xf32> to vector<32x32xbf16>
    %164 = arith.truncf %156 : vector<32x1024xf32> to vector<32x1024xbf16>
    %cst_77 = arith.constant dense<0.000000e+00> : vector<32x1024xf32>
    %165 = tpu.matmul %163, %164, %cst_77 {dimension_numbers = #tpu.dot_dimension_numbers<[1], [0], [0], [1], [0, 0, 1, 1], [], []>} : vector<32x32xbf16>, vector<32x1024xbf16>, vector<32x1024xf32> -> vector<32x1024xf32>
    %166 = vector.broadcast %158 : vector<32x1xf32> to vector<32x1024xf32>
    %167 = arith.addf %165, %166 : vector<32x1024xf32>
    %cst_78 = arith.constant 5.000000e-01 : f32
    %168 = vector.broadcast %cst_78 : f32 to vector<32x1024xf32>
    %169 = arith.mulf %168, %167 : vector<32x1024xf32>
    %170 = math.tanh %169 : vector<32x1024xf32>
    %cst_79 = arith.constant 1.000000e+00 : f32
    %171 = vector.broadcast %cst_79 : f32 to vector<32x1024xf32>
    %172 = arith.addf %171, %170 : vector<32x1024xf32>
    %cst_80 = arith.constant 5.000000e-01 : f32
    %173 = vector.broadcast %cst_80 : f32 to vector<32x1024xf32>
    %174 = arith.mulf %173, %172 : vector<32x1024xf32>
    %175 = arith.mulf %167, %174 : vector<32x1024xf32>
    %cst_81 = arith.constant 5.000000e-01 : f32
    %176 = vector.broadcast %cst_81 : f32 to vector<32x1xf32>
    %177 = arith.mulf %176, %158 : vector<32x1xf32>
    %178 = math.tanh %177 : vector<32x1xf32>
    %cst_82 = arith.constant 1.000000e+00 : f32
    %179 = vector.broadcast %cst_82 : f32 to vector<32x1xf32>
    %180 = arith.addf %179, %178 : vector<32x1xf32>
    %cst_83 = arith.constant 5.000000e-01 : f32
    %181 = vector.broadcast %cst_83 : f32 to vector<32x1xf32>
    %182 = arith.mulf %181, %180 : vector<32x1xf32>
    %183 = arith.mulf %158, %182 : vector<32x1xf32>
    %184 = vector.shape_cast %183 : vector<32x1xf32> to vector<32x1xf32>
    %185 = vector.broadcast %184 : vector<32x1xf32> to vector<32x256xf32>
    %186 = tpu.concatenate %185, %175, %185 in 1 : vector<32x256xf32>, vector<32x1024xf32>, vector<32x256xf32> -> vector<32x1536xf32>
    %187 = vector.shape_cast %160 : vector<32x1xf32> to vector<32x1xf32>
    %188 = vector.broadcast %187 : vector<32x1xf32> to vector<32x1024xf32>
    %189 = vector.extract_strided_slice %159 {offsets = [0, 0], sizes = [32, 1], strides = [1, 1]} : vector<32x3xf32> to vector<32x1xf32>
    %190 = vector.extract_strided_slice %186 {offsets = [0, 0], sizes = [32, 1024], strides = [1, 1]} : vector<32x1536xf32> to vector<32x1024xf32>
    %191 = vector.broadcast %189 : vector<32x1xf32> to vector<32x1024xf32>
    %192 = arith.mulf %191, %190 : vector<32x1024xf32>
    %193 = arith.addf %188, %192 : vector<32x1024xf32>
    %194 = vector.extract_strided_slice %159 {offsets = [0, 1], sizes = [32, 1], strides = [1, 1]} : vector<32x3xf32> to vector<32x1xf32>
    %195 = vector.extract_strided_slice %186 {offsets = [0, 256], sizes = [32, 1024], strides = [1, 1]} : vector<32x1536xf32> to vector<32x1024xf32>
    %196 = vector.broadcast %194 : vector<32x1xf32> to vector<32x1024xf32>
    %197 = arith.mulf %196, %195 : vector<32x1024xf32>
    %198 = arith.addf %193, %197 : vector<32x1024xf32>
    %199 = vector.extract_strided_slice %159 {offsets = [0, 2], sizes = [32, 1], strides = [1, 1]} : vector<32x3xf32> to vector<32x1xf32>
    %200 = vector.extract_strided_slice %186 {offsets = [0, 512], sizes = [32, 1024], strides = [1, 1]} : vector<32x1536xf32> to vector<32x1024xf32>
    %201 = vector.broadcast %199 : vector<32x1xf32> to vector<32x1024xf32>
    %202 = arith.mulf %201, %200 : vector<32x1024xf32>
    %203 = arith.addf %198, %202 : vector<32x1024xf32>
    %cst_84 = arith.constant 5.000000e-01 : f32
    %204 = vector.broadcast %cst_84 : f32 to vector<32x1024xf32>
    %205 = arith.mulf %204, %203 : vector<32x1024xf32>
    %206 = math.tanh %205 : vector<32x1024xf32>
    %cst_85 = arith.constant 1.000000e+00 : f32
    %207 = vector.broadcast %cst_85 : f32 to vector<32x1024xf32>
    %208 = arith.addf %207, %206 : vector<32x1024xf32>
    %cst_86 = arith.constant 5.000000e-01 : f32
    %209 = vector.broadcast %cst_86 : f32 to vector<32x1024xf32>
    %210 = arith.mulf %209, %208 : vector<32x1024xf32>
    %211 = arith.mulf %203, %210 : vector<32x1024xf32>
    %212 = arith.truncf %161 : vector<32x32xf32> to vector<32x32xbf16>
    %213 = arith.truncf %211 : vector<32x1024xf32> to vector<32x1024xbf16>
    %cst_87 = arith.constant dense<0.000000e+00> : vector<32x1024xf32>
    %214 = tpu.matmul %212, %213, %cst_87 {dimension_numbers = #tpu.dot_dimension_numbers<[1], [0], [0], [1], [0, 0, 1, 1], [], []>} : vector<32x32xbf16>, vector<32x1024xbf16>, vector<32x1024xf32> -> vector<32x1024xf32>
    %215 = vector.broadcast %162 : vector<32x1xf32> to vector<32x1024xf32>
    %216 = arith.addf %214, %215 : vector<32x1024xf32>
    %cst_88 = arith.constant 5.000000e-01 : f32
    %217 = vector.broadcast %cst_88 : f32 to vector<32x1024xf32>
    %218 = arith.mulf %217, %216 : vector<32x1024xf32>
    %219 = math.tanh %218 : vector<32x1024xf32>
    %cst_89 = arith.constant 1.000000e+00 : f32
    %220 = vector.broadcast %cst_89 : f32 to vector<32x1024xf32>
    %221 = arith.addf %220, %219 : vector<32x1024xf32>
    %cst_90 = arith.constant 5.000000e-01 : f32
    %222 = vector.broadcast %cst_90 : f32 to vector<32x1024xf32>
    %223 = arith.mulf %222, %221 : vector<32x1024xf32>
    %224 = arith.mulf %216, %223 : vector<32x1024xf32>
    %225 = arith.addf %224, %156 : vector<32x1024xf32>
    %cst_91 = arith.constant 5.000000e-01 : f32
    %226 = vector.broadcast %cst_91 : f32 to vector<32x1024xf32>
    %227 = arith.mulf %226, %225 : vector<32x1024xf32>
    %228 = math.tanh %227 : vector<32x1024xf32>
    %cst_92 = arith.constant 1.000000e+00 : f32
    %229 = vector.broadcast %cst_92 : f32 to vector<32x1024xf32>
    %230 = arith.addf %229, %228 : vector<32x1024xf32>
    %cst_93 = arith.constant 5.000000e-01 : f32
    %231 = vector.broadcast %cst_93 : f32 to vector<32x1024xf32>
    %232 = arith.mulf %231, %230 : vector<32x1024xf32>
    %233 = arith.mulf %225, %232 : vector<32x1024xf32>
    %234 = vector.extract_strided_slice %233 {offsets = [0, 0], sizes = [32, 128], strides = [1, 1]} : vector<32x1024xf32> to vector<32x128xf32>
    %c0_94 = arith.constant 0 : index
    %c0_95 = arith.constant 0 : index
    %c0_96 = arith.constant 0 : index
    %235 = vector.load %arg16[%c0_94, %c0_95, %c0_96] : memref<8x32x128xf32, #tpu.memory_space<vmem>>, vector<1x32x128xf32>
    %236 = vector.shape_cast %235 : vector<1x32x128xf32> to vector<32x128xf32>
    %237 = vector.shape_cast %234 : vector<32x128xf32> to vector<1x32x128xf32>
    tpu.vector_store %arg16[%c0_94, %c0_95, %c0_96], %237 {strides = array<i32>} : memref<8x32x128xf32, #tpu.memory_space<vmem>>, vector<1x32x128xf32>,
    %238 = vector.extract_strided_slice %233 {offsets = [0, 128], sizes = [32, 128], strides = [1, 1]} : vector<32x1024xf32> to vector<32x128xf32>
    %c1_97 = arith.constant 1 : index
    %c0_98 = arith.constant 0 : index
    %c0_99 = arith.constant 0 : index
    %239 = vector.load %arg16[%c1_97, %c0_98, %c0_99] : memref<8x32x128xf32, #tpu.memory_space<vmem>>, vector<1x32x128xf32>
    %240 = vector.shape_cast %239 : vector<1x32x128xf32> to vector<32x128xf32>
    %241 = vector.shape_cast %238 : vector<32x128xf32> to vector<1x32x128xf32>
    tpu.vector_store %arg16[%c1_97, %c0_98, %c0_99], %241 {strides = array<i32>} : memref<8x32x128xf32, #tpu.memory_space<vmem>>, vector<1x32x128xf32>,
    %242 = vector.extract_strided_slice %233 {offsets = [0, 256], sizes = [32, 128], strides = [1, 1]} : vector<32x1024xf32> to vector<32x128xf32>
    %c2_100 = arith.constant 2 : index
    %c0_101 = arith.constant 0 : index
    %c0_102 = arith.constant 0 : index
    %243 = vector.load %arg16[%c2_100, %c0_101, %c0_102] : memref<8x32x128xf32, #tpu.memory_space<vmem>>, vector<1x32x128xf32>
    %244 = vector.shape_cast %243 : vector<1x32x128xf32> to vector<32x128xf32>
    %245 = vector.shape_cast %242 : vector<32x128xf32> to vector<1x32x128xf32>
    tpu.vector_store %arg16[%c2_100, %c0_101, %c0_102], %245 {strides = array<i32>} : memref<8x32x128xf32, #tpu.memory_space<vmem>>, vector<1x32x128xf32>,
    %246 = vector.extract_strided_slice %233 {offsets = [0, 384], sizes = [32, 128], strides = [1, 1]} : vector<32x1024xf32> to vector<32x128xf32>
    %c3_103 = arith.constant 3 : index
    %c0_104 = arith.constant 0 : index
    %c0_105 = arith.constant 0 : index
    %247 = vector.load %arg16[%c3_103, %c0_104, %c0_105] : memref<8x32x128xf32, #tpu.memory_space<vmem>>, vector<1x32x128xf32>
    %248 = vector.shape_cast %247 : vector<1x32x128xf32> to vector<32x128xf32>
    %249 = vector.shape_cast %246 : vector<32x128xf32> to vector<1x32x128xf32>
    tpu.vector_store %arg16[%c3_103, %c0_104, %c0_105], %249 {strides = array<i32>} : memref<8x32x128xf32, #tpu.memory_space<vmem>>, vector<1x32x128xf32>,
    %250 = vector.extract_strided_slice %233 {offsets = [0, 512], sizes = [32, 128], strides = [1, 1]} : vector<32x1024xf32> to vector<32x128xf32>
    %c4_106 = arith.constant 4 : index
    %c0_107 = arith.constant 0 : index
    %c0_108 = arith.constant 0 : index
    %251 = vector.load %arg16[%c4_106, %c0_107, %c0_108] : memref<8x32x128xf32, #tpu.memory_space<vmem>>, vector<1x32x128xf32>
    %252 = vector.shape_cast %251 : vector<1x32x128xf32> to vector<32x128xf32>
    %253 = vector.shape_cast %250 : vector<32x128xf32> to vector<1x32x128xf32>
    tpu.vector_store %arg16[%c4_106, %c0_107, %c0_108], %253 {strides = array<i32>} : memref<8x32x128xf32, #tpu.memory_space<vmem>>, vector<1x32x128xf32>,
    %254 = vector.extract_strided_slice %233 {offsets = [0, 640], sizes = [32, 128], strides = [1, 1]} : vector<32x1024xf32> to vector<32x128xf32>
    %c5_109 = arith.constant 5 : index
    %c0_110 = arith.constant 0 : index
    %c0_111 = arith.constant 0 : index
    %255 = vector.load %arg16[%c5_109, %c0_110, %c0_111] : memref<8x32x128xf32, #tpu.memory_space<vmem>>, vector<1x32x128xf32>
    %256 = vector.shape_cast %255 : vector<1x32x128xf32> to vector<32x128xf32>
    %257 = vector.shape_cast %254 : vector<32x128xf32> to vector<1x32x128xf32>
    tpu.vector_store %arg16[%c5_109, %c0_110, %c0_111], %257 {strides = array<i32>} : memref<8x32x128xf32, #tpu.memory_space<vmem>>, vector<1x32x128xf32>,
    %258 = vector.extract_strided_slice %233 {offsets = [0, 768], sizes = [32, 128], strides = [1, 1]} : vector<32x1024xf32> to vector<32x128xf32>
    %c6_112 = arith.constant 6 : index
    %c0_113 = arith.constant 0 : index
    %c0_114 = arith.constant 0 : index
    %259 = vector.load %arg16[%c6_112, %c0_113, %c0_114] : memref<8x32x128xf32, #tpu.memory_space<vmem>>, vector<1x32x128xf32>
    %260 = vector.shape_cast %259 : vector<1x32x128xf32> to vector<32x128xf32>
    %261 = vector.shape_cast %258 : vector<32x128xf32> to vector<1x32x128xf32>
    tpu.vector_store %arg16[%c6_112, %c0_113, %c0_114], %261 {strides = array<i32>} : memref<8x32x128xf32, #tpu.memory_space<vmem>>, vector<1x32x128xf32>,
    %262 = vector.extract_strided_slice %233 {offsets = [0, 896], sizes = [32, 128], strides = [1, 1]} : vector<32x1024xf32> to vector<32x128xf32>
    %c7_115 = arith.constant 7 : index
    %c0_116 = arith.constant 0 : index
    %c0_117 = arith.constant 0 : index
    %263 = vector.load %arg16[%c7_115, %c0_116, %c0_117] : memref<8x32x128xf32, #tpu.memory_space<vmem>>, vector<1x32x128xf32>
    %264 = vector.shape_cast %263 : vector<1x32x128xf32> to vector<32x128xf32>
    %265 = vector.shape_cast %262 : vector<32x128xf32> to vector<1x32x128xf32>
    tpu.vector_store %arg16[%c7_115, %c0_116, %c0_117], %265 {strides = array<i32>} : memref<8x32x128xf32, #tpu.memory_space<vmem>>, vector<1x32x128xf32>,
    return
  }
  func.func @transform_0(%arg0: i32) -> (i32, i32, i32) {
    %c0_i32 = arith.constant 0 : i32
    %c0_i32_0 = arith.constant 0 : i32
    %c0_i32_1 = arith.constant 0 : i32
    return %c0_i32, %c0_i32_0, %arg0 : i32, i32, i32
  }
  func.func @transform_1(%arg0: i32) -> (i32, i32) {
    %c0_i32 = arith.constant 0 : i32
    %c0_i32_0 = arith.constant 0 : i32
    %c0_i32_1 = arith.constant 0 : i32
    return %c0_i32, %c0_i32_0 : i32, i32
  }
  func.func @transform_2(%arg0: i32) -> (i32, i32) {
    %c0_i32 = arith.constant 0 : i32
    %c0_i32_0 = arith.constant 0 : i32
    %c0_i32_1 = arith.constant 0 : i32
    return %c0_i32, %c0_i32_0 : i32, i32
  }
  func.func @transform_3(%arg0: i32) -> (i32, i32) {
    %c0_i32 = arith.constant 0 : i32
    %c0_i32_0 = arith.constant 0 : i32
    %c0_i32_1 = arith.constant 0 : i32
    return %c0_i32, %c0_i32_0 : i32, i32
  }
  func.func @transform_4(%arg0: i32) -> (i32, i32) {
    %c0_i32 = arith.constant 0 : i32
    %c0_i32_0 = arith.constant 0 : i32
    %c0_i32_1 = arith.constant 0 : i32
    return %c0_i32, %c0_i32_0 : i32, i32
  }
  func.func @transform_5(%arg0: i32) -> (i32, i32) {
    %c0_i32 = arith.constant 0 : i32
    %c0_i32_0 = arith.constant 0 : i32
    %c0_i32_1 = arith.constant 0 : i32
    return %c0_i32, %c0_i32_0 : i32, i32
  }
  func.func @transform_6(%arg0: i32) -> (i32, i32) {
    %c0_i32 = arith.constant 0 : i32
    %c0_i32_0 = arith.constant 0 : i32
    %c0_i32_1 = arith.constant 0 : i32
    return %c0_i32, %c0_i32_0 : i32, i32
  }
  func.func @transform_7(%arg0: i32) -> (i32, i32) {
    %c0_i32 = arith.constant 0 : i32
    %c0_i32_0 = arith.constant 0 : i32
    %c0_i32_1 = arith.constant 0 : i32
    return %c0_i32, %c0_i32_0 : i32, i32
  }
  func.func @transform_8(%arg0: i32) -> (i32, i32) {
    %c0_i32 = arith.constant 0 : i32
    %c0_i32_0 = arith.constant 0 : i32
    %c0_i32_1 = arith.constant 0 : i32
    return %c0_i32, %c0_i32_0 : i32, i32
  }
  func.func @transform_9(%arg0: i32) -> (i32, i32) {
    %c0_i32 = arith.constant 0 : i32
    %c0_i32_0 = arith.constant 0 : i32
    %c0_i32_1 = arith.constant 0 : i32
    return %c0_i32, %c0_i32_0 : i32, i32
  }
  func.func @transform_10(%arg0: i32) -> (i32, i32) {
    %c0_i32 = arith.constant 0 : i32
    %c0_i32_0 = arith.constant 0 : i32
    %c0_i32_1 = arith.constant 0 : i32
    return %c0_i32, %c0_i32_0 : i32, i32
  }
  func.func @transform_11(%arg0: i32) -> (i32, i32) {
    %c0_i32 = arith.constant 0 : i32
    %c0_i32_0 = arith.constant 0 : i32
    %c0_i32_1 = arith.constant 0 : i32
    return %c0_i32, %c0_i32_0 : i32, i32
  }
  func.func @transform_12(%arg0: i32) -> (i32, i32) {
    %c0_i32 = arith.constant 0 : i32
    %c0_i32_0 = arith.constant 0 : i32
    %c0_i32_1 = arith.constant 0 : i32
    return %c0_i32, %c0_i32_0 : i32, i32
  }
  func.func @transform_13(%arg0: i32) -> (i32, i32) {
    %c0_i32 = arith.constant 0 : i32
    %c0_i32_0 = arith.constant 0 : i32
    %c0_i32_1 = arith.constant 0 : i32
    return %c0_i32, %c0_i32_0 : i32, i32
  }
  func.func @transform_14(%arg0: i32) -> (i32, i32) {
    %c0_i32 = arith.constant 0 : i32
    %c0_i32_0 = arith.constant 0 : i32
    %c0_i32_1 = arith.constant 0 : i32
    return %c0_i32, %c0_i32_0 : i32, i32
  }
  func.func @transform_15(%arg0: i32) -> (i32, i32, i32) {
    %c0_i32 = arith.constant 0 : i32
    %c0_i32_0 = arith.constant 0 : i32
    %c0_i32_1 = arith.constant 0 : i32
    return %c0_i32, %c0_i32_0, %arg0 : i32, i32, i32
  }
}

</mosaic_0001>

<llo_original>
// kernel: tpu_custom_call.1
$region0: #{tpu_custom_call.1}
  #allocation0 [shape = 'u32[]', space=smem, size = 0x4, offset = 0x4, fixed_abs, tag = 'smem constant byte address 0x4 - core index']
  #allocation1 [shape = 'u32[144,128]{1,0:T(1,128)}', space=vmem, size = 0x12000, scoped, tag = 'internal scratch']
  %s0 = inlined_call_operand.vmem [shape: f32[16,1,256], index: 0, kind: input, shape index: {}]
  %s1 = inlined_call_operand.vmem [shape: f32[16,3], index: 1, kind: input, shape index: {}]
  %s2 = inlined_call_operand.vmem [shape: f32[16,1], index: 2, kind: input, shape index: {}]
  %s3 = inlined_call_operand.vmem [shape: f32[16,16], index: 3, kind: input, shape index: {}]
  %s4 = inlined_call_operand.vmem [shape: f32[16,1], index: 4, kind: input, shape index: {}]
  %s5 = inlined_call_operand.vmem [shape: f32[16,3], index: 5, kind: input, shape index: {}]
  %s6 = inlined_call_operand.vmem [shape: f32[16,1], index: 6, kind: input, shape index: {}]
  %s7 = inlined_call_operand.vmem [shape: f32[32,16], index: 7, kind: input, shape index: {}]
  %s8 = inlined_call_operand.vmem [shape: f32[32,1], index: 8, kind: input, shape index: {}]
  %s9 = inlined_call_operand.vmem [shape: f32[32,32], index: 9, kind: input, shape index: {}]
  %s10 = inlined_call_operand.vmem [shape: f32[32,1], index: 10, kind: input, shape index: {}]
  %s11 = inlined_call_operand.vmem [shape: f32[32,3], index: 11, kind: input, shape index: {}]
  %s12 = inlined_call_operand.vmem [shape: f32[32,1], index: 12, kind: input, shape index: {}]
  %s13 = inlined_call_operand.vmem [shape: f32[32,32], index: 13, kind: input, shape index: {}]
  %s14 = inlined_call_operand.vmem [shape: f32[32,1], index: 14, kind: input, shape index: {}]
  %s15 = inlined_call_operand.hbm [shape: f32[8,32,256], index: 15, kind: output, shape index: {}]
  %s16 = sld [smem:[#allocation0]]
  $region134: #{tpu_custom_call.1} parent=0
    _
  %s18 = ssub.s32 1, %s16
  %s19 = scalar_select 0, %s18, %s16
  $region1: #{tpu_custom_call.1} parent=0
    #allocation2 [shape = 'u8[16384]{0}', space=vmem, size = 0x4000, scoped, tag = 'input window, operand 0']
    #allocation3 [shape = 'u8[262144]{0}', space=vmem, size = 0x40000, scoped, tag = 'output window, operand 0']
    #allocation4 [shape = 's32[2]{0}', space=sflag, size = 0x8, scoped, tag = 'scoped memory for tpu_custom_call.1']
    %20 = vsyncpa [#allocation4], 0
    %s21 = scalar_lea.sflag [#allocation4], 1
    %22 = vsyncpa %s21, 0
    loop: start=0, step=1, limit=4
    $region2: #{tpu_custom_call.1} parent=1 // loop_pre_header
      _
    $region3: #{tpu_custom_call.1} parent=1 // loop_header
      %s24 = sphi 0, %s28
      %p25 = scmp.ge.s32.totalorder %s24, 4
      %s34 = sphi 0, %s36
      %s37 = sphi 0, %s34
      %s38 = sphi 0, %s37
      %s54 = sphi 0, %s38
      %s58 = sphi 0, %s58
      %s60 = sphi 0, %s58
      %s61 = sphi 0, %s60
      %s75 = sphi 0, %s61
      %s79 = sphi 0, %s79
      %s81 = sphi 0, %s79
      %s82 = sphi 0, %s81
      %s96 = sphi 0, %s82
      %s100 = sphi 0, %s100
      %s102 = sphi 0, %s100
      %s103 = sphi 0, %s102
      %s117 = sphi 0, %s103
      %s121 = sphi 0, %s121
      %s123 = sphi 0, %s121
      %s124 = sphi 0, %s123
      %s138 = sphi 0, %s124
      %s142 = sphi 0, %s142
      %s144 = sphi 0, %s142
      %s145 = sphi 0, %s144
      %s159 = sphi 0, %s145
      %s163 = sphi 0, %s163
      %s165 = sphi 0, %s163
      %s166 = sphi 0, %s165
      %s180 = sphi 0, %s166
      %s184 = sphi 0, %s184
      %s186 = sphi 0, %s184
      %s187 = sphi 0, %s186
      %s201 = sphi 0, %s187
      %s205 = sphi 0, %s205
      %s207 = sphi 0, %s205
      %s208 = sphi 0, %s207
      %s222 = sphi 0, %s208
      %s226 = sphi 0, %s226
      %s228 = sphi 0, %s226
      %s229 = sphi 0, %s228
      %s243 = sphi 0, %s229
      %s247 = sphi 0, %s247
      %s249 = sphi 0, %s247
      %s250 = sphi 0, %s249
      %s264 = sphi 0, %s250
      %s268 = sphi 0, %s268
      %s270 = sphi 0, %s268
      %s271 = sphi 0, %s270
      %s285 = sphi 0, %s271
      %s289 = sphi 0, %s289
      %s291 = sphi 0, %s289
      %s292 = sphi 0, %s291
      %s306 = sphi 0, %s292
      %s310 = sphi 0, %s310
      %s312 = sphi 0, %s310
      %s313 = sphi 0, %s312
      %s327 = sphi 0, %s313
      %s331 = sphi 0, %s331
      %s333 = sphi 0, %s331
      %s334 = sphi 0, %s333
      %s348 = sphi 0, %s334
      %s354 = sphi 0, %s356
      %s357 = sphi 0, %s354
      %s358 = sphi 0, %s357
      %s374 = sphi 0, %s358
    $region4: #{tpu_custom_call.1} parent=1 // loop_header_branch
      %27 = sbr.rel (%p25) target = $region8
    $region5: #{tpu_custom_call.1} parent=1 // loop_body
      %s29 = ssub.s32 %s24, 1
      %s30 = ssub.s32 %s24, 2
      %s31 = sadd.s32 %s24, 1
      %s32 = ssub.s32 %s24, %s31
      %p33 = scmp.eq.s32.totalorder %s32, 0
      %s35 = sadd.s32 %s34, 1
      %s36 = scalar_select %p33, %s34, %s35
      %p39 = pneg %p33
      %p40 = scmp.eq.s32.totalorder %s24, 1
      %p41 = por %p39, %p40
      %p42 = scmp.ne.s32.totalorder %s34, %s37
      %p43 = scmp.eq.s32.totalorder %s24, 0
      %p44 = por %p42, %p43
      %p45 = scmp.ne.s32.totalorder %s34, %s37
      %p46 = scmp.eq.s32.totalorder %s29, 1
      %p47 = por %p45, %p46
      %p48 = scmp.ne.s32.totalorder %s37, %s38
      %p49 = scmp.eq.s32.totalorder %s29, 0
      %p50 = por %p48, %p49
      %p51 = scmp.ne.s32.totalorder %s37, %s38
      %p52 = scmp.eq.s32.totalorder %s30, 1
      %p53 = por %p51, %p52
      %p55 = scmp.ne.s32.totalorder %s38, %s54
      %p56 = scmp.eq.s32.totalorder %s30, 0
      %p57 = por %p55, %p56
      %s59 = sadd.s32 %s58, 1
      %p62 = scmp.eq.s32.totalorder %s24, 1
      %p63 = scmp.ne.s32.totalorder %s58, %s60
      %p64 = scmp.eq.s32.totalorder %s24, 0
      %p65 = por %p63, %p64
      %p66 = scmp.ne.s32.totalorder %s58, %s60
      %p67 = scmp.eq.s32.totalorder %s29, 1
      %p68 = por %p66, %p67
      %p69 = scmp.ne.s32.totalorder %s60, %s61
      %p70 = scmp.eq.s32.totalorder %s29, 0
      %p71 = por %p69, %p70
      %p72 = scmp.ne.s32.totalorder %s60, %s61
      %p73 = scmp.eq.s32.totalorder %s30, 1
      %p74 = por %p72, %p73
      %p76 = scmp.ne.s32.totalorder %s61, %s75
      %p77 = scmp.eq.s32.totalorder %s30, 0
      %p78 = por %p76, %p77
      %s80 = sadd.s32 %s79, 1
      %p83 = scmp.eq.s32.totalorder %s24, 1
      %p84 = scmp.ne.s32.totalorder %s79, %s81
      %p85 = scmp.eq.s32.totalorder %s24, 0
      %p86 = por %p84, %p85
      %p87 = scmp.ne.s32.totalorder %s79, %s81
      %p88 = scmp.eq.s32.totalorder %s29, 1
      %p89 = por %p87, %p88
      %p90 = scmp.ne.s32.totalorder %s81, %s82
      %p91 = scmp.eq.s32.totalorder %s29, 0
      %p92 = por %p90, %p91
      %p93 = scmp.ne.s32.totalorder %s81, %s82
      %p94 = scmp.eq.s32.totalorder %s30, 1
      %p95 = por %p93, %p94
      %p97 = scmp.ne.s32.totalorder %s82, %s96
      %p98 = scmp.eq.s32.totalorder %s30, 0
      %p99 = por %p97, %p98
      %s101 = sadd.s32 %s100, 1
      %p104 = scmp.eq.s32.totalorder %s24, 1
      %p105 = scmp.ne.s32.totalorder %s100, %s102
      %p106 = scmp.eq.s32.totalorder %s24, 0
      %p107 = por %p105, %p106
      %p108 = scmp.ne.s32.totalorder %s100, %s102
      %p109 = scmp.eq.s32.totalorder %s29, 1
      %p110 = por %p108, %p109
      %p111 = scmp.ne.s32.totalorder %s102, %s103
      %p112 = scmp.eq.s32.totalorder %s29, 0
      %p113 = por %p111, %p112
      %p114 = scmp.ne.s32.totalorder %s102, %s103
      %p115 = scmp.eq.s32.totalorder %s30, 1
      %p116 = por %p114, %p115
      %p118 = scmp.ne.s32.totalorder %s103, %s117
      %p119 = scmp.eq.s32.totalorder %s30, 0
      %p120 = por %p118, %p119
      %s122 = sadd.s32 %s121, 1
      %p125 = scmp.eq.s32.totalorder %s24, 1
      %p126 = scmp.ne.s32.totalorder %s121, %s123
      %p127 = scmp.eq.s32.totalorder %s24, 0
      %p128 = por %p126, %p127
      %p129 = scmp.ne.s32.totalorder %s121, %s123
      %p130 = scmp.eq.s32.totalorder %s29, 1
      %p131 = por %p129, %p130
      %p132 = scmp.ne.s32.totalorder %s123, %s124
      %p133 = scmp.eq.s32.totalorder %s29, 0
      %p134 = por %p132, %p133
      %p135 = scmp.ne.s32.totalorder %s123, %s124
      %p136 = scmp.eq.s32.totalorder %s30, 1
      %p137 = por %p135, %p136
      %p139 = scmp.ne.s32.totalorder %s124, %s138
      %p140 = scmp.eq.s32.totalorder %s30, 0
      %p141 = por %p139, %p140
      %s143 = sadd.s32 %s142, 1
      %p146 = scmp.eq.s32.totalorder %s24, 1
      %p147 = scmp.ne.s32.totalorder %s142, %s144
      %p148 = scmp.eq.s32.totalorder %s24, 0
      %p149 = por %p147, %p148
      %p150 = scmp.ne.s32.totalorder %s142, %s144
      %p151 = scmp.eq.s32.totalorder %s29, 1
      %p152 = por %p150, %p151
      %p153 = scmp.ne.s32.totalorder %s144, %s145
      %p154 = scmp.eq.s32.totalorder %s29, 0
      %p155 = por %p153, %p154
      %p156 = scmp.ne.s32.totalorder %s144, %s145
      %p157 = scmp.eq.s32.totalorder %s30, 1
      %p158 = por %p156, %p157
      %p160 = scmp.ne.s32.totalorder %s145, %s159
      %p161 = scmp.eq.s32.totalorder %s30, 0
      %p162 = por %p160, %p161
      %s164 = sadd.s32 %s163, 1
      %p167 = scmp.eq.s32.totalorder %s24, 1
      %p168 = scmp.ne.s32.totalorder %s163, %s165
      %p169 = scmp.eq.s32.totalorder %s24, 0
      %p170 = por %p168, %p169
      %p171 = scmp.ne.s32.totalorder %s163, %s165
      %p172 = scmp.eq.s32.totalorder %s29, 1
      %p173 = por %p171, %p172
      %p174 = scmp.ne.s32.totalorder %s165, %s166
      %p175 = scmp.eq.s32.totalorder %s29, 0
      %p176 = por %p174, %p175
      %p177 = scmp.ne.s32.totalorder %s165, %s166
      %p178 = scmp.eq.s32.totalorder %s30, 1
      %p179 = por %p177, %p178
      %p181 = scmp.ne.s32.totalorder %s166, %s180
      %p182 = scmp.eq.s32.totalorder %s30, 0
      %p183 = por %p181, %p182
      %s185 = sadd.s32 %s184, 1
      %p188 = scmp.eq.s32.totalorder %s24, 1
      %p189 = scmp.ne.s32.totalorder %s184, %s186
      %p190 = scmp.eq.s32.totalorder %s24, 0
      %p191 = por %p189, %p190
      %p192 = scmp.ne.s32.totalorder %s184, %s186
      %p193 = scmp.eq.s32.totalorder %s29, 1
      %p194 = por %p192, %p193
      %p195 = scmp.ne.s32.totalorder %s186, %s187
      %p196 = scmp.eq.s32.totalorder %s29, 0
      %p197 = por %p195, %p196
      %p198 = scmp.ne.s32.totalorder %s186, %s187
      %p199 = scmp.eq.s32.totalorder %s30, 1
      %p200 = por %p198, %p199
      %p202 = scmp.ne.s32.totalorder %s187, %s201
      %p203 = scmp.eq.s32.totalorder %s30, 0
      %p204 = por %p202, %p203
      %s206 = sadd.s32 %s205, 1
      %p209 = scmp.eq.s32.totalorder %s24, 1
      %p210 = scmp.ne.s32.totalorder %s205, %s207
      %p211 = scmp.eq.s32.totalorder %s24, 0
      %p212 = por %p210, %p211
      %p213 = scmp.ne.s32.totalorder %s205, %s207
      %p214 = scmp.eq.s32.totalorder %s29, 1
      %p215 = por %p213, %p214
      %p216 = scmp.ne.s32.totalorder %s207, %s208
      %p217 = scmp.eq.s32.totalorder %s29, 0
      %p218 = por %p216, %p217
      %p219 = scmp.ne.s32.totalorder %s207, %s208
      %p220 = scmp.eq.s32.totalorder %s30, 1
      %p221 = por %p219, %p220
      %p223 = scmp.ne.s32.totalorder %s208, %s222
      %p224 = scmp.eq.s32.totalorder %s30, 0
      %p225 = por %p223, %p224
      %s227 = sadd.s32 %s226, 1
      %p230 = scmp.eq.s32.totalorder %s24, 1
      %p231 = scmp.ne.s32.totalorder %s226, %s228
      %p232 = scmp.eq.s32.totalorder %s24, 0
      %p233 = por %p231, %p232
      %p234 = scmp.ne.s32.totalorder %s226, %s228
      %p235 = scmp.eq.s32.totalorder %s29, 1
      %p236 = por %p234, %p235
      %p237 = scmp.ne.s32.totalorder %s228, %s229
      %p238 = scmp.eq.s32.totalorder %s29, 0
      %p239 = por %p237, %p238
      %p240 = scmp.ne.s32.totalorder %s228, %s229
      %p241 = scmp.eq.s32.totalorder %s30, 1
      %p242 = por %p240, %p241
      %p244 = scmp.ne.s32.totalorder %s229, %s243
      %p245 = scmp.eq.s32.totalorder %s30, 0
      %p246 = por %p244, %p245
      %s248 = sadd.s32 %s247, 1
      %p251 = scmp.eq.s32.totalorder %s24, 1
      %p252 = scmp.ne.s32.totalorder %s247, %s249
      %p253 = scmp.eq.s32.totalorder %s24, 0
      %p254 = por %p252, %p253
      %p255 = scmp.ne.s32.totalorder %s247, %s249
      %p256 = scmp.eq.s32.totalorder %s29, 1
      %p257 = por %p255, %p256
      %p258 = scmp.ne.s32.totalorder %s249, %s250
      %p259 = scmp.eq.s32.totalorder %s29, 0
      %p260 = por %p258, %p259
      %p261 = scmp.ne.s32.totalorder %s249, %s250
      %p262 = scmp.eq.s32.totalorder %s30, 1
      %p263 = por %p261, %p262
      %p265 = scmp.ne.s32.totalorder %s250, %s264
      %p266 = scmp.eq.s32.totalorder %s30, 0
      %p267 = por %p265, %p266
      %s269 = sadd.s32 %s268, 1
      %p272 = scmp.eq.s32.totalorder %s24, 1
      %p273 = scmp.ne.s32.totalorder %s268, %s270
      %p274 = scmp.eq.s32.totalorder %s24, 0
      %p275 = por %p273, %p274
      %p276 = scmp.ne.s32.totalorder %s268, %s270
      %p277 = scmp.eq.s32.totalorder %s29, 1
      %p278 = por %p276, %p277
      %p279 = scmp.ne.s32.totalorder %s270, %s271
      %p280 = scmp.eq.s32.totalorder %s29, 0
      %p281 = por %p279, %p280
      %p282 = scmp.ne.s32.totalorder %s270, %s271
      %p283 = scmp.eq.s32.totalorder %s30, 1
      %p284 = por %p282, %p283
      %p286 = scmp.ne.s32.totalorder %s271, %s285
      %p287 = scmp.eq.s32.totalorder %s30, 0
      %p288 = por %p286, %p287
      %s290 = sadd.s32 %s289, 1
      %p293 = scmp.eq.s32.totalorder %s24, 1
      %p294 = scmp.ne.s32.totalorder %s289, %s291
      %p295 = scmp.eq.s32.totalorder %s24, 0
      %p296 = por %p294, %p295
      %p297 = scmp.ne.s32.totalorder %s289, %s291
      %p298 = scmp.eq.s32.totalorder %s29, 1
      %p299 = por %p297, %p298
      %p300 = scmp.ne.s32.totalorder %s291, %s292
      %p301 = scmp.eq.s32.totalorder %s29, 0
      %p302 = por %p300, %p301
      %p303 = scmp.ne.s32.totalorder %s291, %s292
      %p304 = scmp.eq.s32.totalorder %s30, 1
      %p305 = por %p303, %p304
      %p307 = scmp.ne.s32.totalorder %s292, %s306
      %p308 = scmp.eq.s32.totalorder %s30, 0
      %p309 = por %p307, %p308
      %s311 = sadd.s32 %s310, 1
      %p314 = scmp.eq.s32.totalorder %s24, 1
      %p315 = scmp.ne.s32.totalorder %s310, %s312
      %p316 = scmp.eq.s32.totalorder %s24, 0
      %p317 = por %p315, %p316
      %p318 = scmp.ne.s32.totalorder %s310, %s312
      %p319 = scmp.eq.s32.totalorder %s29, 1
      %p320 = por %p318, %p319
      %p321 = scmp.ne.s32.totalorder %s312, %s313
      %p322 = scmp.eq.s32.totalorder %s29, 0
      %p323 = por %p321, %p322
      %p324 = scmp.ne.s32.totalorder %s312, %s313
      %p325 = scmp.eq.s32.totalorder %s30, 1
      %p326 = por %p324, %p325
      %p328 = scmp.ne.s32.totalorder %s313, %s327
      %p329 = scmp.eq.s32.totalorder %s30, 0
      %p330 = por %p328, %p329
      %s332 = sadd.s32 %s331, 1
      %p335 = scmp.eq.s32.totalorder %s24, 1
      %p336 = scmp.ne.s32.totalorder %s331, %s333
      %p337 = scmp.eq.s32.totalorder %s24, 0
      %p338 = por %p336, %p337
      %p339 = scmp.ne.s32.totalorder %s331, %s333
      %p340 = scmp.eq.s32.totalorder %s29, 1
      %p341 = por %p339, %p340
      %p342 = scmp.ne.s32.totalorder %s333, %s334
      %p343 = scmp.eq.s32.totalorder %s29, 0
      %p344 = por %p342, %p343
      %p345 = scmp.ne.s32.totalorder %s333, %s334
      %p346 = scmp.eq.s32.totalorder %s30, 1
      %p347 = por %p345, %p346
      %p349 = scmp.ne.s32.totalorder %s334, %s348
      %p350 = scmp.eq.s32.totalorder %s30, 0
      %p351 = por %p349, %p350
      %s352 = ssub.s32 %s24, %s31
      %p353 = scmp.eq.s32.totalorder %s352, 0
      %s355 = sadd.s32 %s354, 1
      %s356 = scalar_select %p353, %s354, %s355
      %p359 = pneg %p353
      %p360 = scmp.eq.s32.totalorder %s24, 1
      %p361 = por %p359, %p360
      %p362 = scmp.ne.s32.totalorder %s354, %s357
      %p363 = scmp.eq.s32.totalorder %s24, 0
      %p364 = por %p362, %p363
      %p365 = scmp.ne.s32.totalorder %s354, %s357
      %p366 = scmp.eq.s32.totalorder %s29, 1
      %p367 = por %p365, %p366
      %p368 = scmp.ne.s32.totalorder %s357, %s358
      %p369 = scmp.eq.s32.totalorder %s29, 0
      %p370 = por %p368, %p369
      %p371 = scmp.ne.s32.totalorder %s357, %s358
      %p372 = scmp.eq.s32.totalorder %s30, 1
      %p373 = por %p371, %p372
      %p375 = scmp.ne.s32.totalorder %s358, %s374
      %p376 = scmp.eq.s32.totalorder %s30, 0
      %p377 = por %p375, %p376
      %p378 = scmp.le.s32.totalorder 1, %s24
      %p379 = scmp.lt.s32.totalorder %s24, 3
      %p380 = pnand %p378, %p379
      %p381 = pneg %p380
      // Predicated region
      $region9: #{tpu_custom_call.1} parent=5 // pred_check
        _
      $region10: #{tpu_custom_call.1} parent=5 // pred_check_branch
        %383 = sbr.rel (%p380) target = $region12
      $region11: #{tpu_custom_call.1} parent=5 // pred_region
        %s384 = ssub.s32 %s24, 1
        // Predicated region
        $region13: #{tpu_custom_call.1} parent=11 // pred_check
          %p385 = pneg %p71
        $region14: #{tpu_custom_call.1} parent=11 // pred_check_branch
          %387 = sbr.rel (%p385) target = $region16
        $region15: #{tpu_custom_call.1} parent=11 // pred_region
          _
        $region16: #{tpu_custom_call.1} parent=11 // pred_fallthru
          _
        // Predicated region
        $region17: #{tpu_custom_call.1} parent=11 // pred_check
          %p388 = pneg %p92
        $region18: #{tpu_custom_call.1} parent=11 // pred_check_branch
          %390 = sbr.rel (%p388) target = $region20
        $region19: #{tpu_custom_call.1} parent=11 // pred_region
          _
        $region20: #{tpu_custom_call.1} parent=11 // pred_fallthru
          _
        // Predicated region
        $region21: #{tpu_custom_call.1} parent=11 // pred_check
          %p391 = pneg %p113
        $region22: #{tpu_custom_call.1} parent=11 // pred_check_branch
          %393 = sbr.rel (%p391) target = $region24
        $region23: #{tpu_custom_call.1} parent=11 // pred_region
          _
        $region24: #{tpu_custom_call.1} parent=11 // pred_fallthru
          _
        // Predicated region
        $region25: #{tpu_custom_call.1} parent=11 // pred_check
          %p394 = pneg %p134
        $region26: #{tpu_custom_call.1} parent=11 // pred_check_branch
          %396 = sbr.rel (%p394) target = $region28
        $region27: #{tpu_custom_call.1} parent=11 // pred_region
          _
        $region28: #{tpu_custom_call.1} parent=11 // pred_fallthru
          _
        // Predicated region
        $region29: #{tpu_custom_call.1} parent=11 // pred_check
          %p397 = pneg %p155
        $region30: #{tpu_custom_call.1} parent=11 // pred_check_branch
          %399 = sbr.rel (%p397) target = $region32
        $region31: #{tpu_custom_call.1} parent=11 // pred_region
          _
        $region32: #{tpu_custom_call.1} parent=11 // pred_fallthru
          _
        // Predicated region
        $region33: #{tpu_custom_call.1} parent=11 // pred_check
          %p400 = pneg %p176
        $region34: #{tpu_custom_call.1} parent=11 // pred_check_branch
          %402 = sbr.rel (%p400) target = $region36
        $region35: #{tpu_custom_call.1} parent=11 // pred_region
          _
        $region36: #{tpu_custom_call.1} parent=11 // pred_fallthru
          _
        // Predicated region
        $region37: #{tpu_custom_call.1} parent=11 // pred_check
          %p403 = pneg %p197
        $region38: #{tpu_custom_call.1} parent=11 // pred_check_branch
          %405 = sbr.rel (%p403) target = $region40
        $region39: #{tpu_custom_call.1} parent=11 // pred_region
          _
        $region40: #{tpu_custom_call.1} parent=11 // pred_fallthru
          _
        // Predicated region
        $region41: #{tpu_custom_call.1} parent=11 // pred_check
          %p406 = pneg %p218
        $region42: #{tpu_custom_call.1} parent=11 // pred_check_branch
          %408 = sbr.rel (%p406) target = $region44
        $region43: #{tpu_custom_call.1} parent=11 // pred_region
          _
        $region44: #{tpu_custom_call.1} parent=11 // pred_fallthru
          _
        // Predicated region
        $region45: #{tpu_custom_call.1} parent=11 // pred_check
          %p409 = pneg %p239
        $region46: #{tpu_custom_call.1} parent=11 // pred_check_branch
          %411 = sbr.rel (%p409) target = $region48
        $region47: #{tpu_custom_call.1} parent=11 // pred_region
          _
        $region48: #{tpu_custom_call.1} parent=11 // pred_fallthru
          _
        // Predicated region
        $region49: #{tpu_custom_call.1} parent=11 // pred_check
          %p412 = pneg %p260
        $region50: #{tpu_custom_call.1} parent=11 // pred_check_branch
          %414 = sbr.rel (%p412) target = $region52
        $region51: #{tpu_custom_call.1} parent=11 // pred_region
          _
        $region52: #{tpu_custom_call.1} parent=11 // pred_fallthru
          _
        // Predicated region
        $region53: #{tpu_custom_call.1} parent=11 // pred_check
          %p415 = pneg %p281
        $region54: #{tpu_custom_call.1} parent=11 // pred_check_branch
          %417 = sbr.rel (%p415) target = $region56
        $region55: #{tpu_custom_call.1} parent=11 // pred_region
          _
        $region56: #{tpu_custom_call.1} parent=11 // pred_fallthru
          _
        // Predicated region
        $region57: #{tpu_custom_call.1} parent=11 // pred_check
          %p418 = pneg %p302
        $region58: #{tpu_custom_call.1} parent=11 // pred_check_branch
          %420 = sbr.rel (%p418) target = $region60
        $region59: #{tpu_custom_call.1} parent=11 // pred_region
          _
        $region60: #{tpu_custom_call.1} parent=11 // pred_fallthru
          _
        // Predicated region
        $region61: #{tpu_custom_call.1} parent=11 // pred_check
          %p421 = pneg %p323
        $region62: #{tpu_custom_call.1} parent=11 // pred_check_branch
          %423 = sbr.rel (%p421) target = $region64
        $region63: #{tpu_custom_call.1} parent=11 // pred_region
          _
        $region64: #{tpu_custom_call.1} parent=11 // pred_fallthru
          _
        // Predicated region
        $region65: #{tpu_custom_call.1} parent=11 // pred_check
          %p424 = pneg %p344
        $region66: #{tpu_custom_call.1} parent=11 // pred_check_branch
          %426 = sbr.rel (%p424) target = $region68
        $region67: #{tpu_custom_call.1} parent=11 // pred_region
          _
        $region68: #{tpu_custom_call.1} parent=11 // pred_fallthru
          _
      $region12: #{tpu_custom_call.1} parent=5 // pred_fallthru
        _
      %p427 = scmp.lt.s32.totalorder %s24, 2
      // Predicated region
      $region69: #{tpu_custom_call.1} parent=5 // pred_check
        %p428 = pneg %p427
      $region70: #{tpu_custom_call.1} parent=5 // pred_check_branch
        %430 = sbr.rel (%p428) target = $region72
      $region71: #{tpu_custom_call.1} parent=5 // pred_region
        // Predicated region
        $region73: #{tpu_custom_call.1} parent=71 // pred_check
          %p431 = pneg %p44
        $region74: #{tpu_custom_call.1} parent=71 // pred_check_branch
          %433 = sbr.rel (%p431) target = $region76
        $region75: #{tpu_custom_call.1} parent=71 // pred_region
          %s434 = sand.u32 %s34, 1
          %s435 = sand.u32 %s34, 1
          %s436 = smul.addr %s435, 16
          %s437 = scalar_lea.vmem [#allocation2], %s436
          %s438 = scalar_lea.vmem %s0, %s24
          // Predicated region
          $region77: #{tpu_custom_call.1} parent=75 // pred_check
            _
          $region78: #{tpu_custom_call.1} parent=75 // pred_check_branch
            %440 = sbr.rel (0) target = $region80
          $region79: #{tpu_custom_call.1} parent=75 // pred_region
            // Predicated region
            $region81: #{tpu_custom_call.1} parent=79 // pred_check
              _
            $region82: #{tpu_custom_call.1} parent=79 // pred_check_branch
              %442 = sbr.rel target = $region84
            $region83: #{tpu_custom_call.1} parent=79 // pred_region
              // Predicated region
              $region96: #{tpu_custom_call.1} parent=83 // pred_check
                _
              $region97: #{tpu_custom_call.1} parent=83 // pred_check_branch
                %487 = sbr.rel (0) target = $region99
              $region98: #{tpu_custom_call.1} parent=83 // pred_region
                loop: start=0, step=1, limit=1
                $region100: #{tpu_custom_call.1} parent=98 // loop_pre_header
                  _
                $region101: #{tpu_custom_call.1} parent=98 // loop_header
                  %s489 = sphi 0, %s493
                  %p490 = scmp.ge.s32.totalorder %s489, 1
                  %s494 = sphi %s438, %s438
                  %s495 = sphi %s437, %s437
                $region102: #{tpu_custom_call.1} parent=98 // loop_header_branch
                  %492 = sbr.rel (%p490) target = $region106
                $region103: #{tpu_custom_call.1} parent=98 // loop_body
                  _
                $region104: #{tpu_custom_call.1} parent=98 // loop_footer
                  %s493 = sadd.s32 1, %s489
                $region105: #{tpu_custom_call.1} parent=98 // loop_footer_branch
                  %488 = sbr.rel target = $region101
                $region106: #{tpu_custom_call.1} parent=98 // loop_exit
                  _
                loop: start=0, step=1, limit=1
                $region107: #{tpu_custom_call.1} parent=98 // loop_pre_header
                  _
                $region108: #{tpu_custom_call.1} parent=98 // loop_header
                  %s498 = sphi 0, %s502
                  %p499 = scmp.ge.s32.totalorder %s498, 1
                  %s503 = sphi %s438, %s438
                  %s504 = sphi %s437, %s437
                $region109: #{tpu_custom_call.1} parent=98 // loop_header_branch
                  %501 = sbr.rel (%p499) target = $region113
                $region110: #{tpu_custom_call.1} parent=98 // loop_body
                  %v505 = vld [vmem:[%s503] sm:$0x1]
                  %506 = vst [vmem:[%s504] sm:$0x1] %v505
                  %v507 = vld [vmem:[%s503 + $0x2] sm:$0x1]
                  %508 = vst [vmem:[%s504 + $0x1] sm:$0x1] %v507
                  %v509 = vld [vmem:[%s503 + $0x4] sm:$0x1]
                  %510 = vst [vmem:[%s504 + $0x2] sm:$0x1] %v509
                  %v511 = vld [vmem:[%s503 + $0x6] sm:$0x1]
                  %512 = vst [vmem:[%s504 + $0x3] sm:$0x1] %v511
                  %v513 = vld [vmem:[%s503 + $0x8] sm:$0x1]
                  %514 = vst [vmem:[%s504 + $0x4] sm:$0x1] %v513
                  %v515 = vld [vmem:[%s503 + $0xa] sm:$0x1]
                  %516 = vst [vmem:[%s504 + $0x5] sm:$0x1] %v515
                  %v517 = vld [vmem:[%s503 + $0xc] sm:$0x1]
                  %518 = vst [vmem:[%s504 + $0x6] sm:$0x1] %v517
                  %v519 = vld [vmem:[%s503 + $0xe] sm:$0x1]
                  %520 = vst [vmem:[%s504 + $0x7] sm:$0x1] %v519
                  %v521 = vld [vmem:[%s503 + $0x10] sm:$0x1]
                  %522 = vst [vmem:[%s504 + $0x8] sm:$0x1] %v521
                  %v523 = vld [vmem:[%s503 + $0x12] sm:$0x1]
                  %524 = vst [vmem:[%s504 + $0x9] sm:$0x1] %v523
                  %v525 = vld [vmem:[%s503 + $0x14] sm:$0x1]
                  %526 = vst [vmem:[%s504 + $0xa] sm:$0x1] %v525
                  %v527 = vld [vmem:[%s503 + $0x16] sm:$0x1]
                  %528 = vst [vmem:[%s504 + $0xb] sm:$0x1] %v527
                  %v529 = vld [vmem:[%s503 + $0x18] sm:$0x1]
                  %530 = vst [vmem:[%s504 + $0xc] sm:$0x1] %v529
                  %v531 = vld [vmem:[%s503 + $0x1a] sm:$0x1]
                  %532 = vst [vmem:[%s504 + $0xd] sm:$0x1] %v531
                  %v533 = vld [vmem:[%s503 + $0x1c] sm:$0x1]
                  %534 = vst [vmem:[%s504 + $0xe] sm:$0x1] %v533
                  %v535 = vld [vmem:[%s503 + $0x1e] sm:$0x1]
                  %536 = vst [vmem:[%s504 + $0xf] sm:$0x1] %v535
                $region111: #{tpu_custom_call.1} parent=98 // loop_footer
                  %s502 = sadd.s32 1, %s498
                $region112: #{tpu_custom_call.1} parent=98 // loop_footer_branch
                  %497 = sbr.rel target = $region108
                $region113: #{tpu_custom_call.1} parent=98 // loop_exit
                  _
              $region99: #{tpu_custom_call.1} parent=83 // pred_fallthru
                _
            $region84: #{tpu_custom_call.1} parent=79 // pred_fallthru
              _
            // Predicated region
            $region85: #{tpu_custom_call.1} parent=79 // pred_check
              _
            $region86: #{tpu_custom_call.1} parent=79 // pred_check_branch
              %444 = sbr.rel (0) target = $region88
            $region87: #{tpu_custom_call.1} parent=79 // pred_region
              loop: start=0, step=1, limit=1
              $region89: #{tpu_custom_call.1} parent=87 // loop_pre_header
                _
              $region90: #{tpu_custom_call.1} parent=87 // loop_header
                %s447 = sphi 0, %s451
                %p448 = scmp.ge.s32.totalorder %s447, 1
                %s452 = sphi %s438, %s438
                %s453 = sphi %s437, %s437
              $region91: #{tpu_custom_call.1} parent=87 // loop_header_branch
                %450 = sbr.rel (%p448) target = $region95
              $region92: #{tpu_custom_call.1} parent=87 // loop_body
                %v454 = vld [vmem:[%s452] sm:$0x1]
                %455 = vst [vmem:[%s453] sm:$0x1] %v454
                %v456 = vld [vmem:[%s452 + $0x2] sm:$0x1]
                %457 = vst [vmem:[%s453 + $0x1] sm:$0x1] %v456
                %v458 = vld [vmem:[%s452 + $0x4] sm:$0x1]
                %459 = vst [vmem:[%s453 + $0x2] sm:$0x1] %v458
                %v460 = vld [vmem:[%s452 + $0x6] sm:$0x1]
                %461 = vst [vmem:[%s453 + $0x3] sm:$0x1] %v460
                %v462 = vld [vmem:[%s452 + $0x8] sm:$0x1]
                %463 = vst [vmem:[%s453 + $0x4] sm:$0x1] %v462
                %v464 = vld [vmem:[%s452 + $0xa] sm:$0x1]
                %465 = vst [vmem:[%s453 + $0x5] sm:$0x1] %v464
                %v466 = vld [vmem:[%s452 + $0xc] sm:$0x1]
                %467 = vst [vmem:[%s453 + $0x6] sm:$0x1] %v466
                %v468 = vld [vmem:[%s452 + $0xe] sm:$0x1]
                %469 = vst [vmem:[%s453 + $0x7] sm:$0x1] %v468
                %v470 = vld [vmem:[%s452 + $0x10] sm:$0x1]
                %471 = vst [vmem:[%s453 + $0x8] sm:$0x1] %v470
                %v472 = vld [vmem:[%s452 + $0x12] sm:$0x1]
                %473 = vst [vmem:[%s453 + $0x9] sm:$0x1] %v472
                %v474 = vld [vmem:[%s452 + $0x14] sm:$0x1]
                %475 = vst [vmem:[%s453 + $0xa] sm:$0x1] %v474
                %v476 = vld [vmem:[%s452 + $0x16] sm:$0x1]
                %477 = vst [vmem:[%s453 + $0xb] sm:$0x1] %v476
                %v478 = vld [vmem:[%s452 + $0x18] sm:$0x1]
                %479 = vst [vmem:[%s453 + $0xc] sm:$0x1] %v478
                %v480 = vld [vmem:[%s452 + $0x1a] sm:$0x1]
                %481 = vst [vmem:[%s453 + $0xd] sm:$0x1] %v480
                %v482 = vld [vmem:[%s452 + $0x1c] sm:$0x1]
                %483 = vst [vmem:[%s453 + $0xe] sm:$0x1] %v482
                %v484 = vld [vmem:[%s452 + $0x1e] sm:$0x1]
                %485 = vst [vmem:[%s453 + $0xf] sm:$0x1] %v484
              $region93: #{tpu_custom_call.1} parent=87 // loop_footer
                %s451 = sadd.s32 1, %s447
              $region94: #{tpu_custom_call.1} parent=87 // loop_footer_branch
                %446 = sbr.rel target = $region90
              $region95: #{tpu_custom_call.1} parent=87 // loop_exit
                _
            $region88: #{tpu_custom_call.1} parent=79 // pred_fallthru
              _
          $region80: #{tpu_custom_call.1} parent=75 // pred_fallthru
            _
          %537 = vnop
        $region76: #{tpu_custom_call.1} parent=71 // pred_fallthru
          _
      $region72: #{tpu_custom_call.1} parent=5 // pred_fallthru
        _
      %p538 = scmp.le.s32.totalorder 1, %s24
      %p539 = scmp.lt.s32.totalorder %s24, 3
      %p540 = pnand %p538, %p539
      %p541 = pneg %p540
      // Predicated region
      $region114: #{tpu_custom_call.1} parent=5 // pred_check
        _
      $region115: #{tpu_custom_call.1} parent=5 // pred_check_branch
        %543 = sbr.rel (%p540) target = $region117
      $region116: #{tpu_custom_call.1} parent=5 // pred_region
        %s544 = ssub.s32 %s24, 1
        %s545 = sand.u32 %s37, 1
        %s546 = sand.u32 %s37, 1
        %s547 = smul.addr %s546, 16
        %s548 = scalar_lea.vmem [#allocation2], %s547
        // Predicated region
        $region118: #{tpu_custom_call.1} parent=116 // pred_check
          %p549 = pneg %p50
        $region119: #{tpu_custom_call.1} parent=116 // pred_check_branch
          %551 = sbr.rel (%p549) target = $region121
        $region120: #{tpu_custom_call.1} parent=116 // pred_region
          _
        $region121: #{tpu_custom_call.1} parent=116 // pred_fallthru
          _
        %s552 = sand.u32 %s37, 1
        %s553 = sand.u32 %s37, 1
        %s554 = smul.addr %s553, 16
        %s555 = scalar_lea.vmem [#allocation2], %s554
        %p556 = pneg %p50
        %p557 = pneg %p47
        %p558 = pneg %p71
        %p559 = pneg %p68
        %p560 = pneg %p92
        %p561 = pneg %p89
        %p562 = pneg %p113
        %p563 = pneg %p110
        %p564 = pneg %p134
        %p565 = pneg %p131
        %p566 = pneg %p155
        %p567 = pneg %p152
        %p568 = pneg %p176
        %p569 = pneg %p173
        %p570 = pneg %p197
        %p571 = pneg %p194
        %p572 = pneg %p218
        %p573 = pneg %p215
        %p574 = pneg %p239
        %p575 = pneg %p236
        %p576 = pneg %p260
        %p577 = pneg %p257
        %p578 = pneg %p281
        %p579 = pneg %p278
        %p580 = pneg %p302
        %p581 = pneg %p299
        %p582 = pneg %p323
        %p583 = pneg %p320
        %p584 = pneg %p344
        %p585 = pneg %p341
        %p586 = pneg %p370
        %p587 = pneg %p367
        %s588 = sand.u32 %s357, 1
        %s589 = scalar_lea.sflag [#allocation4], %s588
        %s590 = sand.u32 %s357, 1
        %s591 = smul.addr %s590, 256
        %s592 = scalar_lea.vmem [#allocation3], %s591
        %v594 = vld [vmem:[%s548] sm:$0x1]
        %s595 = scalar_lea.vmem %s548, 1 [#allocation2]
        %v596 = vld [vmem:[%s595] sm:$0x1]
        %s597 = scalar_lea.vmem %s548, 2 [#allocation2]
        %v598 = vld [vmem:[%s597] sm:$0x1]
        %s599 = scalar_lea.vmem %s548, 3 [#allocation2]
        %v600 = vld [vmem:[%s599] sm:$0x1]
        %s601 = scalar_lea.vmem %s548, 4 [#allocation2]
        %v602 = vld [vmem:[%s601] sm:$0x1]
        %s603 = scalar_lea.vmem %s548, 5 [#allocation2]
        %v604 = vld [vmem:[%s603] sm:$0x1]
        %s605 = scalar_lea.vmem %s548, 6 [#allocation2]
        %v606 = vld [vmem:[%s605] sm:$0x1]
        %s607 = scalar_lea.vmem %s548, 7 [#allocation2]
        %v608 = vld [vmem:[%s607] sm:$0x1]
        %s609 = scalar_lea.vmem %s548, 8 [#allocation2]
        %v610 = vld [vmem:[%s609] sm:$0x1]
        %s611 = scalar_lea.vmem %s548, 9 [#allocation2]
        %v612 = vld [vmem:[%s611] sm:$0x1]
        %s613 = scalar_lea.vmem %s548, 10 [#allocation2]
        %v614 = vld [vmem:[%s613] sm:$0x1]
        %s615 = scalar_lea.vmem %s548, 11 [#allocation2]
        %v616 = vld [vmem:[%s615] sm:$0x1]
        %s617 = scalar_lea.vmem %s548, 12 [#allocation2]
        %v618 = vld [vmem:[%s617] sm:$0x1]
        %s619 = scalar_lea.vmem %s548, 13 [#allocation2]
        %v620 = vld [vmem:[%s619] sm:$0x1]
        %s621 = scalar_lea.vmem %s548, 14 [#allocation2]
        %v622 = vld [vmem:[%s621] sm:$0x1]
        %s623 = scalar_lea.vmem %s548, 15 [#allocation2]
        %v624 = vld [vmem:[%s623] sm:$0x1]
        %v625 = vld [vmem:[%s1] sm:$0xff]
        %v626 = vld [vmem:[%s1 + $0x8] sm:$0xff]
        %v627 = vld [vmem:[%s2] sm:$0xff]
        %v628 = vld [vmem:[%s2 + $0x8] sm:$0xff]
        %630 = vset.pattern.permute.xlu0 0
        %631 = vperm.xlu0 %630, %v625
        %v632 = vpop.permute.xlu0 %631
        %635 = vset.pattern.permute.xlu0 0
        %636 = vperm.xlu0 %635, %v626
        %v637 = vpop.permute.xlu0 %636
        %v639 = vlaneseq
        %v640 = vshrl.u32 %v639, 7
        %v641 = vsub.s32 0, %v640
        %v642 = vlaneseq
        %v643 = vshrl.u32 %v642, 7
        %v644 = vsub.s32 0, %v643
        %v645 = vrot.slane %v594, %v644
        %v646 = vlaneseq
        %v647 = vshrl.u32 %v646, 7
        %v648 = vsub.s32 0, %v647
        %v649 = vrot.slane %v596, %v648
        %v650 = vlaneseq
        %v651 = vshrl.u32 %v650, 7
        %v652 = vsub.s32 0, %v651
        %v653 = vrot.slane %v598, %v652
        %v654 = vlaneseq
        %v655 = vshrl.u32 %v654, 7
        %v656 = vsub.s32 0, %v655
        %v657 = vrot.slane %v600, %v656
        %v658 = vlaneseq
        %v659 = vshrl.u32 %v658, 7
        %v660 = vsub.s32 0, %v659
        %v661 = vrot.slane %v602, %v660
        %v662 = vlaneseq
        %v663 = vshrl.u32 %v662, 7
        %v664 = vsub.s32 0, %v663
        %v665 = vrot.slane %v604, %v664
        %v666 = vlaneseq
        %v667 = vshrl.u32 %v666, 7
        %v668 = vsub.s32 0, %v667
        %v669 = vrot.slane %v606, %v668
        %v670 = vlaneseq
        %v671 = vshrl.u32 %v670, 7
        %v672 = vsub.s32 0, %v671
        %v673 = vrot.slane %v608, %v672
        %v674 = vlaneseq
        %v675 = vshrl.u32 %v674, 7
        %v676 = vsub.s32 0, %v675
        %v677 = vrot.slane %v610, %v676
        %v678 = vlaneseq
        %v679 = vshrl.u32 %v678, 7
        %v680 = vsub.s32 0, %v679
        %v681 = vrot.slane %v612, %v680
        %v682 = vlaneseq
        %v683 = vshrl.u32 %v682, 7
        %v684 = vsub.s32 0, %v683
        %v685 = vrot.slane %v614, %v684
        %v686 = vlaneseq
        %v687 = vshrl.u32 %v686, 7
        %v688 = vsub.s32 0, %v687
        %v689 = vrot.slane %v616, %v688
        %v690 = vlaneseq
        %v691 = vshrl.u32 %v690, 7
        %v692 = vsub.s32 0, %v691
        %v693 = vrot.slane %v618, %v692
        %v694 = vlaneseq
        %v695 = vshrl.u32 %v694, 7
        %v696 = vsub.s32 0, %v695
        %v697 = vrot.slane %v620, %v696
        %v698 = vlaneseq
        %v699 = vshrl.u32 %v698, 7
        %v700 = vsub.s32 0, %v699
        %v701 = vrot.slane %v622, %v700
        %v702 = vmul.f32 %v632, 0.0
        %v703 = vmul.f32 %v632, %v645
        %v704 = vmul.f32 %v632, %v649
        %v705 = vmul.f32 %v632, %v653
        %v706 = vmul.f32 %v632, %v657
        %v707 = vmul.f32 %v632, %v661
        %v708 = vmul.f32 %v632, %v665
        %v709 = vmul.f32 %v632, %v669
        %v710 = vmul.f32 %v632, %v673
        %v711 = vmul.f32 %v632, %v677
        %v712 = vmul.f32 %v632, %v681
        %v713 = vmul.f32 %v632, %v685
        %v714 = vmul.f32 %v632, %v689
        %v715 = vmul.f32 %v632, %v693
        %v716 = vmul.f32 %v632, %v697
        %v717 = vmul.f32 %v632, %v701
        %v718 = vmul.f32 %v637, 0.0
        %v719 = vmul.f32 %v637, %v645
        %v720 = vmul.f32 %v637, %v649
        %v721 = vmul.f32 %v637, %v653
        %v722 = vmul.f32 %v637, %v657
        %v723 = vmul.f32 %v637, %v661
        %v724 = vmul.f32 %v637, %v665
        %v725 = vmul.f32 %v637, %v669
        %v726 = vmul.f32 %v637, %v673
        %v727 = vmul.f32 %v637, %v677
        %v728 = vmul.f32 %v637, %v681
        %v729 = vmul.f32 %v637, %v685
        %v730 = vmul.f32 %v637, %v689
        %v731 = vmul.f32 %v637, %v693
        %v732 = vmul.f32 %v637, %v697
        %v733 = vmul.f32 %v637, %v701
        %735 = vset.pattern.permute.xlu0 0
        %736 = vperm.xlu0 %735, %v627
        %v737 = vpop.permute.xlu0 %736
        %740 = vset.pattern.permute.xlu0 0
        %741 = vperm.xlu0 %740, %v628
        %v742 = vpop.permute.xlu0 %741
        %v744 = vadd.f32 %v737, %v702
        %v745 = vadd.f32 %v737, %v703
        %v746 = vadd.f32 %v737, %v704
        %v747 = vadd.f32 %v737, %v705
        %v748 = vadd.f32 %v737, %v706
        %v749 = vadd.f32 %v737, %v707
        %v750 = vadd.f32 %v737, %v708
        %v751 = vadd.f32 %v737, %v709
        %v752 = vadd.f32 %v737, %v710
        %v753 = vadd.f32 %v737, %v711
        %v754 = vadd.f32 %v737, %v712
        %v755 = vadd.f32 %v737, %v713
        %v756 = vadd.f32 %v737, %v714
        %v757 = vadd.f32 %v737, %v715
        %v758 = vadd.f32 %v737, %v716
        %v759 = vadd.f32 %v737, %v717
        %v760 = vadd.f32 %v742, %v718
        %v761 = vadd.f32 %v742, %v719
        %v762 = vadd.f32 %v742, %v720
        %v763 = vadd.f32 %v742, %v721
        %v764 = vadd.f32 %v742, %v722
        %v765 = vadd.f32 %v742, %v723
        %v766 = vadd.f32 %v742, %v724
        %v767 = vadd.f32 %v742, %v725
        %v768 = vadd.f32 %v742, %v726
        %v769 = vadd.f32 %v742, %v727
        %v770 = vadd.f32 %v742, %v728
        %v771 = vadd.f32 %v742, %v729
        %v772 = vadd.f32 %v742, %v730
        %v773 = vadd.f32 %v742, %v731
        %v774 = vadd.f32 %v742, %v732
        %v775 = vadd.f32 %v742, %v733
        %776 = vset.pattern.permute.xlu0 1
        %777 = vperm.xlu0 %776, %v625
        %v778 = vpop.permute.xlu0 %777
        %780 = vset.pattern.permute.xlu0 1
        %781 = vperm.xlu0 %780, %v626
        %v782 = vpop.permute.xlu0 %781
        %v784 = vlaneseq
        %v785 = vshrl.u32 %v784, 7
        %v786 = vsub.s32 0, %v785
        %v787 = vrot.slane %v624, %v786
        %v788 = vmul.f32 %v778, %v645
        %v789 = vmul.f32 %v778, %v649
        %v790 = vmul.f32 %v778, %v653
        %v791 = vmul.f32 %v778, %v657
        %v792 = vmul.f32 %v778, %v661
        %v793 = vmul.f32 %v778, %v665
        %v794 = vmul.f32 %v778, %v669
        %v795 = vmul.f32 %v778, %v673
        %v796 = vmul.f32 %v778, %v677
        %v797 = vmul.f32 %v778, %v681
        %v798 = vmul.f32 %v778, %v685
        %v799 = vmul.f32 %v778, %v689
        %v800 = vmul.f32 %v778, %v693
        %v801 = vmul.f32 %v778, %v697
        %v802 = vmul.f32 %v778, %v701
        %v803 = vmul.f32 %v778, %v787
        %v804 = vmul.f32 %v782, %v645
        %v805 = vmul.f32 %v782, %v649
        %v806 = vmul.f32 %v782, %v653
        %v807 = vmul.f32 %v782, %v657
        %v808 = vmul.f32 %v782, %v661
        %v809 = vmul.f32 %v782, %v665
        %v810 = vmul.f32 %v782, %v669
        %v811 = vmul.f32 %v782, %v673
        %v812 = vmul.f32 %v782, %v677
        %v813 = vmul.f32 %v782, %v681
        %v814 = vmul.f32 %v782, %v685
        %v815 = vmul.f32 %v782, %v689
        %v816 = vmul.f32 %v782, %v693
        %v817 = vmul.f32 %v782, %v697
        %v818 = vmul.f32 %v782, %v701
        %v819 = vmul.f32 %v782, %v787
        %v820 = vadd.f32 %v744, %v788
        %v821 = vadd.f32 %v745, %v789
        %v822 = vadd.f32 %v746, %v790
        %v823 = vadd.f32 %v747, %v791
        %v824 = vadd.f32 %v748, %v792
        %v825 = vadd.f32 %v749, %v793
        %v826 = vadd.f32 %v750, %v794
        %v827 = vadd.f32 %v751, %v795
        %v828 = vadd.f32 %v752, %v796
        %v829 = vadd.f32 %v753, %v797
        %v830 = vadd.f32 %v754, %v798
        %v831 = vadd.f32 %v755, %v799
        %v832 = vadd.f32 %v756, %v800
        %v833 = vadd.f32 %v757, %v801
        %v834 = vadd.f32 %v758, %v802
        %v835 = vadd.f32 %v759, %v803
        %v836 = vadd.f32 %v760, %v804
        %v837 = vadd.f32 %v761, %v805
        %v838 = vadd.f32 %v762, %v806
        %v839 = vadd.f32 %v763, %v807
        %v840 = vadd.f32 %v764, %v808
        %v841 = vadd.f32 %v765, %v809
        %v842 = vadd.f32 %v766, %v810
        %v843 = vadd.f32 %v767, %v811
        %v844 = vadd.f32 %v768, %v812
        %v845 = vadd.f32 %v769, %v813
        %v846 = vadd.f32 %v770, %v814
        %v847 = vadd.f32 %v771, %v815
        %v848 = vadd.f32 %v772, %v816
        %v849 = vadd.f32 %v773, %v817
        %v850 = vadd.f32 %v774, %v818
        %v851 = vadd.f32 %v775, %v819
        %852 = vset.pattern.permute.xlu0 2
        %853 = vperm.xlu0 %852, %v625
        %v854 = vpop.permute.xlu0 %853
        %856 = vset.pattern.permute.xlu0 2
        %857 = vperm.xlu0 %856, %v626
        %v858 = vpop.permute.xlu0 %857
        %v860 = vmul.f32 %v854, %v649
        %v861 = vmul.f32 %v854, %v653
        %v862 = vmul.f32 %v854, %v657
        %v863 = vmul.f32 %v854, %v661
        %v864 = vmul.f32 %v854, %v665
        %v865 = vmul.f32 %v854, %v669
        %v866 = vmul.f32 %v854, %v673
        %v867 = vmul.f32 %v854, %v677
        %v868 = vmul.f32 %v854, %v681
        %v869 = vmul.f32 %v854, %v685
        %v870 = vmul.f32 %v854, %v689
        %v871 = vmul.f32 %v854, %v693
        %v872 = vmul.f32 %v854, %v697
        %v873 = vmul.f32 %v854, %v701
        %v874 = vmul.f32 %v854, %v787
        %v875 = vmul.f32 %v854, 0.0
        %v876 = vmul.f32 %v858, %v649
        %v877 = vmul.f32 %v858, %v653
        %v878 = vmul.f32 %v858, %v657
        %v879 = vmul.f32 %v858, %v661
        %v880 = vmul.f32 %v858, %v665
        %v881 = vmul.f32 %v858, %v669
        %v882 = vmul.f32 %v858, %v673
        %v883 = vmul.f32 %v858, %v677
        %v884 = vmul.f32 %v858, %v681
        %v885 = vmul.f32 %v858, %v685
        %v886 = vmul.f32 %v858, %v689
        %v887 = vmul.f32 %v858, %v693
        %v888 = vmul.f32 %v858, %v697
        %v889 = vmul.f32 %v858, %v701
        %v890 = vmul.f32 %v858, %v787
        %v891 = vmul.f32 %v858, 0.0
        %v892 = vadd.f32 %v820, %v860
        %v893 = vadd.f32 %v821, %v861
        %v894 = vadd.f32 %v822, %v862
        %v895 = vadd.f32 %v823, %v863
        %v896 = vadd.f32 %v824, %v864
        %v897 = vadd.f32 %v825, %v865
        %v898 = vadd.f32 %v826, %v866
        %v899 = vadd.f32 %v827, %v867
        %v900 = vadd.f32 %v828, %v868
        %v901 = vadd.f32 %v829, %v869
        %v902 = vadd.f32 %v830, %v870
        %v903 = vadd.f32 %v831, %v871
        %v904 = vadd.f32 %v832, %v872
        %v905 = vadd.f32 %v833, %v873
        %v906 = vadd.f32 %v834, %v874
        %v907 = vadd.f32 %v835, %v875
        %v908 = vadd.f32 %v836, %v876
        %v909 = vadd.f32 %v837, %v877
        %v910 = vadd.f32 %v838, %v878
        %v911 = vadd.f32 %v839, %v879
        %v912 = vadd.f32 %v840, %v880
        %v913 = vadd.f32 %v841, %v881
        %v914 = vadd.f32 %v842, %v882
        %v915 = vadd.f32 %v843, %v883
        %v916 = vadd.f32 %v844, %v884
        %v917 = vadd.f32 %v845, %v885
        %v918 = vadd.f32 %v846, %v886
        %v919 = vadd.f32 %v847, %v887
        %v920 = vadd.f32 %v848, %v888
        %v921 = vadd.f32 %v849, %v889
        %v922 = vadd.f32 %v850, %v890
        %v923 = vadd.f32 %v851, %v891
        %v924 = vmul.f32 %v892, 0.5
        %v925 = vmul.f32 %v893, 0.5
        %v926 = vmul.f32 %v894, 0.5
        %v927 = vmul.f32 %v895, 0.5
        %v928 = vmul.f32 %v896, 0.5
        %v929 = vmul.f32 %v897, 0.5
        %v930 = vmul.f32 %v898, 0.5
        %v931 = vmul.f32 %v899, 0.5
        %v932 = vmul.f32 %v900, 0.5
        %v933 = vmul.f32 %v901, 0.5
        %v934 = vmul.f32 %v902, 0.5
        %v935 = vmul.f32 %v903, 0.5
        %v936 = vmul.f32 %v904, 0.5
        %v937 = vmul.f32 %v905, 0.5
        %v938 = vmul.f32 %v906, 0.5
        %v939 = vmul.f32 %v907, 0.5
        %v940 = vmul.f32 %v908, 0.5
        %v941 = vmul.f32 %v909, 0.5
        %v942 = vmul.f32 %v910, 0.5
        %v943 = vmul.f32 %v911, 0.5
        %v944 = vmul.f32 %v912, 0.5
        %v945 = vmul.f32 %v913, 0.5
        %v946 = vmul.f32 %v914, 0.5
        %v947 = vmul.f32 %v915, 0.5
        %v948 = vmul.f32 %v916, 0.5
        %v949 = vmul.f32 %v917, 0.5
        %v950 = vmul.f32 %v918, 0.5
        %v951 = vmul.f32 %v919, 0.5
        %v952 = vmul.f32 %v920, 0.5
        %v953 = vmul.f32 %v921, 0.5
        %v954 = vmul.f32 %v922, 0.5
        %v955 = vmul.f32 %v923, 0.5
        %v956 = vtanh.pop %v924
        %v957 = vtanh.pop %v925
        %v958 = vtanh.pop %v926
        %v959 = vtanh.pop %v927
        %v960 = vtanh.pop %v928
        %v961 = vtanh.pop %v929
        %v962 = vtanh.pop %v930
        %v963 = vtanh.pop %v931
        %v964 = vtanh.pop %v932
        %v965 = vtanh.pop %v933
        %v966 = vtanh.pop %v934
        %v967 = vtanh.pop %v935
        %v968 = vtanh.pop %v936
        %v969 = vtanh.pop %v937
        %v970 = vtanh.pop %v938
        %v971 = vtanh.pop %v939
        %v972 = vtanh.pop %v940
        %v973 = vtanh.pop %v941
        %v974 = vtanh.pop %v942
        %v975 = vtanh.pop %v943
        %v976 = vtanh.pop %v944
        %v977 = vtanh.pop %v945
        %v978 = vtanh.pop %v946
        %v979 = vtanh.pop %v947
        %v980 = vtanh.pop %v948
        %v981 = vtanh.pop %v949
        %v982 = vtanh.pop %v950
        %v983 = vtanh.pop %v951
        %v984 = vtanh.pop %v952
        %v985 = vtanh.pop %v953
        %v986 = vtanh.pop %v954
        %v987 = vtanh.pop %v955
        %v988 = vadd.f32 %v956, 1.0
        %v989 = vadd.f32 %v957, 1.0
        %v990 = vadd.f32 %v958, 1.0
        %v991 = vadd.f32 %v959, 1.0
        %v992 = vadd.f32 %v960, 1.0
        %v993 = vadd.f32 %v961, 1.0
        %v994 = vadd.f32 %v962, 1.0
        %v995 = vadd.f32 %v963, 1.0
        %v996 = vadd.f32 %v964, 1.0
        %v997 = vadd.f32 %v965, 1.0
        %v998 = vadd.f32 %v966, 1.0
        %v999 = vadd.f32 %v967, 1.0
        %v1000 = vadd.f32 %v968, 1.0
        %v1001 = vadd.f32 %v969, 1.0
        %v1002 = vadd.f32 %v970, 1.0
        %v1003 = vadd.f32 %v971, 1.0
        %v1004 = vadd.f32 %v972, 1.0
        %v1005 = vadd.f32 %v973, 1.0
        %v1006 = vadd.f32 %v974, 1.0
        %v1007 = vadd.f32 %v975, 1.0
        %v1008 = vadd.f32 %v976, 1.0
        %v1009 = vadd.f32 %v977, 1.0
        %v1010 = vadd.f32 %v978, 1.0
        %v1011 = vadd.f32 %v979, 1.0
        %v1012 = vadd.f32 %v980, 1.0
        %v1013 = vadd.f32 %v981, 1.0
        %v1014 = vadd.f32 %v982, 1.0
        %v1015 = vadd.f32 %v983, 1.0
        %v1016 = vadd.f32 %v984, 1.0
        %v1017 = vadd.f32 %v985, 1.0
        %v1018 = vadd.f32 %v986, 1.0
        %v1019 = vadd.f32 %v987, 1.0
        %v1020 = vmul.f32 %v988, 0.5
        %v1021 = vmul.f32 %v989, 0.5
        %v1022 = vmul.f32 %v990, 0.5
        %v1023 = vmul.f32 %v991, 0.5
        %v1024 = vmul.f32 %v992, 0.5
        %v1025 = vmul.f32 %v993, 0.5
        %v1026 = vmul.f32 %v994, 0.5
        %v1027 = vmul.f32 %v995, 0.5
        %v1028 = vmul.f32 %v996, 0.5
        %v1029 = vmul.f32 %v997, 0.5
        %v1030 = vmul.f32 %v998, 0.5
        %v1031 = vmul.f32 %v999, 0.5
        %v1032 = vmul.f32 %v1000, 0.5
        %v1033 = vmul.f32 %v1001, 0.5
        %v1034 = vmul.f32 %v1002, 0.5
        %v1035 = vmul.f32 %v1003, 0.5
        %v1036 = vmul.f32 %v1004, 0.5
        %v1037 = vmul.f32 %v1005, 0.5
        %v1038 = vmul.f32 %v1006, 0.5
        %v1039 = vmul.f32 %v1007, 0.5
        %v1040 = vmul.f32 %v1008, 0.5
        %v1041 = vmul.f32 %v1009, 0.5
        %v1042 = vmul.f32 %v1010, 0.5
        %v1043 = vmul.f32 %v1011, 0.5
        %v1044 = vmul.f32 %v1012, 0.5
        %v1045 = vmul.f32 %v1013, 0.5
        %v1046 = vmul.f32 %v1014, 0.5
        %v1047 = vmul.f32 %v1015, 0.5
        %v1048 = vmul.f32 %v1016, 0.5
        %v1049 = vmul.f32 %v1017, 0.5
        %v1050 = vmul.f32 %v1018, 0.5
        %v1051 = vmul.f32 %v1019, 0.5
        %v1052 = vmul.f32 %v892, %v1020
        %v1053 = vmul.f32 %v893, %v1021
        %v1054 = vmul.f32 %v894, %v1022
        %v1055 = vmul.f32 %v895, %v1023
        %v1056 = vmul.f32 %v896, %v1024
        %v1057 = vmul.f32 %v897, %v1025
        %v1058 = vmul.f32 %v898, %v1026
        %v1059 = vmul.f32 %v899, %v1027
        %v1060 = vmul.f32 %v900, %v1028
        %v1061 = vmul.f32 %v901, %v1029
        %v1062 = vmul.f32 %v902, %v1030
        %v1063 = vmul.f32 %v903, %v1031
        %v1064 = vmul.f32 %v904, %v1032
        %v1065 = vmul.f32 %v905, %v1033
        %v1066 = vmul.f32 %v906, %v1034
        %v1067 = vmul.f32 %v907, %v1035
        %v1068 = vmul.f32 %v908, %v1036
        %v1069 = vmul.f32 %v909, %v1037
        %v1070 = vmul.f32 %v910, %v1038
        %v1071 = vmul.f32 %v911, %v1039
        %v1072 = vmul.f32 %v912, %v1040
        %v1073 = vmul.f32 %v913, %v1041
        %v1074 = vmul.f32 %v914, %v1042
        %v1075 = vmul.f32 %v915, %v1043
        %v1076 = vmul.f32 %v916, %v1044
        %v1077 = vmul.f32 %v917, %v1045
        %v1078 = vmul.f32 %v918, %v1046
        %v1079 = vmul.f32 %v919, %v1047
        %v1080 = vmul.f32 %v920, %v1048
        %v1081 = vmul.f32 %v921, %v1049
        %v1082 = vmul.f32 %v922, %v1050
        %v1083 = vmul.f32 %v923, %v1051
        %v1084 = vld [vmem:[%s3] sm:$0xff]
        %v1085 = vld [vmem:[%s3 + $0x8] sm:$0xff]
        %v1086 = vld [vmem:[%s4] sm:$0xff]
        %v1087 = vld [vmem:[%s4 + $0x8] sm:$0xff]
        %v1088 = vld [vmem:[%s5] sm:$0xff]
        %v1089 = vld [vmem:[%s5 + $0x8] sm:$0xff]
        %v1090 = vld [vmem:[%s6] sm:$0xff]
        %v1091 = vld [vmem:[%s6 + $0x8] sm:$0xff]
        %v1092 = vld [vmem:[%s7] sm:$0xff]
        %v1093 = vld [vmem:[%s7 + $0x8] sm:$0xff]
        %v1094 = vld [vmem:[%s7 + $0x10] sm:$0xff]
        %v1095 = vld [vmem:[%s7 + $0x18] sm:$0xff]
        %v1096 = vld [vmem:[%s8] sm:$0xff]
        %v1097 = vld [vmem:[%s8 + $0x8] sm:$0xff]
        %v1098 = vld [vmem:[%s8 + $0x10] sm:$0xff]
        %v1099 = vld [vmem:[%s8 + $0x18] sm:$0xff]
        %v1100 = vpack.c.bf16 %v1085, %v1084
        %v1101 = vpack.c.bf16 %v1068, %v1052
        %v1102 = vpack.c.bf16 %v1069, %v1053
        %v1103 = vpack.c.bf16 %v1070, %v1054
        %v1104 = vpack.c.bf16 %v1071, %v1055
        %v1105 = vpack.c.bf16 %v1072, %v1056
        %v1106 = vpack.c.bf16 %v1073, %v1057
        %v1107 = vpack.c.bf16 %v1074, %v1058
        %v1108 = vpack.c.bf16 %v1075, %v1059
        %v1109 = vpack.c.bf16 %v1076, %v1060
        %v1110 = vpack.c.bf16 %v1077, %v1061
        %v1111 = vpack.c.bf16 %v1078, %v1062
        %v1112 = vpack.c.bf16 %v1079, %v1063
        %v1113 = vpack.c.bf16 %v1080, %v1064
        %v1114 = vpack.c.bf16 %v1081, %v1065
        %v1115 = vpack.c.bf16 %v1082, %v1066
        %v1116 = vpack.c.bf16 %v1083, %v1067
        %1118 = vset.pattern.permute.xlu0 0
        %1119 = vperm.xlu0 %1118, %v1086
        %v1120 = vpop.permute.xlu0 %1119
        %1123 = vset.pattern.permute.xlu0 0
        %1124 = vperm.xlu0 %1123, %v1087
        %v1125 = vpop.permute.xlu0 %1124
        %vm1127 = vcmask 130048
        %v1129 = vsel %vm1127, %v1100, 0
        %1131 = vmatprep.subr.bf16.mxu0 %v1102
        %1132 = vmatpush1.bf16.msra.mxu0 %v1101
        %1133 = vmatprep.subr.bf16.mxu0 0
        %1134 = vmatpush1.bf16.msra.mxu0 0
        %1135 = vmatprep.subr.bf16.mxu0 0
        %1136 = vmatpush1.bf16.msra.mxu0 0
        %1137 = vmatprep.subr.bf16.mxu0 0
        %1138 = vmatpush1.bf16.msra.mxu0 0
        %1139 = vmatprep.subr.bf16.mxu0 0
        %1140 = vmatpush1.bf16.msra.mxu0 0
        %1141 = vmatprep.subr.bf16.mxu0 0
        %1142 = vmatpush1.bf16.msra.mxu0 0
        %1143 = vmatprep.subr.bf16.mxu0 0
        %1144 = vmatpush1.bf16.msra.mxu0 0
        %1145 = vmatprep.subr.bf16.mxu0 0
        %1146 = vmatpush1.bf16.msra.mxu0 0
        %1147 = vmatprep.subr.bf16.mxu0 0
        %1148 = vmatpush1.bf16.msra.mxu0 0
        %1149 = vmatprep.subr.bf16.mxu0 0
        %1150 = vmatpush1.bf16.msra.mxu0 0
        %1151 = vmatprep.subr.bf16.mxu0 0
        %1152 = vmatpush1.bf16.msra.mxu0 0
        %1153 = vmatprep.subr.bf16.mxu0 0
        %1154 = vmatpush1.bf16.msra.mxu0 0
        %1155 = vmatprep.subr.bf16.mxu0 0
        %1156 = vmatpush1.bf16.msra.mxu0 0
        %1157 = vmatprep.subr.bf16.mxu0 0
        %1158 = vmatpush1.bf16.msra.mxu0 0
        %1159 = vmatprep.subr.bf16.mxu0 0
        %1160 = vmatpush1.bf16.msra.mxu0 0
        %1161 = vmatprep.subr.bf16.mxu0 0
        %1162 = vmatpush1.bf16.msra.mxu0 0
        %1163 = vmatprep.mubr.bf16.mxu0 0
        %1164 = vmatmul.mubr.bf16.gmra.mrb[0].mxu0 %v1129
        %v1165 = vpop.f32.mrb[0].mxu0
        %v1166 = vadd.f32 %v1120, %v1165
        %v1167 = vpop.f32.mrb[0].mxu0
        %v1168 = vadd.f32 %v1120, %v1167
        %v1169 = vpop.f32.mrb[0].mxu0
        %v1170 = vadd.f32 %v1125, %v1169
        %v1171 = vpop.f32.mrb[0].mxu0
        %v1172 = vadd.f32 %v1125, %v1171
        %1173 = vdwg.mxu0
        %1174 = vmatprep.subr.bf16.mxu0 %v1104
        %1175 = vmatpush1.bf16.msra.mxu0 %v1103
        %1176 = vmatprep.subr.bf16.mxu0 0
        %1177 = vmatpush1.bf16.msra.mxu0 0
        %1178 = vmatprep.subr.bf16.mxu0 0
        %1179 = vmatpush1.bf16.msra.mxu0 0
        %1180 = vmatprep.subr.bf16.mxu0 0
        %1181 = vmatpush1.bf16.msra.mxu0 0
        %1182 = vmatprep.subr.bf16.mxu0 0
        %1183 = vmatpush1.bf16.msra.mxu0 0
        %1184 = vmatprep.subr.bf16.mxu0 0
        %1185 = vmatpush1.bf16.msra.mxu0 0
        %1186 = vmatprep.subr.bf16.mxu0 0
        %1187 = vmatpush1.bf16.msra.mxu0 0
        %1188 = vmatprep.subr.bf16.mxu0 0
        %1189 = vmatpush1.bf16.msra.mxu0 0
        %1190 = vmatprep.subr.bf16.mxu0 0
        %1191 = vmatpush1.bf16.msra.mxu0 0
        %1192 = vmatprep.subr.bf16.mxu0 0
        %1193 = vmatpush1.bf16.msra.mxu0 0
        %1194 = vmatprep.subr.bf16.mxu0 0
        %1195 = vmatpush1.bf16.msra.mxu0 0
        %1196 = vmatprep.subr.bf16.mxu0 0
        %1197 = vmatpush1.bf16.msra.mxu0 0
        %1198 = vmatprep.subr.bf16.mxu0 0
        %1199 = vmatpush1.bf16.msra.mxu0 0
        %1200 = vmatprep.subr.bf16.mxu0 0
        %1201 = vmatpush1.bf16.msra.mxu0 0
        %1202 = vmatprep.subr.bf16.mxu0 0
        %1203 = vmatpush1.bf16.msra.mxu0 0
        %1204 = vmatprep.subr.bf16.mxu0 0
        %1205 = vmatpush1.bf16.msra.mxu0 0
        %1206 = vmatprep.mubr.bf16.mxu0 0
        %1207 = vmatmul.mubr.bf16.gmra.mrb[0].mxu0 %v1129
        %v1208 = vpop.f32.mrb[0].mxu0
        %v1209 = vadd.f32 %v1120, %v1208
        %v1210 = vpop.f32.mrb[0].mxu0
        %v1211 = vadd.f32 %v1120, %v1210
        %v1212 = vpop.f32.mrb[0].mxu0
        %v1213 = vadd.f32 %v1125, %v1212
        %v1214 = vpop.f32.mrb[0].mxu0
        %v1215 = vadd.f32 %v1125, %v1214
        %1216 = vdwg.mxu0
        %1217 = vmatprep.subr.bf16.mxu0 %v1106
        %1218 = vmatpush1.bf16.msra.mxu0 %v1105
        %1219 = vmatprep.subr.bf16.mxu0 0
        %1220 = vmatpush1.bf16.msra.mxu0 0
        %1221 = vmatprep.subr.bf16.mxu0 0
        %1222 = vmatpush1.bf16.msra.mxu0 0
        %1223 = vmatprep.subr.bf16.mxu0 0
        %1224 = vmatpush1.bf16.msra.mxu0 0
        %1225 = vmatprep.subr.bf16.mxu0 0
        %1226 = vmatpush1.bf16.msra.mxu0 0
        %1227 = vmatprep.subr.bf16.mxu0 0
        %1228 = vmatpush1.bf16.msra.mxu0 0
        %1229 = vmatprep.subr.bf16.mxu0 0
        %1230 = vmatpush1.bf16.msra.mxu0 0
        %1231 = vmatprep.subr.bf16.mxu0 0
        %1232 = vmatpush1.bf16.msra.mxu0 0
        %1233 = vmatprep.subr.bf16.mxu0 0
        %1234 = vmatpush1.bf16.msra.mxu0 0
        %1235 = vmatprep.subr.bf16.mxu0 0
        %1236 = vmatpush1.bf16.msra.mxu0 0
        %1237 = vmatprep.subr.bf16.mxu0 0
        %1238 = vmatpush1.bf16.msra.mxu0 0
        %1239 = vmatprep.subr.bf16.mxu0 0
        %1240 = vmatpush1.bf16.msra.mxu0 0
        %1241 = vmatprep.subr.bf16.mxu0 0
        %1242 = vmatpush1.bf16.msra.mxu0 0
        %1243 = vmatprep.subr.bf16.mxu0 0
        %1244 = vmatpush1.bf16.msra.mxu0 0
        %1245 = vmatprep.subr.bf16.mxu0 0
        %1246 = vmatpush1.bf16.msra.mxu0 0
        %1247 = vmatprep.subr.bf16.mxu0 0
        %1248 = vmatpush1.bf16.msra.mxu0 0
        %1249 = vmatprep.mubr.bf16.mxu0 0
        %1250 = vmatmul.mubr.bf16.gmra.mrb[0].mxu0 %v1129
        %v1251 = vpop.f32.mrb[0].mxu0
        %v1252 = vadd.f32 %v1120, %v1251
        %v1253 = vpop.f32.mrb[0].mxu0
        %v1254 = vadd.f32 %v1120, %v1253
        %v1255 = vpop.f32.mrb[0].mxu0
        %v1256 = vadd.f32 %v1125, %v1255
        %v1257 = vpop.f32.mrb[0].mxu0
        %v1258 = vadd.f32 %v1125, %v1257
        %1259 = vdwg.mxu0
        %1260 = vmatprep.subr.bf16.mxu0 %v1108
        %1261 = vmatpush1.bf16.msra.mxu0 %v1107
        %1262 = vmatprep.subr.bf16.mxu0 0
        %1263 = vmatpush1.bf16.msra.mxu0 0
        %1264 = vmatprep.subr.bf16.mxu0 0
        %1265 = vmatpush1.bf16.msra.mxu0 0
        %1266 = vmatprep.subr.bf16.mxu0 0
        %1267 = vmatpush1.bf16.msra.mxu0 0
        %1268 = vmatprep.subr.bf16.mxu0 0
        %1269 = vmatpush1.bf16.msra.mxu0 0
        %1270 = vmatprep.subr.bf16.mxu0 0
        %1271 = vmatpush1.bf16.msra.mxu0 0
        %1272 = vmatprep.subr.bf16.mxu0 0
        %1273 = vmatpush1.bf16.msra.mxu0 0
        %1274 = vmatprep.subr.bf16.mxu0 0
        %1275 = vmatpush1.bf16.msra.mxu0 0
        %1276 = vmatprep.subr.bf16.mxu0 0
        %1277 = vmatpush1.bf16.msra.mxu0 0
        %1278 = vmatprep.subr.bf16.mxu0 0
        %1279 = vmatpush1.bf16.msra.mxu0 0
        %1280 = vmatprep.subr.bf16.mxu0 0
        %1281 = vmatpush1.bf16.msra.mxu0 0
        %1282 = vmatprep.subr.bf16.mxu0 0
        %1283 = vmatpush1.bf16.msra.mxu0 0
        %1284 = vmatprep.subr.bf16.mxu0 0
        %1285 = vmatpush1.bf16.msra.mxu0 0
        %1286 = vmatprep.subr.bf16.mxu0 0
        %1287 = vmatpush1.bf16.msra.mxu0 0
        %1288 = vmatprep.subr.bf16.mxu0 0
        %1289 = vmatpush1.bf16.msra.mxu0 0
        %1290 = vmatprep.subr.bf16.mxu0 0
        %1291 = vmatpush1.bf16.msra.mxu0 0
        %1292 = vmatprep.mubr.bf16.mxu0 0
        %1293 = vmatmul.mubr.bf16.gmra.mrb[0].mxu0 %v1129
        %v1294 = vpop.f32.mrb[0].mxu0
        %v1295 = vadd.f32 %v1120, %v1294
        %v1296 = vpop.f32.mrb[0].mxu0
        %v1297 = vadd.f32 %v1120, %v1296
        %v1298 = vpop.f32.mrb[0].mxu0
        %v1299 = vadd.f32 %v1125, %v1298
        %v1300 = vpop.f32.mrb[0].mxu0
        %v1301 = vadd.f32 %v1125, %v1300
        %1302 = vdwg.mxu0
        %1303 = vmatprep.subr.bf16.mxu0 %v1110
        %1304 = vmatpush1.bf16.msra.mxu0 %v1109
        %1305 = vmatprep.subr.bf16.mxu0 0
        %1306 = vmatpush1.bf16.msra.mxu0 0
        %1307 = vmatprep.subr.bf16.mxu0 0
        %1308 = vmatpush1.bf16.msra.mxu0 0
        %1309 = vmatprep.subr.bf16.mxu0 0
        %1310 = vmatpush1.bf16.msra.mxu0 0
        %1311 = vmatprep.subr.bf16.mxu0 0
        %1312 = vmatpush1.bf16.msra.mxu0 0
        %1313 = vmatprep.subr.bf16.mxu0 0
        %1314 = vmatpush1.bf16.msra.mxu0 0
        %1315 = vmatprep.subr.bf16.mxu0 0
        %1316 = vmatpush1.bf16.msra.mxu0 0
        %1317 = vmatprep.subr.bf16.mxu0 0
        %1318 = vmatpush1.bf16.msra.mxu0 0
        %1319 = vmatprep.subr.bf16.mxu0 0
        %1320 = vmatpush1.bf16.msra.mxu0 0
        %1321 = vmatprep.subr.bf16.mxu0 0
        %1322 = vmatpush1.bf16.msra.mxu0 0
        %1323 = vmatprep.subr.bf16.mxu0 0
        %1324 = vmatpush1.bf16.msra.mxu0 0
        %1325 = vmatprep.subr.bf16.mxu0 0
        %1326 = vmatpush1.bf16.msra.mxu0 0
        %1327 = vmatprep.subr.bf16.mxu0 0
        %1328 = vmatpush1.bf16.msra.mxu0 0
        %1329 = vmatprep.subr.bf16.mxu0 0
        %1330 = vmatpush1.bf16.msra.mxu0 0
        %1331 = vmatprep.subr.bf16.mxu0 0
        %1332 = vmatpush1.bf16.msra.mxu0 0
        %1333 = vmatprep.subr.bf16.mxu0 0
        %1334 = vmatpush1.bf16.msra.mxu0 0
        %1335 = vmatprep.mubr.bf16.mxu0 0
        %1336 = vmatmul.mubr.bf16.gmra.mrb[0].mxu0 %v1129
        %v1337 = vpop.f32.mrb[0].mxu0
        %v1338 = vadd.f32 %v1120, %v1337
        %v1339 = vpop.f32.mrb[0].mxu0
        %v1340 = vadd.f32 %v1120, %v1339
        %v1341 = vpop.f32.mrb[0].mxu0
        %v1342 = vadd.f32 %v1125, %v1341
        %v1343 = vpop.f32.mrb[0].mxu0
        %v1344 = vadd.f32 %v1125, %v1343
        %1345 = vdwg.mxu0
        %1346 = vmatprep.subr.bf16.mxu0 %v1112
        %1347 = vmatpush1.bf16.msra.mxu0 %v1111
        %1348 = vmatprep.subr.bf16.mxu0 0
        %1349 = vmatpush1.bf16.msra.mxu0 0
        %1350 = vmatprep.subr.bf16.mxu0 0
        %1351 = vmatpush1.bf16.msra.mxu0 0
        %1352 = vmatprep.subr.bf16.mxu0 0
        %1353 = vmatpush1.bf16.msra.mxu0 0
        %1354 = vmatprep.subr.bf16.mxu0 0
        %1355 = vmatpush1.bf16.msra.mxu0 0
        %1356 = vmatprep.subr.bf16.mxu0 0
        %1357 = vmatpush1.bf16.msra.mxu0 0
        %1358 = vmatprep.subr.bf16.mxu0 0
        %1359 = vmatpush1.bf16.msra.mxu0 0
        %1360 = vmatprep.subr.bf16.mxu0 0
        %1361 = vmatpush1.bf16.msra.mxu0 0
        %1362 = vmatprep.subr.bf16.mxu0 0
        %1363 = vmatpush1.bf16.msra.mxu0 0
        %1364 = vmatprep.subr.bf16.mxu0 0
        %1365 = vmatpush1.bf16.msra.mxu0 0
        %1366 = vmatprep.subr.bf16.mxu0 0
        %1367 = vmatpush1.bf16.msra.mxu0 0
        %1368 = vmatprep.subr.bf16.mxu0 0
        %1369 = vmatpush1.bf16.msra.mxu0 0
        %1370 = vmatprep.subr.bf16.mxu0 0
        %1371 = vmatpush1.bf16.msra.mxu0 0
        %1372 = vmatprep.subr.bf16.mxu0 0
        %1373 = vmatpush1.bf16.msra.mxu0 0
        %1374 = vmatprep.subr.bf16.mxu0 0
        %1375 = vmatpush1.bf16.msra.mxu0 0
        %1376 = vmatprep.subr.bf16.mxu0 0
        %1377 = vmatpush1.bf16.msra.mxu0 0
        %1378 = vmatprep.mubr.bf16.mxu0 0
        %1379 = vmatmul.mubr.bf16.gmra.mrb[0].mxu0 %v1129
        %v1380 = vpop.f32.mrb[0].mxu0
        %v1381 = vadd.f32 %v1120, %v1380
        %v1382 = vpop.f32.mrb[0].mxu0
        %v1383 = vadd.f32 %v1120, %v1382
        %v1384 = vpop.f32.mrb[0].mxu0
        %v1385 = vadd.f32 %v1125, %v1384
        %v1386 = vpop.f32.mrb[0].mxu0
        %v1387 = vadd.f32 %v1125, %v1386
        %1388 = vdwg.mxu0
        %1389 = vmatprep.subr.bf16.mxu0 %v1114
        %1390 = vmatpush1.bf16.msra.mxu0 %v1113
        %1391 = vmatprep.subr.bf16.mxu0 0
        %1392 = vmatpush1.bf16.msra.mxu0 0
        %1393 = vmatprep.subr.bf16.mxu0 0
        %1394 = vmatpush1.bf16.msra.mxu0 0
        %1395 = vmatprep.subr.bf16.mxu0 0
        %1396 = vmatpush1.bf16.msra.mxu0 0
        %1397 = vmatprep.subr.bf16.mxu0 0
        %1398 = vmatpush1.bf16.msra.mxu0 0
        %1399 = vmatprep.subr.bf16.mxu0 0
        %1400 = vmatpush1.bf16.msra.mxu0 0
        %1401 = vmatprep.subr.bf16.mxu0 0
        %1402 = vmatpush1.bf16.msra.mxu0 0
        %1403 = vmatprep.subr.bf16.mxu0 0
        %1404 = vmatpush1.bf16.msra.mxu0 0
        %1405 = vmatprep.subr.bf16.mxu0 0
        %1406 = vmatpush1.bf16.msra.mxu0 0
        %1407 = vmatprep.subr.bf16.mxu0 0
        %1408 = vmatpush1.bf16.msra.mxu0 0
        %1409 = vmatprep.subr.bf16.mxu0 0
        %1410 = vmatpush1.bf16.msra.mxu0 0
        %1411 = vmatprep.subr.bf16.mxu0 0
        %1412 = vmatpush1.bf16.msra.mxu0 0
        %1413 = vmatprep.subr.bf16.mxu0 0
        %1414 = vmatpush1.bf16.msra.mxu0 0
        %1415 = vmatprep.subr.bf16.mxu0 0
        %1416 = vmatpush1.bf16.msra.mxu0 0
        %1417 = vmatprep.subr.bf16.mxu0 0
        %1418 = vmatpush1.bf16.msra.mxu0 0
        %1419 = vmatprep.subr.bf16.mxu0 0
        %1420 = vmatpush1.bf16.msra.mxu0 0
        %1421 = vmatprep.mubr.bf16.mxu0 0
        %1422 = vmatmul.mubr.bf16.gmra.mrb[0].mxu0 %v1129
        %v1423 = vpop.f32.mrb[0].mxu0
        %v1424 = vadd.f32 %v1120, %v1423
        %v1425 = vpop.f32.mrb[0].mxu0
        %v1426 = vadd.f32 %v1120, %v1425
        %v1427 = vpop.f32.mrb[0].mxu0
        %v1428 = vadd.f32 %v1125, %v1427
        %v1429 = vpop.f32.mrb[0].mxu0
        %v1430 = vadd.f32 %v1125, %v1429
        %1431 = vdwg.mxu0
        %1432 = vmatprep.subr.bf16.mxu0 %v1116
        %1433 = vmatpush1.bf16.msra.mxu0 %v1115
        %1434 = vmatprep.subr.bf16.mxu0 0
        %1435 = vmatpush1.bf16.msra.mxu0 0
        %1436 = vmatprep.subr.bf16.mxu0 0
        %1437 = vmatpush1.bf16.msra.mxu0 0
        %1438 = vmatprep.subr.bf16.mxu0 0
        %1439 = vmatpush1.bf16.msra.mxu0 0
        %1440 = vmatprep.subr.bf16.mxu0 0
        %1441 = vmatpush1.bf16.msra.mxu0 0
        %1442 = vmatprep.subr.bf16.mxu0 0
        %1443 = vmatpush1.bf16.msra.mxu0 0
        %1444 = vmatprep.subr.bf16.mxu0 0
        %1445 = vmatpush1.bf16.msra.mxu0 0
        %1446 = vmatprep.subr.bf16.mxu0 0
        %1447 = vmatpush1.bf16.msra.mxu0 0
        %1448 = vmatprep.subr.bf16.mxu0 0
        %1449 = vmatpush1.bf16.msra.mxu0 0
        %1450 = vmatprep.subr.bf16.mxu0 0
        %1451 = vmatpush1.bf16.msra.mxu0 0
        %1452 = vmatprep.subr.bf16.mxu0 0
        %1453 = vmatpush1.bf16.msra.mxu0 0
        %1454 = vmatprep.subr.bf16.mxu0 0
        %1455 = vmatpush1.bf16.msra.mxu0 0
        %1456 = vmatprep.subr.bf16.mxu0 0
        %1457 = vmatpush1.bf16.msra.mxu0 0
        %1458 = vmatprep.subr.bf16.mxu0 0
        %1459 = vmatpush1.bf16.msra.mxu0 0
        %1460 = vmatprep.subr.bf16.mxu0 0
        %1461 = vmatpush1.bf16.msra.mxu0 0
        %1462 = vmatprep.subr.bf16.mxu0 0
        %1463 = vmatpush1.bf16.msra.mxu0 0
        %1464 = vmatprep.mubr.bf16.mxu0 0
        %1465 = vmatmul.mubr.bf16.gmra.mrb[0].mxu0 %v1129
        %v1466 = vpop.f32.mrb[0].mxu0
        %v1467 = vadd.f32 %v1120, %v1466
        %v1468 = vpop.f32.mrb[0].mxu0
        %v1469 = vadd.f32 %v1120, %v1468
        %v1470 = vpop.f32.mrb[0].mxu0
        %v1471 = vadd.f32 %v1125, %v1470
        %v1472 = vpop.f32.mrb[0].mxu0
        %v1473 = vadd.f32 %v1125, %v1472
        %1474 = vdwg.mxu0
        %v1475 = vmul.f32 %v1166, 0.5
        %v1476 = vmul.f32 %v1168, 0.5
        %v1477 = vmul.f32 %v1209, 0.5
        %v1478 = vmul.f32 %v1211, 0.5
        %v1479 = vmul.f32 %v1252, 0.5
        %v1480 = vmul.f32 %v1254, 0.5
        %v1481 = vmul.f32 %v1295, 0.5
        %v1482 = vmul.f32 %v1297, 0.5
        %v1483 = vmul.f32 %v1338, 0.5
        %v1484 = vmul.f32 %v1340, 0.5
        %v1485 = vmul.f32 %v1381, 0.5
        %v1486 = vmul.f32 %v1383, 0.5
        %v1487 = vmul.f32 %v1424, 0.5
        %v1488 = vmul.f32 %v1426, 0.5
        %v1489 = vmul.f32 %v1467, 0.5
        %v1490 = vmul.f32 %v1469, 0.5
        %v1491 = vmul.f32 %v1170, 0.5
        %v1492 = vmul.f32 %v1172, 0.5
        %v1493 = vmul.f32 %v1213, 0.5
        %v1494 = vmul.f32 %v1215, 0.5
        %v1495 = vmul.f32 %v1256, 0.5
        %v1496 = vmul.f32 %v1258, 0.5
        %v1497 = vmul.f32 %v1299, 0.5
        %v1498 = vmul.f32 %v1301, 0.5
        %v1499 = vmul.f32 %v1342, 0.5
        %v1500 = vmul.f32 %v1344, 0.5
        %v1501 = vmul.f32 %v1385, 0.5
        %v1502 = vmul.f32 %v1387, 0.5
        %v1503 = vmul.f32 %v1428, 0.5
        %v1504 = vmul.f32 %v1430, 0.5
        %v1505 = vmul.f32 %v1471, 0.5
        %v1506 = vmul.f32 %v1473, 0.5
        %v1507 = vtanh.pop %v1475
        %v1508 = vtanh.pop %v1476
        %v1509 = vtanh.pop %v1477
        %v1510 = vtanh.pop %v1478
        %v1511 = vtanh.pop %v1479
        %v1512 = vtanh.pop %v1480
        %v1513 = vtanh.pop %v1481
        %v1514 = vtanh.pop %v1482
        %v1515 = vtanh.pop %v1483
        %v1516 = vtanh.pop %v1484
        %v1517 = vtanh.pop %v1485
        %v1518 = vtanh.pop %v1486
        %v1519 = vtanh.pop %v1487
        %v1520 = vtanh.pop %v1488
        %v1521 = vtanh.pop %v1489
        %v1522 = vtanh.pop %v1490
        %v1523 = vtanh.pop %v1491
        %v1524 = vtanh.pop %v1492
        %v1525 = vtanh.pop %v1493
        %v1526 = vtanh.pop %v1494
        %v1527 = vtanh.pop %v1495
        %v1528 = vtanh.pop %v1496
        %v1529 = vtanh.pop %v1497
        %v1530 = vtanh.pop %v1498
        %v1531 = vtanh.pop %v1499
        %v1532 = vtanh.pop %v1500
        %v1533 = vtanh.pop %v1501
        %v1534 = vtanh.pop %v1502
        %v1535 = vtanh.pop %v1503
        %v1536 = vtanh.pop %v1504
        %v1537 = vtanh.pop %v1505
        %v1538 = vtanh.pop %v1506
        %v1539 = vadd.f32 %v1507, 1.0
        %v1540 = vadd.f32 %v1508, 1.0
        %v1541 = vadd.f32 %v1509, 1.0
        %v1542 = vadd.f32 %v1510, 1.0
        %v1543 = vadd.f32 %v1511, 1.0
        %v1544 = vadd.f32 %v1512, 1.0
        %v1545 = vadd.f32 %v1513, 1.0
        %v1546 = vadd.f32 %v1514, 1.0
        %v1547 = vadd.f32 %v1515, 1.0
        %v1548 = vadd.f32 %v1516, 1.0
        %v1549 = vadd.f32 %v1517, 1.0
        %v1550 = vadd.f32 %v1518, 1.0
        %v1551 = vadd.f32 %v1519, 1.0
        %v1552 = vadd.f32 %v1520, 1.0
        %v1553 = vadd.f32 %v1521, 1.0
        %v1554 = vadd.f32 %v1522, 1.0
        %v1555 = vadd.f32 %v1523, 1.0
        %v1556 = vadd.f32 %v1524, 1.0
        %v1557 = vadd.f32 %v1525, 1.0
        %v1558 = vadd.f32 %v1526, 1.0
        %v1559 = vadd.f32 %v1527, 1.0
        %v1560 = vadd.f32 %v1528, 1.0
        %v1561 = vadd.f32 %v1529, 1.0
        %v1562 = vadd.f32 %v1530, 1.0
        %v1563 = vadd.f32 %v1531, 1.0
        %v1564 = vadd.f32 %v1532, 1.0
        %v1565 = vadd.f32 %v1533, 1.0
        %v1566 = vadd.f32 %v1534, 1.0
        %v1567 = vadd.f32 %v1535, 1.0
        %v1568 = vadd.f32 %v1536, 1.0
        %v1569 = vadd.f32 %v1537, 1.0
        %v1570 = vadd.f32 %v1538, 1.0
        %v1571 = vmul.f32 %v1539, 0.5
        %v1572 = vmul.f32 %v1540, 0.5
        %v1573 = vmul.f32 %v1541, 0.5
        %v1574 = vmul.f32 %v1542, 0.5
        %v1575 = vmul.f32 %v1543, 0.5
        %v1576 = vmul.f32 %v1544, 0.5
        %v1577 = vmul.f32 %v1545, 0.5
        %v1578 = vmul.f32 %v1546, 0.5
        %v1579 = vmul.f32 %v1547, 0.5
        %v1580 = vmul.f32 %v1548, 0.5
        %v1581 = vmul.f32 %v1549, 0.5
        %v1582 = vmul.f32 %v1550, 0.5
        %v1583 = vmul.f32 %v1551, 0.5
        %v1584 = vmul.f32 %v1552, 0.5
        %v1585 = vmul.f32 %v1553, 0.5
        %v1586 = vmul.f32 %v1554, 0.5
        %v1587 = vmul.f32 %v1555, 0.5
        %v1588 = vmul.f32 %v1556, 0.5
        %v1589 = vmul.f32 %v1557, 0.5
        %v1590 = vmul.f32 %v1558, 0.5
        %v1591 = vmul.f32 %v1559, 0.5
        %v1592 = vmul.f32 %v1560, 0.5
        %v1593 = vmul.f32 %v1561, 0.5
        %v1594 = vmul.f32 %v1562, 0.5
        %v1595 = vmul.f32 %v1563, 0.5
        %v1596 = vmul.f32 %v1564, 0.5
        %v1597 = vmul.f32 %v1565, 0.5
        %v1598 = vmul.f32 %v1566, 0.5
        %v1599 = vmul.f32 %v1567, 0.5
        %v1600 = vmul.f32 %v1568, 0.5
        %v1601 = vmul.f32 %v1569, 0.5
        %v1602 = vmul.f32 %v1570, 0.5
        %v1603 = vmul.f32 %v1166, %v1571
        %v1604 = vmul.f32 %v1168, %v1572
        %v1605 = vmul.f32 %v1209, %v1573
        %v1606 = vmul.f32 %v1211, %v1574
        %v1607 = vmul.f32 %v1252, %v1575
        %v1608 = vmul.f32 %v1254, %v1576
        %v1609 = vmul.f32 %v1295, %v1577
        %v1610 = vmul.f32 %v1297, %v1578
        %v1611 = vmul.f32 %v1338, %v1579
        %v1612 = vmul.f32 %v1340, %v1580
        %v1613 = vmul.f32 %v1381, %v1581
        %v1614 = vmul.f32 %v1383, %v1582
        %v1615 = vmul.f32 %v1424, %v1583
        %v1616 = vmul.f32 %v1426, %v1584
        %v1617 = vmul.f32 %v1467, %v1585
        %v1618 = vmul.f32 %v1469, %v1586
        %v1619 = vmul.f32 %v1170, %v1587
        %v1620 = vmul.f32 %v1172, %v1588
        %v1621 = vmul.f32 %v1213, %v1589
        %v1622 = vmul.f32 %v1215, %v1590
        %v1623 = vmul.f32 %v1256, %v1591
        %v1624 = vmul.f32 %v1258, %v1592
        %v1625 = vmul.f32 %v1299, %v1593
        %v1626 = vmul.f32 %v1301, %v1594
        %v1627 = vmul.f32 %v1342, %v1595
        %v1628 = vmul.f32 %v1344, %v1596
        %v1629 = vmul.f32 %v1385, %v1597
        %v1630 = vmul.f32 %v1387, %v1598
        %v1631 = vmul.f32 %v1428, %v1599
        %v1632 = vmul.f32 %v1430, %v1600
        %v1633 = vmul.f32 %v1471, %v1601
        %v1634 = vmul.f32 %v1473, %v1602
        %v1635 = vmul.f32 %v1086, 0.5
        %v1636 = vmul.f32 %v1087, 0.5
        %v1637 = vtanh.pop %v1635
        %v1638 = vtanh.pop %v1636
        %v1639 = vadd.f32 %v1637, 1.0
        %v1640 = vadd.f32 %v1638, 1.0
        %v1641 = vmul.f32 %v1639, 0.5
        %v1642 = vmul.f32 %v1640, 0.5
        %v1643 = vmul.f32 %v1086, %v1641
        %v1644 = vmul.f32 %v1087, %v1642
        %1646 = vset.pattern.permute.xlu0 0
        %1647 = vperm.xlu0 %1646, %v1643
        %v1648 = vpop.permute.xlu0 %1647
        %1651 = vset.pattern.permute.xlu0 0
        %1652 = vperm.xlu0 %1651, %v1644
        %v1653 = vpop.permute.xlu0 %1652
        %1656 = vset.pattern.permute.xlu0 0
        %1657 = vperm.xlu0 %1656, %v1090
        %v1658 = vpop.permute.xlu0 %1657
        %1661 = vset.pattern.permute.xlu0 0
        %1662 = vperm.xlu0 %1661, %v1091
        %v1663 = vpop.permute.xlu0 %1662
        %1666 = vset.pattern.permute.xlu0 0
        %1667 = vperm.xlu0 %1666, %v1088
        %v1668 = vpop.permute.xlu0 %1667
        %1671 = vset.pattern.permute.xlu0 0
        %1672 = vperm.xlu0 %1671, %v1089
        %v1673 = vpop.permute.xlu0 %1672
        %v1675 = vmul.f32 %v1668, %v1648
        %v1676 = vmul.f32 %v1668, %v1603
        %v1677 = vmul.f32 %v1668, %v1604
        %v1678 = vmul.f32 %v1668, %v1605
        %v1679 = vmul.f32 %v1668, %v1606
        %v1680 = vmul.f32 %v1668, %v1607
        %v1681 = vmul.f32 %v1668, %v1608
        %v1682 = vmul.f32 %v1668, %v1609
        %v1683 = vmul.f32 %v1668, %v1610
        %v1684 = vmul.f32 %v1668, %v1611
        %v1685 = vmul.f32 %v1668, %v1612
        %v1686 = vmul.f32 %v1668, %v1613
        %v1687 = vmul.f32 %v1668, %v1614
        %v1688 = vmul.f32 %v1668, %v1615
        %v1689 = vmul.f32 %v1668, %v1616
        %v1690 = vmul.f32 %v1673, %v1653
        %v1691 = vmul.f32 %v1673, %v1619
        %v1692 = vmul.f32 %v1673, %v1620
        %v1693 = vmul.f32 %v1673, %v1621
        %v1694 = vmul.f32 %v1673, %v1622
        %v1695 = vmul.f32 %v1673, %v1623
        %v1696 = vmul.f32 %v1673, %v1624
        %v1697 = vmul.f32 %v1673, %v1625
        %v1698 = vmul.f32 %v1673, %v1626
        %v1699 = vmul.f32 %v1673, %v1627
        %v1700 = vmul.f32 %v1673, %v1628
        %v1701 = vmul.f32 %v1673, %v1629
        %v1702 = vmul.f32 %v1673, %v1630
        %v1703 = vmul.f32 %v1673, %v1631
        %v1704 = vmul.f32 %v1673, %v1632
        %v1705 = vadd.f32 %v1658, %v1675
        %v1706 = vadd.f32 %v1658, %v1676
        %v1707 = vadd.f32 %v1658, %v1677
        %v1708 = vadd.f32 %v1658, %v1678
        %v1709 = vadd.f32 %v1658, %v1679
        %v1710 = vadd.f32 %v1658, %v1680
        %v1711 = vadd.f32 %v1658, %v1681
        %v1712 = vadd.f32 %v1658, %v1682
        %v1713 = vadd.f32 %v1658, %v1683
        %v1714 = vadd.f32 %v1658, %v1684
        %v1715 = vadd.f32 %v1658, %v1685
        %v1716 = vadd.f32 %v1658, %v1686
        %v1717 = vadd.f32 %v1658, %v1687
        %v1718 = vadd.f32 %v1658, %v1688
        %v1719 = vadd.f32 %v1658, %v1689
        %v1720 = vadd.f32 %v1663, %v1690
        %v1721 = vadd.f32 %v1663, %v1691
        %v1722 = vadd.f32 %v1663, %v1692
        %v1723 = vadd.f32 %v1663, %v1693
        %v1724 = vadd.f32 %v1663, %v1694
        %v1725 = vadd.f32 %v1663, %v1695
        %v1726 = vadd.f32 %v1663, %v1696
        %v1727 = vadd.f32 %v1663, %v1697
        %v1728 = vadd.f32 %v1663, %v1698
        %v1729 = vadd.f32 %v1663, %v1699
        %v1730 = vadd.f32 %v1663, %v1700
        %v1731 = vadd.f32 %v1663, %v1701
        %v1732 = vadd.f32 %v1663, %v1702
        %v1733 = vadd.f32 %v1663, %v1703
        %v1734 = vadd.f32 %v1663, %v1704
        %1735 = vset.pattern.permute.xlu0 1
        %1736 = vperm.xlu0 %1735, %v1088
        %v1737 = vpop.permute.xlu0 %1736
        %1739 = vset.pattern.permute.xlu0 1
        %1740 = vperm.xlu0 %1739, %v1089
        %v1741 = vpop.permute.xlu0 %1740
        %v1743 = vmul.f32 %v1737, %v1603
        %v1744 = vmul.f32 %v1737, %v1604
        %v1745 = vmul.f32 %v1737, %v1605
        %v1746 = vmul.f32 %v1737, %v1606
        %v1747 = vmul.f32 %v1737, %v1607
        %v1748 = vmul.f32 %v1737, %v1608
        %v1749 = vmul.f32 %v1737, %v1609
        %v1750 = vmul.f32 %v1737, %v1610
        %v1751 = vmul.f32 %v1737, %v1611
        %v1752 = vmul.f32 %v1737, %v1612
        %v1753 = vmul.f32 %v1737, %v1613
        %v1754 = vmul.f32 %v1737, %v1614
        %v1755 = vmul.f32 %v1737, %v1615
        %v1756 = vmul.f32 %v1737, %v1616
        %v1757 = vmul.f32 %v1737, %v1617
        %v1758 = vmul.f32 %v1737, %v1618
        %v1759 = vmul.f32 %v1741, %v1619
        %v1760 = vmul.f32 %v1741, %v1620
        %v1761 = vmul.f32 %v1741, %v1621
        %v1762 = vmul.f32 %v1741, %v1622
        %v1763 = vmul.f32 %v1741, %v1623
        %v1764 = vmul.f32 %v1741, %v1624
        %v1765 = vmul.f32 %v1741, %v1625
        %v1766 = vmul.f32 %v1741, %v1626
        %v1767 = vmul.f32 %v1741, %v1627
        %v1768 = vmul.f32 %v1741, %v1628
        %v1769 = vmul.f32 %v1741, %v1629
        %v1770 = vmul.f32 %v1741, %v1630
        %v1771 = vmul.f32 %v1741, %v1631
        %v1772 = vmul.f32 %v1741, %v1632
        %v1773 = vmul.f32 %v1741, %v1633
        %v1774 = vmul.f32 %v1741, %v1634
        %v1775 = vadd.f32 %v1705, %v1743
        %v1776 = vadd.f32 %v1705, %v1744
        %v1777 = vadd.f32 %v1706, %v1745
        %v1778 = vadd.f32 %v1707, %v1746
        %v1779 = vadd.f32 %v1708, %v1747
        %v1780 = vadd.f32 %v1709, %v1748
        %v1781 = vadd.f32 %v1710, %v1749
        %v1782 = vadd.f32 %v1711, %v1750
        %v1783 = vadd.f32 %v1712, %v1751
        %v1784 = vadd.f32 %v1713, %v1752
        %v1785 = vadd.f32 %v1714, %v1753
        %v1786 = vadd.f32 %v1715, %v1754
        %v1787 = vadd.f32 %v1716, %v1755
        %v1788 = vadd.f32 %v1717, %v1756
        %v1789 = vadd.f32 %v1718, %v1757
        %v1790 = vadd.f32 %v1719, %v1758
        %v1791 = vadd.f32 %v1720, %v1759
        %v1792 = vadd.f32 %v1720, %v1760
        %v1793 = vadd.f32 %v1721, %v1761
        %v1794 = vadd.f32 %v1722, %v1762
        %v1795 = vadd.f32 %v1723, %v1763
        %v1796 = vadd.f32 %v1724, %v1764
        %v1797 = vadd.f32 %v1725, %v1765
        %v1798 = vadd.f32 %v1726, %v1766
        %v1799 = vadd.f32 %v1727, %v1767
        %v1800 = vadd.f32 %v1728, %v1768
        %v1801 = vadd.f32 %v1729, %v1769
        %v1802 = vadd.f32 %v1730, %v1770
        %v1803 = vadd.f32 %v1731, %v1771
        %v1804 = vadd.f32 %v1732, %v1772
        %v1805 = vadd.f32 %v1733, %v1773
        %v1806 = vadd.f32 %v1734, %v1774
        %1807 = vset.pattern.permute.xlu0 2
        %1808 = vperm.xlu0 %1807, %v1088
        %v1809 = vpop.permute.xlu0 %1808
        %1811 = vset.pattern.permute.xlu0 2
        %1812 = vperm.xlu0 %1811, %v1089
        %v1813 = vpop.permute.xlu0 %1812
        %v1815 = vmul.f32 %v1809, %v1605
        %v1816 = vmul.f32 %v1809, %v1606
        %v1817 = vmul.f32 %v1809, %v1607
        %v1818 = vmul.f32 %v1809, %v1608
        %v1819 = vmul.f32 %v1809, %v1609
        %v1820 = vmul.f32 %v1809, %v1610
        %v1821 = vmul.f32 %v1809, %v1611
        %v1822 = vmul.f32 %v1809, %v1612
        %v1823 = vmul.f32 %v1809, %v1613
        %v1824 = vmul.f32 %v1809, %v1614
        %v1825 = vmul.f32 %v1809, %v1615
        %v1826 = vmul.f32 %v1809, %v1616
        %v1827 = vmul.f32 %v1809, %v1617
        %v1828 = vmul.f32 %v1809, %v1618
        %v1829 = vmul.f32 %v1809, %v1648
        %v1830 = vmul.f32 %v1813, %v1621
        %v1831 = vmul.f32 %v1813, %v1622
        %v1832 = vmul.f32 %v1813, %v1623
        %v1833 = vmul.f32 %v1813, %v1624
        %v1834 = vmul.f32 %v1813, %v1625
        %v1835 = vmul.f32 %v1813, %v1626
        %v1836 = vmul.f32 %v1813, %v1627
        %v1837 = vmul.f32 %v1813, %v1628
        %v1838 = vmul.f32 %v1813, %v1629
        %v1839 = vmul.f32 %v1813, %v1630
        %v1840 = vmul.f32 %v1813, %v1631
        %v1841 = vmul.f32 %v1813, %v1632
        %v1842 = vmul.f32 %v1813, %v1633
        %v1843 = vmul.f32 %v1813, %v1634
        %v1844 = vmul.f32 %v1813, %v1653
        %v1845 = vadd.f32 %v1775, %v1815
        %v1846 = vadd.f32 %v1776, %v1816
        %v1847 = vadd.f32 %v1777, %v1817
        %v1848 = vadd.f32 %v1778, %v1818
        %v1849 = vadd.f32 %v1779, %v1819
        %v1850 = vadd.f32 %v1780, %v1820
        %v1851 = vadd.f32 %v1781, %v1821
        %v1852 = vadd.f32 %v1782, %v1822
        %v1853 = vadd.f32 %v1783, %v1823
        %v1854 = vadd.f32 %v1784, %v1824
        %v1855 = vadd.f32 %v1785, %v1825
        %v1856 = vadd.f32 %v1786, %v1826
        %v1857 = vadd.f32 %v1787, %v1827
        %v1858 = vadd.f32 %v1788, %v1828
        %v1859 = vadd.f32 %v1789, %v1829
        %v1860 = vadd.f32 %v1790, %v1829
        %v1861 = vadd.f32 %v1791, %v1830
        %v1862 = vadd.f32 %v1792, %v1831
        %v1863 = vadd.f32 %v1793, %v1832
        %v1864 = vadd.f32 %v1794, %v1833
        %v1865 = vadd.f32 %v1795, %v1834
        %v1866 = vadd.f32 %v1796, %v1835
        %v1867 = vadd.f32 %v1797, %v1836
        %v1868 = vadd.f32 %v1798, %v1837
        %v1869 = vadd.f32 %v1799, %v1838
        %v1870 = vadd.f32 %v1800, %v1839
        %v1871 = vadd.f32 %v1801, %v1840
        %v1872 = vadd.f32 %v1802, %v1841
        %v1873 = vadd.f32 %v1803, %v1842
        %v1874 = vadd.f32 %v1804, %v1843
        %v1875 = vadd.f32 %v1805, %v1844
        %v1876 = vadd.f32 %v1806, %v1844
        %v1877 = vmul.f32 %v1845, 0.5
        %v1878 = vmul.f32 %v1846, 0.5
        %v1879 = vmul.f32 %v1847, 0.5
        %v1880 = vmul.f32 %v1848, 0.5
        %v1881 = vmul.f32 %v1849, 0.5
        %v1882 = vmul.f32 %v1850, 0.5
        %v1883 = vmul.f32 %v1851, 0.5
        %v1884 = vmul.f32 %v1852, 0.5
        %v1885 = vmul.f32 %v1853, 0.5
        %v1886 = vmul.f32 %v1854, 0.5
        %v1887 = vmul.f32 %v1855, 0.5
        %v1888 = vmul.f32 %v1856, 0.5
        %v1889 = vmul.f32 %v1857, 0.5
        %v1890 = vmul.f32 %v1858, 0.5
        %v1891 = vmul.f32 %v1859, 0.5
        %v1892 = vmul.f32 %v1860, 0.5
        %v1893 = vmul.f32 %v1861, 0.5
        %v1894 = vmul.f32 %v1862, 0.5
        %v1895 = vmul.f32 %v1863, 0.5
        %v1896 = vmul.f32 %v1864, 0.5
        %v1897 = vmul.f32 %v1865, 0.5
        %v1898 = vmul.f32 %v1866, 0.5
        %v1899 = vmul.f32 %v1867, 0.5
        %v1900 = vmul.f32 %v1868, 0.5
        %v1901 = vmul.f32 %v1869, 0.5
        %v1902 = vmul.f32 %v1870, 0.5
        %v1903 = vmul.f32 %v1871, 0.5
        %v1904 = vmul.f32 %v1872, 0.5
        %v1905 = vmul.f32 %v1873, 0.5
        %v1906 = vmul.f32 %v1874, 0.5
        %v1907 = vmul.f32 %v1875, 0.5
        %v1908 = vmul.f32 %v1876, 0.5
        %v1909 = vtanh.pop %v1877
        %v1910 = vtanh.pop %v1878
        %v1911 = vtanh.pop %v1879
        %v1912 = vtanh.pop %v1880
        %v1913 = vtanh.pop %v1881
        %v1914 = vtanh.pop %v1882
        %v1915 = vtanh.pop %v1883
        %v1916 = vtanh.pop %v1884
        %v1917 = vtanh.pop %v1885
        %v1918 = vtanh.pop %v1886
        %v1919 = vtanh.pop %v1887
        %v1920 = vtanh.pop %v1888
        %v1921 = vtanh.pop %v1889
        %v1922 = vtanh.pop %v1890
        %v1923 = vtanh.pop %v1891
        %v1924 = vtanh.pop %v1892
        %v1925 = vtanh.pop %v1893
        %v1926 = vtanh.pop %v1894
        %v1927 = vtanh.pop %v1895
        %v1928 = vtanh.pop %v1896
        %v1929 = vtanh.pop %v1897
        %v1930 = vtanh.pop %v1898
        %v1931 = vtanh.pop %v1899
        %v1932 = vtanh.pop %v1900
        %v1933 = vtanh.pop %v1901
        %v1934 = vtanh.pop %v1902
        %v1935 = vtanh.pop %v1903
        %v1936 = vtanh.pop %v1904
        %v1937 = vtanh.pop %v1905
        %v1938 = vtanh.pop %v1906
        %v1939 = vtanh.pop %v1907
        %v1940 = vtanh.pop %v1908
        %v1941 = vadd.f32 %v1909, 1.0
        %v1942 = vadd.f32 %v1910, 1.0
        %v1943 = vadd.f32 %v1911, 1.0
        %v1944 = vadd.f32 %v1912, 1.0
        %v1945 = vadd.f32 %v1913, 1.0
        %v1946 = vadd.f32 %v1914, 1.0
        %v1947 = vadd.f32 %v1915, 1.0
        %v1948 = vadd.f32 %v1916, 1.0
        %v1949 = vadd.f32 %v1917, 1.0
        %v1950 = vadd.f32 %v1918, 1.0
        %v1951 = vadd.f32 %v1919, 1.0
        %v1952 = vadd.f32 %v1920, 1.0
        %v1953 = vadd.f32 %v1921, 1.0
        %v1954 = vadd.f32 %v1922, 1.0
        %v1955 = vadd.f32 %v1923, 1.0
        %v1956 = vadd.f32 %v1924, 1.0
        %v1957 = vadd.f32 %v1925, 1.0
        %v1958 = vadd.f32 %v1926, 1.0
        %v1959 = vadd.f32 %v1927, 1.0
        %v1960 = vadd.f32 %v1928, 1.0
        %v1961 = vadd.f32 %v1929, 1.0
        %v1962 = vadd.f32 %v1930, 1.0
        %v1963 = vadd.f32 %v1931, 1.0
        %v1964 = vadd.f32 %v1932, 1.0
        %v1965 = vadd.f32 %v1933, 1.0
        %v1966 = vadd.f32 %v1934, 1.0
        %v1967 = vadd.f32 %v1935, 1.0
        %v1968 = vadd.f32 %v1936, 1.0
        %v1969 = vadd.f32 %v1937, 1.0
        %v1970 = vadd.f32 %v1938, 1.0
        %v1971 = vadd.f32 %v1939, 1.0
        %v1972 = vadd.f32 %v1940, 1.0
        %v1973 = vmul.f32 %v1941, 0.5
        %v1974 = vmul.f32 %v1942, 0.5
        %v1975 = vmul.f32 %v1943, 0.5
        %v1976 = vmul.f32 %v1944, 0.5
        %v1977 = vmul.f32 %v1945, 0.5
        %v1978 = vmul.f32 %v1946, 0.5
        %v1979 = vmul.f32 %v1947, 0.5
        %v1980 = vmul.f32 %v1948, 0.5
        %v1981 = vmul.f32 %v1949, 0.5
        %v1982 = vmul.f32 %v1950, 0.5
        %v1983 = vmul.f32 %v1951, 0.5
        %v1984 = vmul.f32 %v1952, 0.5
        %v1985 = vmul.f32 %v1953, 0.5
        %v1986 = vmul.f32 %v1954, 0.5
        %v1987 = vmul.f32 %v1955, 0.5
        %v1988 = vmul.f32 %v1956, 0.5
        %v1989 = vmul.f32 %v1957, 0.5
        %v1990 = vmul.f32 %v1958, 0.5
        %v1991 = vmul.f32 %v1959, 0.5
        %v1992 = vmul.f32 %v1960, 0.5
        %v1993 = vmul.f32 %v1961, 0.5
        %v1994 = vmul.f32 %v1962, 0.5
        %v1995 = vmul.f32 %v1963, 0.5
        %v1996 = vmul.f32 %v1964, 0.5
        %v1997 = vmul.f32 %v1965, 0.5
        %v1998 = vmul.f32 %v1966, 0.5
        %v1999 = vmul.f32 %v1967, 0.5
        %v2000 = vmul.f32 %v1968, 0.5
        %v2001 = vmul.f32 %v1969, 0.5
        %v2002 = vmul.f32 %v1970, 0.5
        %v2003 = vmul.f32 %v1971, 0.5
        %v2004 = vmul.f32 %v1972, 0.5
        %v2005 = vmul.f32 %v1845, %v1973
        %v2006 = vmul.f32 %v1846, %v1974
        %v2007 = vmul.f32 %v1847, %v1975
        %v2008 = vmul.f32 %v1848, %v1976
        %v2009 = vmul.f32 %v1849, %v1977
        %v2010 = vmul.f32 %v1850, %v1978
        %v2011 = vmul.f32 %v1851, %v1979
        %v2012 = vmul.f32 %v1852, %v1980
        %v2013 = vmul.f32 %v1853, %v1981
        %v2014 = vmul.f32 %v1854, %v1982
        %v2015 = vmul.f32 %v1855, %v1983
        %v2016 = vmul.f32 %v1856, %v1984
        %v2017 = vmul.f32 %v1857, %v1985
        %v2018 = vmul.f32 %v1858, %v1986
        %v2019 = vmul.f32 %v1859, %v1987
        %v2020 = vmul.f32 %v1860, %v1988
        %v2021 = vmul.f32 %v1861, %v1989
        %v2022 = vmul.f32 %v1862, %v1990
        %v2023 = vmul.f32 %v1863, %v1991
        %v2024 = vmul.f32 %v1864, %v1992
        %v2025 = vmul.f32 %v1865, %v1993
        %v2026 = vmul.f32 %v1866, %v1994
        %v2027 = vmul.f32 %v1867, %v1995
        %v2028 = vmul.f32 %v1868, %v1996
        %v2029 = vmul.f32 %v1869, %v1997
        %v2030 = vmul.f32 %v1870, %v1998
        %v2031 = vmul.f32 %v1871, %v1999
        %v2032 = vmul.f32 %v1872, %v2000
        %v2033 = vmul.f32 %v1873, %v2001
        %v2034 = vmul.f32 %v1874, %v2002
        %v2035 = vmul.f32 %v1875, %v2003
        %v2036 = vmul.f32 %v1876, %v2004
        %v2037 = vpack.c.bf16 %v1093, %v1092
        %v2038 = vpack.c.bf16 %v1095, %v1094
        %v2039 = vpack.c.bf16 %v2021, %v2005
        %v2040 = vpack.c.bf16 %v2022, %v2006
        %v2041 = vpack.c.bf16 %v2023, %v2007
        %v2042 = vpack.c.bf16 %v2024, %v2008
        %v2043 = vpack.c.bf16 %v2025, %v2009
        %v2044 = vpack.c.bf16 %v2026, %v2010
        %v2045 = vpack.c.bf16 %v2027, %v2011
        %v2046 = vpack.c.bf16 %v2028, %v2012
        %v2047 = vpack.c.bf16 %v2029, %v2013
        %v2048 = vpack.c.bf16 %v2030, %v2014
        %v2049 = vpack.c.bf16 %v2031, %v2015
        %v2050 = vpack.c.bf16 %v2032, %v2016
        %v2051 = vpack.c.bf16 %v2033, %v2017
        %v2052 = vpack.c.bf16 %v2034, %v2018
        %v2053 = vpack.c.bf16 %v2035, %v2019
        %v2054 = vpack.c.bf16 %v2036, %v2020
        %2056 = vset.pattern.permute.xlu0 0
        %2057 = vperm.xlu0 %2056, %v1096
        %v2058 = vpop.permute.xlu0 %2057
        %2061 = vset.pattern.permute.xlu0 0
        %2062 = vperm.xlu0 %2061, %v1097
        %v2063 = vpop.permute.xlu0 %2062
        %2066 = vset.pattern.permute.xlu0 0
        %2067 = vperm.xlu0 %2066, %v1098
        %v2068 = vpop.permute.xlu0 %2067
        %2071 = vset.pattern.permute.xlu0 0
        %2072 = vperm.xlu0 %2071, %v1099
        %v2073 = vpop.permute.xlu0 %2072
        %v2076 = vsel %vm1127, %v2037, 0
        %v2079 = vsel %vm1127, %v2038, 0
        %2081 = vmatprep.subr.bf16.mxu0 %v2040
        %2082 = vmatpush1.bf16.msra.mxu0 %v2039
        %2083 = vmatprep.subr.bf16.mxu0 0
        %2084 = vmatpush1.bf16.msra.mxu0 0
        %2085 = vmatprep.subr.bf16.mxu0 0
        %2086 = vmatpush1.bf16.msra.mxu0 0
        %2087 = vmatprep.subr.bf16.mxu0 0
        %2088 = vmatpush1.bf16.msra.mxu0 0
        %2089 = vmatprep.subr.bf16.mxu0 0
        %2090 = vmatpush1.bf16.msra.mxu0 0
        %2091 = vmatprep.subr.bf16.mxu0 0
        %2092 = vmatpush1.bf16.msra.mxu0 0
        %2093 = vmatprep.subr.bf16.mxu0 0
        %2094 = vmatpush1.bf16.msra.mxu0 0
        %2095 = vmatprep.subr.bf16.mxu0 0
        %2096 = vmatpush1.bf16.msra.mxu0 0
        %2097 = vmatprep.subr.bf16.mxu0 0
        %2098 = vmatpush1.bf16.msra.mxu0 0
        %2099 = vmatprep.subr.bf16.mxu0 0
        %2100 = vmatpush1.bf16.msra.mxu0 0
        %2101 = vmatprep.subr.bf16.mxu0 0
        %2102 = vmatpush1.bf16.msra.mxu0 0
        %2103 = vmatprep.subr.bf16.mxu0 0
        %2104 = vmatpush1.bf16.msra.mxu0 0
        %2105 = vmatprep.subr.bf16.mxu0 0
        %2106 = vmatpush1.bf16.msra.mxu0 0
        %2107 = vmatprep.subr.bf16.mxu0 0
        %2108 = vmatpush1.bf16.msra.mxu0 0
        %2109 = vmatprep.subr.bf16.mxu0 0
        %2110 = vmatpush1.bf16.msra.mxu0 0
        %2111 = vmatprep.subr.bf16.mxu0 0
        %2112 = vmatpush1.bf16.msra.mxu0 0
        %2113 = vmatprep.mubr.bf16.mxu0 0
        %2114 = vmatmul.mubr.bf16.gmra.mrb[0].mxu0 %v2076
        %v2115 = vpop.f32.mrb[0].mxu0
        %v2116 = vadd.f32 %v2058, %v2115
        %v2117 = vpop.f32.mrb[0].mxu0
        %v2118 = vadd.f32 %v2058, %v2117
        %v2119 = vpop.f32.mrb[0].mxu0
        %v2120 = vadd.f32 %v2063, %v2119
        %v2121 = vpop.f32.mrb[0].mxu0
        %v2122 = vadd.f32 %v2063, %v2121
        %2123 = vmatprep.mubr.bf16.mxu0 0
        %2124 = vmatmul.mubr.bf16.gmra.mrb[0].mxu0 %v2079
        %v2125 = vpop.f32.mrb[0].mxu0
        %v2126 = vadd.f32 %v2068, %v2125
        %v2127 = vpop.f32.mrb[0].mxu0
        %v2128 = vadd.f32 %v2068, %v2127
        %v2129 = vpop.f32.mrb[0].mxu0
        %v2130 = vadd.f32 %v2073, %v2129
        %v2131 = vpop.f32.mrb[0].mxu0
        %v2132 = vadd.f32 %v2073, %v2131
        %2133 = vdwg.mxu0
        %2134 = vmatprep.subr.bf16.mxu0 %v2042
        %2135 = vmatpush1.bf16.msra.mxu0 %v2041
        %2136 = vmatprep.subr.bf16.mxu0 0
        %2137 = vmatpush1.bf16.msra.mxu0 0
        %2138 = vmatprep.subr.bf16.mxu0 0
        %2139 = vmatpush1.bf16.msra.mxu0 0
        %2140 = vmatprep.subr.bf16.mxu0 0
        %2141 = vmatpush1.bf16.msra.mxu0 0
        %2142 = vmatprep.subr.bf16.mxu0 0
        %2143 = vmatpush1.bf16.msra.mxu0 0
        %2144 = vmatprep.subr.bf16.mxu0 0
        %2145 = vmatpush1.bf16.msra.mxu0 0
        %2146 = vmatprep.subr.bf16.mxu0 0
        %2147 = vmatpush1.bf16.msra.mxu0 0
        %2148 = vmatprep.subr.bf16.mxu0 0
        %2149 = vmatpush1.bf16.msra.mxu0 0
        %2150 = vmatprep.subr.bf16.mxu0 0
        %2151 = vmatpush1.bf16.msra.mxu0 0
        %2152 = vmatprep.subr.bf16.mxu0 0
        %2153 = vmatpush1.bf16.msra.mxu0 0
        %2154 = vmatprep.subr.bf16.mxu0 0
        %2155 = vmatpush1.bf16.msra.mxu0 0
        %2156 = vmatprep.subr.bf16.mxu0 0
        %2157 = vmatpush1.bf16.msra.mxu0 0
        %2158 = vmatprep.subr.bf16.mxu0 0
        %2159 = vmatpush1.bf16.msra.mxu0 0
        %2160 = vmatprep.subr.bf16.mxu0 0
        %2161 = vmatpush1.bf16.msra.mxu0 0
        %2162 = vmatprep.subr.bf16.mxu0 0
        %2163 = vmatpush1.bf16.msra.mxu0 0
        %2164 = vmatprep.subr.bf16.mxu0 0
        %2165 = vmatpush1.bf16.msra.mxu0 0
        %2166 = vmatprep.mubr.bf16.mxu0 0
        %2167 = vmatmul.mubr.bf16.gmra.mrb[0].mxu0 %v2076
        %v2168 = vpop.f32.mrb[0].mxu0
        %v2169 = vadd.f32 %v2058, %v2168
        %v2170 = vpop.f32.mrb[0].mxu0
        %v2171 = vadd.f32 %v2058, %v2170
        %v2172 = vpop.f32.mrb[0].mxu0
        %v2173 = vadd.f32 %v2063, %v2172
        %v2174 = vpop.f32.mrb[0].mxu0
        %v2175 = vadd.f32 %v2063, %v2174
        %2176 = vmatprep.mubr.bf16.mxu0 0
        %2177 = vmatmul.mubr.bf16.gmra.mrb[0].mxu0 %v2079
        %v2178 = vpop.f32.mrb[0].mxu0
        %v2179 = vadd.f32 %v2068, %v2178
        %v2180 = vpop.f32.mrb[0].mxu0
        %v2181 = vadd.f32 %v2068, %v2180
        %v2182 = vpop.f32.mrb[0].mxu0
        %v2183 = vadd.f32 %v2073, %v2182
        %v2184 = vpop.f32.mrb[0].mxu0
        %v2185 = vadd.f32 %v2073, %v2184
        %2186 = vdwg.mxu0
        %2187 = vmatprep.subr.bf16.mxu0 %v2044
        %2188 = vmatpush1.bf16.msra.mxu0 %v2043
        %2189 = vmatprep.subr.bf16.mxu0 0
        %2190 = vmatpush1.bf16.msra.mxu0 0
        %2191 = vmatprep.subr.bf16.mxu0 0
        %2192 = vmatpush1.bf16.msra.mxu0 0
        %2193 = vmatprep.subr.bf16.mxu0 0
        %2194 = vmatpush1.bf16.msra.mxu0 0
        %2195 = vmatprep.subr.bf16.mxu0 0
        %2196 = vmatpush1.bf16.msra.mxu0 0
        %2197 = vmatprep.subr.bf16.mxu0 0
        %2198 = vmatpush1.bf16.msra.mxu0 0
        %2199 = vmatprep.subr.bf16.mxu0 0
        %2200 = vmatpush1.bf16.msra.mxu0 0
        %2201 = vmatprep.subr.bf16.mxu0 0
        %2202 = vmatpush1.bf16.msra.mxu0 0
        %2203 = vmatprep.subr.bf16.mxu0 0
        %2204 = vmatpush1.bf16.msra.mxu0 0
        %2205 = vmatprep.subr.bf16.mxu0 0
        %2206 = vmatpush1.bf16.msra.mxu0 0
        %2207 = vmatprep.subr.bf16.mxu0 0
        %2208 = vmatpush1.bf16.msra.mxu0 0
        %2209 = vmatprep.subr.bf16.mxu0 0
        %2210 = vmatpush1.bf16.msra.mxu0 0
        %2211 = vmatprep.subr.bf16.mxu0 0
        %2212 = vmatpush1.bf16.msra.mxu0 0
        %2213 = vmatprep.subr.bf16.mxu0 0
        %2214 = vmatpush1.bf16.msra.mxu0 0
        %2215 = vmatprep.subr.bf16.mxu0 0
        %2216 = vmatpush1.bf16.msra.mxu0 0
        %2217 = vmatprep.subr.bf16.mxu0 0
        %2218 = vmatpush1.bf16.msra.mxu0 0
        %2219 = vmatprep.mubr.bf16.mxu0 0
        %2220 = vmatmul.mubr.bf16.gmra.mrb[0].mxu0 %v2076
        %v2221 = vpop.f32.mrb[0].mxu0
        %v2222 = vadd.f32 %v2058, %v2221
        %v2223 = vpop.f32.mrb[0].mxu0
        %v2224 = vadd.f32 %v2058, %v2223
        %v2225 = vpop.f32.mrb[0].mxu0
        %v2226 = vadd.f32 %v2063, %v2225
        %v2227 = vpop.f32.mrb[0].mxu0
        %v2228 = vadd.f32 %v2063, %v2227
        %2229 = vmatprep.mubr.bf16.mxu0 0
        %2230 = vmatmul.mubr.bf16.gmra.mrb[0].mxu0 %v2079
        %v2231 = vpop.f32.mrb[0].mxu0
        %v2232 = vadd.f32 %v2068, %v2231
        %v2233 = vpop.f32.mrb[0].mxu0
        %v2234 = vadd.f32 %v2068, %v2233
        %v2235 = vpop.f32.mrb[0].mxu0
        %v2236 = vadd.f32 %v2073, %v2235
        %v2237 = vpop.f32.mrb[0].mxu0
        %v2238 = vadd.f32 %v2073, %v2237
        %2239 = vdwg.mxu0
        %2240 = vmatprep.subr.bf16.mxu0 %v2046
        %2241 = vmatpush1.bf16.msra.mxu0 %v2045
        %2242 = vmatprep.subr.bf16.mxu0 0
        %2243 = vmatpush1.bf16.msra.mxu0 0
        %2244 = vmatprep.subr.bf16.mxu0 0
        %2245 = vmatpush1.bf16.msra.mxu0 0
        %2246 = vmatprep.subr.bf16.mxu0 0
        %2247 = vmatpush1.bf16.msra.mxu0 0
        %2248 = vmatprep.subr.bf16.mxu0 0
        %2249 = vmatpush1.bf16.msra.mxu0 0
        %2250 = vmatprep.subr.bf16.mxu0 0
        %2251 = vmatpush1.bf16.msra.mxu0 0
        %2252 = vmatprep.subr.bf16.mxu0 0
        %2253 = vmatpush1.bf16.msra.mxu0 0
        %2254 = vmatprep.subr.bf16.mxu0 0
        %2255 = vmatpush1.bf16.msra.mxu0 0
        %2256 = vmatprep.subr.bf16.mxu0 0
        %2257 = vmatpush1.bf16.msra.mxu0 0
        %2258 = vmatprep.subr.bf16.mxu0 0
        %2259 = vmatpush1.bf16.msra.mxu0 0
        %2260 = vmatprep.subr.bf16.mxu0 0
        %2261 = vmatpush1.bf16.msra.mxu0 0
        %2262 = vmatprep.subr.bf16.mxu0 0
        %2263 = vmatpush1.bf16.msra.mxu0 0
        %2264 = vmatprep.subr.bf16.mxu0 0
        %2265 = vmatpush1.bf16.msra.mxu0 0
        %2266 = vmatprep.subr.bf16.mxu0 0
        %2267 = vmatpush1.bf16.msra.mxu0 0
        %2268 = vmatprep.subr.bf16.mxu0 0
        %2269 = vmatpush1.bf16.msra.mxu0 0
        %2270 = vmatprep.subr.bf16.mxu0 0
        %2271 = vmatpush1.bf16.msra.mxu0 0
        %2272 = vmatprep.mubr.bf16.mxu0 0
        %2273 = vmatmul.mubr.bf16.gmra.mrb[0].mxu0 %v2076
        %v2274 = vpop.f32.mrb[0].mxu0
        %v2275 = vadd.f32 %v2058, %v2274
        %v2276 = vpop.f32.mrb[0].mxu0
        %v2277 = vadd.f32 %v2058, %v2276
        %v2278 = vpop.f32.mrb[0].mxu0
        %v2279 = vadd.f32 %v2063, %v2278
        %v2280 = vpop.f32.mrb[0].mxu0
        %v2281 = vadd.f32 %v2063, %v2280
        %2282 = vmatprep.mubr.bf16.mxu0 0
        %2283 = vmatmul.mubr.bf16.gmra.mrb[0].mxu0 %v2079
        %v2284 = vpop.f32.mrb[0].mxu0
        %v2285 = vadd.f32 %v2068, %v2284
        %v2286 = vpop.f32.mrb[0].mxu0
        %v2287 = vadd.f32 %v2068, %v2286
        %v2288 = vpop.f32.mrb[0].mxu0
        %v2289 = vadd.f32 %v2073, %v2288
        %v2290 = vpop.f32.mrb[0].mxu0
        %v2291 = vadd.f32 %v2073, %v2290
        %2292 = vdwg.mxu0
        %2293 = vmatprep.subr.bf16.mxu0 %v2048
        %2294 = vmatpush1.bf16.msra.mxu0 %v2047
        %2295 = vmatprep.subr.bf16.mxu0 0
        %2296 = vmatpush1.bf16.msra.mxu0 0
        %2297 = vmatprep.subr.bf16.mxu0 0
        %2298 = vmatpush1.bf16.msra.mxu0 0
        %2299 = vmatprep.subr.bf16.mxu0 0
        %2300 = vmatpush1.bf16.msra.mxu0 0
        %2301 = vmatprep.subr.bf16.mxu0 0
        %2302 = vmatpush1.bf16.msra.mxu0 0
        %2303 = vmatprep.subr.bf16.mxu0 0
        %2304 = vmatpush1.bf16.msra.mxu0 0
        %2305 = vmatprep.subr.bf16.mxu0 0
        %2306 = vmatpush1.bf16.msra.mxu0 0
        %2307 = vmatprep.subr.bf16.mxu0 0
        %2308 = vmatpush1.bf16.msra.mxu0 0
        %2309 = vmatprep.subr.bf16.mxu0 0
        %2310 = vmatpush1.bf16.msra.mxu0 0
        %2311 = vmatprep.subr.bf16.mxu0 0
        %2312 = vmatpush1.bf16.msra.mxu0 0
        %2313 = vmatprep.subr.bf16.mxu0 0
        %2314 = vmatpush1.bf16.msra.mxu0 0
        %2315 = vmatprep.subr.bf16.mxu0 0
        %2316 = vmatpush1.bf16.msra.mxu0 0
        %2317 = vmatprep.subr.bf16.mxu0 0
        %2318 = vmatpush1.bf16.msra.mxu0 0
        %2319 = vmatprep.subr.bf16.mxu0 0
        %2320 = vmatpush1.bf16.msra.mxu0 0
        %2321 = vmatprep.subr.bf16.mxu0 0
        %2322 = vmatpush1.bf16.msra.mxu0 0
        %2323 = vmatprep.subr.bf16.mxu0 0
        %2324 = vmatpush1.bf16.msra.mxu0 0
        %2325 = vmatprep.mubr.bf16.mxu0 0
        %2326 = vmatmul.mubr.bf16.gmra.mrb[0].mxu0 %v2076
        %v2327 = vpop.f32.mrb[0].mxu0
        %v2328 = vadd.f32 %v2058, %v2327
        %v2329 = vpop.f32.mrb[0].mxu0
        %v2330 = vadd.f32 %v2058, %v2329
        %v2331 = vpop.f32.mrb[0].mxu0
        %v2332 = vadd.f32 %v2063, %v2331
        %v2333 = vpop.f32.mrb[0].mxu0
        %v2334 = vadd.f32 %v2063, %v2333
        %2335 = vmatprep.mubr.bf16.mxu0 0
        %2336 = vmatmul.mubr.bf16.gmra.mrb[0].mxu0 %v2079
        %v2337 = vpop.f32.mrb[0].mxu0
        %v2338 = vadd.f32 %v2068, %v2337
        %v2339 = vpop.f32.mrb[0].mxu0
        %v2340 = vadd.f32 %v2068, %v2339
        %v2341 = vpop.f32.mrb[0].mxu0
        %v2342 = vadd.f32 %v2073, %v2341
        %v2343 = vpop.f32.mrb[0].mxu0
        %v2344 = vadd.f32 %v2073, %v2343
        %2345 = vdwg.mxu0
        %2346 = vmatprep.subr.bf16.mxu0 %v2050
        %2347 = vmatpush1.bf16.msra.mxu0 %v2049
        %2348 = vmatprep.subr.bf16.mxu0 0
        %2349 = vmatpush1.bf16.msra.mxu0 0
        %2350 = vmatprep.subr.bf16.mxu0 0
        %2351 = vmatpush1.bf16.msra.mxu0 0
        %2352 = vmatprep.subr.bf16.mxu0 0
        %2353 = vmatpush1.bf16.msra.mxu0 0
        %2354 = vmatprep.subr.bf16.mxu0 0
        %2355 = vmatpush1.bf16.msra.mxu0 0
        %2356 = vmatprep.subr.bf16.mxu0 0
        %2357 = vmatpush1.bf16.msra.mxu0 0
        %2358 = vmatprep.subr.bf16.mxu0 0
        %2359 = vmatpush1.bf16.msra.mxu0 0
        %2360 = vmatprep.subr.bf16.mxu0 0
        %2361 = vmatpush1.bf16.msra.mxu0 0
        %2362 = vmatprep.subr.bf16.mxu0 0
        %2363 = vmatpush1.bf16.msra.mxu0 0
        %2364 = vmatprep.subr.bf16.mxu0 0
        %2365 = vmatpush1.bf16.msra.mxu0 0
        %2366 = vmatprep.subr.bf16.mxu0 0
        %2367 = vmatpush1.bf16.msra.mxu0 0
        %2368 = vmatprep.subr.bf16.mxu0 0
        %2369 = vmatpush1.bf16.msra.mxu0 0
        %2370 = vmatprep.subr.bf16.mxu0 0
        %2371 = vmatpush1.bf16.msra.mxu0 0
        %2372 = vmatprep.subr.bf16.mxu0 0
        %2373 = vmatpush1.bf16.msra.mxu0 0
        %2374 = vmatprep.subr.bf16.mxu0 0
        %2375 = vmatpush1.bf16.msra.mxu0 0
        %2376 = vmatprep.subr.bf16.mxu0 0
        %2377 = vmatpush1.bf16.msra.mxu0 0
        %2378 = vmatprep.mubr.bf16.mxu0 0
        %2379 = vmatmul.mubr.bf16.gmra.mrb[0].mxu0 %v2076
        %v2380 = vpop.f32.mrb[0].mxu0
        %v2381 = vadd.f32 %v2058, %v2380
        %v2382 = vpop.f32.mrb[0].mxu0
        %v2383 = vadd.f32 %v2058, %v2382
        %v2384 = vpop.f32.mrb[0].mxu0
        %v2385 = vadd.f32 %v2063, %v2384
        %v2386 = vpop.f32.mrb[0].mxu0
        %v2387 = vadd.f32 %v2063, %v2386
        %2388 = vmatprep.mubr.bf16.mxu0 0
        %2389 = vmatmul.mubr.bf16.gmra.mrb[0].mxu0 %v2079
        %v2390 = vpop.f32.mrb[0].mxu0
        %v2391 = vadd.f32 %v2068, %v2390
        %v2392 = vpop.f32.mrb[0].mxu0
        %v2393 = vadd.f32 %v2068, %v2392
        %v2394 = vpop.f32.mrb[0].mxu0
        %v2395 = vadd.f32 %v2073, %v2394
        %v2396 = vpop.f32.mrb[0].mxu0
        %v2397 = vadd.f32 %v2073, %v2396
        %2398 = vdwg.mxu0
        %2399 = vmatprep.subr.bf16.mxu0 %v2052
        %2400 = vmatpush1.bf16.msra.mxu0 %v2051
        %2401 = vmatprep.subr.bf16.mxu0 0
        %2402 = vmatpush1.bf16.msra.mxu0 0
        %2403 = vmatprep.subr.bf16.mxu0 0
        %2404 = vmatpush1.bf16.msra.mxu0 0
        %2405 = vmatprep.subr.bf16.mxu0 0
        %2406 = vmatpush1.bf16.msra.mxu0 0
        %2407 = vmatprep.subr.bf16.mxu0 0
        %2408 = vmatpush1.bf16.msra.mxu0 0
        %2409 = vmatprep.subr.bf16.mxu0 0
        %2410 = vmatpush1.bf16.msra.mxu0 0
        %2411 = vmatprep.subr.bf16.mxu0 0
        %2412 = vmatpush1.bf16.msra.mxu0 0
        %2413 = vmatprep.subr.bf16.mxu0 0
        %2414 = vmatpush1.bf16.msra.mxu0 0
        %2415 = vmatprep.subr.bf16.mxu0 0
        %2416 = vmatpush1.bf16.msra.mxu0 0
        %2417 = vmatprep.subr.bf16.mxu0 0
        %2418 = vmatpush1.bf16.msra.mxu0 0
        %2419 = vmatprep.subr.bf16.mxu0 0
        %2420 = vmatpush1.bf16.msra.mxu0 0
        %2421 = vmatprep.subr.bf16.mxu0 0
        %2422 = vmatpush1.bf16.msra.mxu0 0
        %2423 = vmatprep.subr.bf16.mxu0 0
        %2424 = vmatpush1.bf16.msra.mxu0 0
        %2425 = vmatprep.subr.bf16.mxu0 0
        %2426 = vmatpush1.bf16.msra.mxu0 0
        %2427 = vmatprep.subr.bf16.mxu0 0
        %2428 = vmatpush1.bf16.msra.mxu0 0
        %2429 = vmatprep.subr.bf16.mxu0 0
        %2430 = vmatpush1.bf16.msra.mxu0 0
        %2431 = vmatprep.mubr.bf16.mxu0 0
        %2432 = vmatmul.mubr.bf16.gmra.mrb[0].mxu0 %v2076
        %v2433 = vpop.f32.mrb[0].mxu0
        %v2434 = vadd.f32 %v2058, %v2433
        %v2435 = vpop.f32.mrb[0].mxu0
        %v2436 = vadd.f32 %v2058, %v2435
        %v2437 = vpop.f32.mrb[0].mxu0
        %v2438 = vadd.f32 %v2063, %v2437
        %v2439 = vpop.f32.mrb[0].mxu0
        %v2440 = vadd.f32 %v2063, %v2439
        %2441 = vmatprep.mubr.bf16.mxu0 0
        %2442 = vmatmul.mubr.bf16.gmra.mrb[0].mxu0 %v2079
        %v2443 = vpop.f32.mrb[0].mxu0
        %v2444 = vadd.f32 %v2068, %v2443
        %v2445 = vpop.f32.mrb[0].mxu0
        %v2446 = vadd.f32 %v2068, %v2445
        %v2447 = vpop.f32.mrb[0].mxu0
        %v2448 = vadd.f32 %v2073, %v2447
        %v2449 = vpop.f32.mrb[0].mxu0
        %v2450 = vadd.f32 %v2073, %v2449
        %2451 = vdwg.mxu0
        %2452 = vmatprep.subr.bf16.mxu0 %v2054
        %2453 = vmatpush1.bf16.msra.mxu0 %v2053
        %2454 = vmatprep.subr.bf16.mxu0 0
        %2455 = vmatpush1.bf16.msra.mxu0 0
        %2456 = vmatprep.subr.bf16.mxu0 0
        %2457 = vmatpush1.bf16.msra.mxu0 0
        %2458 = vmatprep.subr.bf16.mxu0 0
        %2459 = vmatpush1.bf16.msra.mxu0 0
        %2460 = vmatprep.subr.bf16.mxu0 0
        %2461 = vmatpush1.bf16.msra.mxu0 0
        %2462 = vmatprep.subr.bf16.mxu0 0
        %2463 = vmatpush1.bf16.msra.mxu0 0
        %2464 = vmatprep.subr.bf16.mxu0 0
        %2465 = vmatpush1.bf16.msra.mxu0 0
        %2466 = vmatprep.subr.bf16.mxu0 0
        %2467 = vmatpush1.bf16.msra.mxu0 0
        %2468 = vmatprep.subr.bf16.mxu0 0
        %2469 = vmatpush1.bf16.msra.mxu0 0
        %2470 = vmatprep.subr.bf16.mxu0 0
        %2471 = vmatpush1.bf16.msra.mxu0 0
        %2472 = vmatprep.subr.bf16.mxu0 0
        %2473 = vmatpush1.bf16.msra.mxu0 0
        %2474 = vmatprep.subr.bf16.mxu0 0
        %2475 = vmatpush1.bf16.msra.mxu0 0
        %2476 = vmatprep.subr.bf16.mxu0 0
        %2477 = vmatpush1.bf16.msra.mxu0 0
        %2478 = vmatprep.subr.bf16.mxu0 0
        %2479 = vmatpush1.bf16.msra.mxu0 0
        %2480 = vmatprep.subr.bf16.mxu0 0
        %2481 = vmatpush1.bf16.msra.mxu0 0
        %2482 = vmatprep.subr.bf16.mxu0 0
        %2483 = vmatpush1.bf16.msra.mxu0 0
        %2484 = vmatprep.mubr.bf16.mxu0 0
        %2485 = vmatmul.mubr.bf16.gmra.mrb[0].mxu0 %v2076
        %v2486 = vpop.f32.mrb[0].mxu0
        %v2487 = vadd.f32 %v2058, %v2486
        %v2488 = vpop.f32.mrb[0].mxu0
        %v2489 = vadd.f32 %v2058, %v2488
        %v2490 = vpop.f32.mrb[0].mxu0
        %v2491 = vadd.f32 %v2063, %v2490
        %v2492 = vpop.f32.mrb[0].mxu0
        %v2493 = vadd.f32 %v2063, %v2492
        %2494 = vmatprep.mubr.bf16.mxu0 0
        %2495 = vmatmul.mubr.bf16.gmra.mrb[0].mxu0 %v2079
        %v2496 = vpop.f32.mrb[0].mxu0
        %v2497 = vadd.f32 %v2068, %v2496
        %v2498 = vpop.f32.mrb[0].mxu0
        %v2499 = vadd.f32 %v2068, %v2498
        %v2500 = vpop.f32.mrb[0].mxu0
        %v2501 = vadd.f32 %v2073, %v2500
        %v2502 = vpop.f32.mrb[0].mxu0
        %v2503 = vadd.f32 %v2073, %v2502
        %2504 = vdwg.mxu0
        %v2505 = vmul.f32 %v2116, 0.5
        %v2506 = vmul.f32 %v2118, 0.5
        %v2507 = vmul.f32 %v2169, 0.5
        %v2508 = vmul.f32 %v2171, 0.5
        %v2509 = vmul.f32 %v2222, 0.5
        %v2510 = vmul.f32 %v2224, 0.5
        %v2511 = vmul.f32 %v2275, 0.5
        %v2512 = vmul.f32 %v2277, 0.5
        %v2513 = vmul.f32 %v2328, 0.5
        %v2514 = vmul.f32 %v2330, 0.5
        %v2515 = vmul.f32 %v2381, 0.5
        %v2516 = vmul.f32 %v2383, 0.5
        %v2517 = vmul.f32 %v2434, 0.5
        %v2518 = vmul.f32 %v2436, 0.5
        %v2519 = vmul.f32 %v2487, 0.5
        %v2520 = vmul.f32 %v2489, 0.5
        %v2521 = vmul.f32 %v2120, 0.5
        %v2522 = vmul.f32 %v2122, 0.5
        %v2523 = vmul.f32 %v2173, 0.5
        %v2524 = vmul.f32 %v2175, 0.5
        %v2525 = vmul.f32 %v2226, 0.5
        %v2526 = vmul.f32 %v2228, 0.5
        %v2527 = vmul.f32 %v2279, 0.5
        %v2528 = vmul.f32 %v2281, 0.5
        %v2529 = vmul.f32 %v2332, 0.5
        %v2530 = vmul.f32 %v2334, 0.5
        %v2531 = vmul.f32 %v2385, 0.5
        %v2532 = vmul.f32 %v2387, 0.5
        %v2533 = vmul.f32 %v2438, 0.5
        %v2534 = vmul.f32 %v2440, 0.5
        %v2535 = vmul.f32 %v2491, 0.5
        %v2536 = vmul.f32 %v2493, 0.5
        %v2537 = vmul.f32 %v2126, 0.5
        %v2538 = vmul.f32 %v2128, 0.5
        %v2539 = vmul.f32 %v2179, 0.5
        %v2540 = vmul.f32 %v2181, 0.5
        %v2541 = vmul.f32 %v2232, 0.5
        %v2542 = vmul.f32 %v2234, 0.5
        %v2543 = vmul.f32 %v2285, 0.5
        %v2544 = vmul.f32 %v2287, 0.5
        %v2545 = vmul.f32 %v2338, 0.5
        %v2546 = vmul.f32 %v2340, 0.5
        %v2547 = vmul.f32 %v2391, 0.5
        %v2548 = vmul.f32 %v2393, 0.5
        %v2549 = vmul.f32 %v2444, 0.5
        %v2550 = vmul.f32 %v2446, 0.5
        %v2551 = vmul.f32 %v2497, 0.5
        %v2552 = vmul.f32 %v2499, 0.5
        %v2553 = vmul.f32 %v2130, 0.5
        %v2554 = vmul.f32 %v2132, 0.5
        %v2555 = vmul.f32 %v2183, 0.5
        %v2556 = vmul.f32 %v2185, 0.5
        %v2557 = vmul.f32 %v2236, 0.5
        %v2558 = vmul.f32 %v2238, 0.5
        %v2559 = vmul.f32 %v2289, 0.5
        %v2560 = vmul.f32 %v2291, 0.5
        %v2561 = vmul.f32 %v2342, 0.5
        %v2562 = vmul.f32 %v2344, 0.5
        %v2563 = vmul.f32 %v2395, 0.5
        %v2564 = vmul.f32 %v2397, 0.5
        %v2565 = vmul.f32 %v2448, 0.5
        %v2566 = vmul.f32 %v2450, 0.5
        %v2567 = vmul.f32 %v2501, 0.5
        %v2568 = vmul.f32 %v2503, 0.5
        %v2569 = vtanh.pop %v2505
        %v2570 = vtanh.pop %v2506
        %v2571 = vtanh.pop %v2507
        %v2572 = vtanh.pop %v2508
        %v2573 = vtanh.pop %v2509
        %v2574 = vtanh.pop %v2510
        %v2575 = vtanh.pop %v2511
        %v2576 = vtanh.pop %v2512
        %v2577 = vtanh.pop %v2513
        %v2578 = vtanh.pop %v2514
        %v2579 = vtanh.pop %v2515
        %v2580 = vtanh.pop %v2516
        %v2581 = vtanh.pop %v2517
        %v2582 = vtanh.pop %v2518
        %v2583 = vtanh.pop %v2519
        %v2584 = vtanh.pop %v2520
        %v2585 = vtanh.pop %v2521
        %v2586 = vtanh.pop %v2522
        %v2587 = vtanh.pop %v2523
        %v2588 = vtanh.pop %v2524
        %v2589 = vtanh.pop %v2525
        %v2590 = vtanh.pop %v2526
        %v2591 = vtanh.pop %v2527
        %v2592 = vtanh.pop %v2528
        %v2593 = vtanh.pop %v2529
        %v2594 = vtanh.pop %v2530
        %v2595 = vtanh.pop %v2531
        %v2596 = vtanh.pop %v2532
        %v2597 = vtanh.pop %v2533
        %v2598 = vtanh.pop %v2534
        %v2599 = vtanh.pop %v2535
        %v2600 = vtanh.pop %v2536
        %v2601 = vtanh.pop %v2537
        %v2602 = vtanh.pop %v2538
        %v2603 = vtanh.pop %v2539
        %v2604 = vtanh.pop %v2540
        %v2605 = vtanh.pop %v2541
        %v2606 = vtanh.pop %v2542
        %v2607 = vtanh.pop %v2543
        %v2608 = vtanh.pop %v2544
        %v2609 = vtanh.pop %v2545
        %v2610 = vtanh.pop %v2546
        %v2611 = vtanh.pop %v2547
        %v2612 = vtanh.pop %v2548
        %v2613 = vtanh.pop %v2549
        %v2614 = vtanh.pop %v2550
        %v2615 = vtanh.pop %v2551
        %v2616 = vtanh.pop %v2552
        %v2617 = vtanh.pop %v2553
        %v2618 = vtanh.pop %v2554
        %v2619 = vtanh.pop %v2555
        %v2620 = vtanh.pop %v2556
        %v2621 = vtanh.pop %v2557
        %v2622 = vtanh.pop %v2558
        %v2623 = vtanh.pop %v2559
        %v2624 = vtanh.pop %v2560
        %v2625 = vtanh.pop %v2561
        %v2626 = vtanh.pop %v2562
        %v2627 = vtanh.pop %v2563
        %v2628 = vtanh.pop %v2564
        %v2629 = vtanh.pop %v2565
        %v2630 = vtanh.pop %v2566
        %v2631 = vtanh.pop %v2567
        %v2632 = vtanh.pop %v2568
        %v2633 = vadd.f32 %v2569, 1.0
        %v2634 = vadd.f32 %v2570, 1.0
        %v2635 = vadd.f32 %v2571, 1.0
        %v2636 = vadd.f32 %v2572, 1.0
        %v2637 = vadd.f32 %v2573, 1.0
        %v2638 = vadd.f32 %v2574, 1.0
        %v2639 = vadd.f32 %v2575, 1.0
        %v2640 = vadd.f32 %v2576, 1.0
        %v2641 = vadd.f32 %v2577, 1.0
        %v2642 = vadd.f32 %v2578, 1.0
        %v2643 = vadd.f32 %v2579, 1.0
        %v2644 = vadd.f32 %v2580, 1.0
        %v2645 = vadd.f32 %v2581, 1.0
        %v2646 = vadd.f32 %v2582, 1.0
        %v2647 = vadd.f32 %v2583, 1.0
        %v2648 = vadd.f32 %v2584, 1.0
        %v2649 = vadd.f32 %v2585, 1.0
        %v2650 = vadd.f32 %v2586, 1.0
        %v2651 = vadd.f32 %v2587, 1.0
        %v2652 = vadd.f32 %v2588, 1.0
        %v2653 = vadd.f32 %v2589, 1.0
        %v2654 = vadd.f32 %v2590, 1.0
        %v2655 = vadd.f32 %v2591, 1.0
        %v2656 = vadd.f32 %v2592, 1.0
        %v2657 = vadd.f32 %v2593, 1.0
        %v2658 = vadd.f32 %v2594, 1.0
        %v2659 = vadd.f32 %v2595, 1.0
        %v2660 = vadd.f32 %v2596, 1.0
        %v2661 = vadd.f32 %v2597, 1.0
        %v2662 = vadd.f32 %v2598, 1.0
        %v2663 = vadd.f32 %v2599, 1.0
        %v2664 = vadd.f32 %v2600, 1.0
        %v2665 = vadd.f32 %v2601, 1.0
        %v2666 = vadd.f32 %v2602, 1.0
        %v2667 = vadd.f32 %v2603, 1.0
        %v2668 = vadd.f32 %v2604, 1.0
        %v2669 = vadd.f32 %v2605, 1.0
        %v2670 = vadd.f32 %v2606, 1.0
        %v2671 = vadd.f32 %v2607, 1.0
        %v2672 = vadd.f32 %v2608, 1.0
        %v2673 = vadd.f32 %v2609, 1.0
        %v2674 = vadd.f32 %v2610, 1.0
        %v2675 = vadd.f32 %v2611, 1.0
        %v2676 = vadd.f32 %v2612, 1.0
        %v2677 = vadd.f32 %v2613, 1.0
        %v2678 = vadd.f32 %v2614, 1.0
        %v2679 = vadd.f32 %v2615, 1.0
        %v2680 = vadd.f32 %v2616, 1.0
        %v2681 = vadd.f32 %v2617, 1.0
        %v2682 = vadd.f32 %v2618, 1.0
        %v2683 = vadd.f32 %v2619, 1.0
        %v2684 = vadd.f32 %v2620, 1.0
        %v2685 = vadd.f32 %v2621, 1.0
        %v2686 = vadd.f32 %v2622, 1.0
        %v2687 = vadd.f32 %v2623, 1.0
        %v2688 = vadd.f32 %v2624, 1.0
        %v2689 = vadd.f32 %v2625, 1.0
        %v2690 = vadd.f32 %v2626, 1.0
        %v2691 = vadd.f32 %v2627, 1.0
        %v2692 = vadd.f32 %v2628, 1.0
        %v2693 = vadd.f32 %v2629, 1.0
        %v2694 = vadd.f32 %v2630, 1.0
        %v2695 = vadd.f32 %v2631, 1.0
        %v2696 = vadd.f32 %v2632, 1.0
        %v2697 = vmul.f32 %v2633, 0.5
        %v2698 = vmul.f32 %v2634, 0.5
        %v2699 = vmul.f32 %v2635, 0.5
        %v2700 = vmul.f32 %v2636, 0.5
        %v2701 = vmul.f32 %v2637, 0.5
        %v2702 = vmul.f32 %v2638, 0.5
        %v2703 = vmul.f32 %v2639, 0.5
        %v2704 = vmul.f32 %v2640, 0.5
        %v2705 = vmul.f32 %v2641, 0.5
        %v2706 = vmul.f32 %v2642, 0.5
        %v2707 = vmul.f32 %v2643, 0.5
        %v2708 = vmul.f32 %v2644, 0.5
        %v2709 = vmul.f32 %v2645, 0.5
        %v2710 = vmul.f32 %v2646, 0.5
        %v2711 = vmul.f32 %v2647, 0.5
        %v2712 = vmul.f32 %v2648, 0.5
        %v2713 = vmul.f32 %v2649, 0.5
        %v2714 = vmul.f32 %v2650, 0.5
        %v2715 = vmul.f32 %v2651, 0.5
        %v2716 = vmul.f32 %v2652, 0.5
        %v2717 = vmul.f32 %v2653, 0.5
        %v2718 = vmul.f32 %v2654, 0.5
        %v2719 = vmul.f32 %v2655, 0.5
        %v2720 = vmul.f32 %v2656, 0.5
        %v2721 = vmul.f32 %v2657, 0.5
        %v2722 = vmul.f32 %v2658, 0.5
        %v2723 = vmul.f32 %v2659, 0.5
        %v2724 = vmul.f32 %v2660, 0.5
        %v2725 = vmul.f32 %v2661, 0.5
        %v2726 = vmul.f32 %v2662, 0.5
        %v2727 = vmul.f32 %v2663, 0.5
        %v2728 = vmul.f32 %v2664, 0.5
        %v2729 = vmul.f32 %v2665, 0.5
        %v2730 = vmul.f32 %v2666, 0.5
        %v2731 = vmul.f32 %v2667, 0.5
        %v2732 = vmul.f32 %v2668, 0.5
        %v2733 = vmul.f32 %v2669, 0.5
        %v2734 = vmul.f32 %v2670, 0.5
        %v2735 = vmul.f32 %v2671, 0.5
        %v2736 = vmul.f32 %v2672, 0.5
        %v2737 = vmul.f32 %v2673, 0.5
        %v2738 = vmul.f32 %v2674, 0.5
        %v2739 = vmul.f32 %v2675, 0.5
        %v2740 = vmul.f32 %v2676, 0.5
        %v2741 = vmul.f32 %v2677, 0.5
        %v2742 = vmul.f32 %v2678, 0.5
        %v2743 = vmul.f32 %v2679, 0.5
        %v2744 = vmul.f32 %v2680, 0.5
        %v2745 = vmul.f32 %v2681, 0.5
        %v2746 = vmul.f32 %v2682, 0.5
        %v2747 = vmul.f32 %v2683, 0.5
        %v2748 = vmul.f32 %v2684, 0.5
        %v2749 = vmul.f32 %v2685, 0.5
        %v2750 = vmul.f32 %v2686, 0.5
        %v2751 = vmul.f32 %v2687, 0.5
        %v2752 = vmul.f32 %v2688, 0.5
        %v2753 = vmul.f32 %v2689, 0.5
        %v2754 = vmul.f32 %v2690, 0.5
        %v2755 = vmul.f32 %v2691, 0.5
        %v2756 = vmul.f32 %v2692, 0.5
        %v2757 = vmul.f32 %v2693, 0.5
        %v2758 = vmul.f32 %v2694, 0.5
        %v2759 = vmul.f32 %v2695, 0.5
        %v2760 = vmul.f32 %v2696, 0.5
        %v2761 = vmul.f32 %v2116, %v2697
        %v2762 = vmul.f32 %v2118, %v2698
        %v2763 = vmul.f32 %v2169, %v2699
        %v2764 = vmul.f32 %v2171, %v2700
        %v2765 = vmul.f32 %v2222, %v2701
        %v2766 = vmul.f32 %v2224, %v2702
        %v2767 = vmul.f32 %v2275, %v2703
        %v2768 = vmul.f32 %v2277, %v2704
        %v2769 = vmul.f32 %v2328, %v2705
        %v2770 = vmul.f32 %v2330, %v2706
        %v2771 = vmul.f32 %v2381, %v2707
        %v2772 = vmul.f32 %v2383, %v2708
        %v2773 = vmul.f32 %v2434, %v2709
        %v2774 = vmul.f32 %v2436, %v2710
        %v2775 = vmul.f32 %v2487, %v2711
        %v2776 = vmul.f32 %v2489, %v2712
        %v2777 = vmul.f32 %v2120, %v2713
        %v2778 = vmul.f32 %v2122, %v2714
        %v2779 = vmul.f32 %v2173, %v2715
        %v2780 = vmul.f32 %v2175, %v2716
        %v2781 = vmul.f32 %v2226, %v2717
        %v2782 = vmul.f32 %v2228, %v2718
        %v2783 = vmul.f32 %v2279, %v2719
        %v2784 = vmul.f32 %v2281, %v2720
        %v2785 = vmul.f32 %v2332, %v2721
        %v2786 = vmul.f32 %v2334, %v2722
        %v2787 = vmul.f32 %v2385, %v2723
        %v2788 = vmul.f32 %v2387, %v2724
        %v2789 = vmul.f32 %v2438, %v2725
        %v2790 = vmul.f32 %v2440, %v2726
        %v2791 = vmul.f32 %v2491, %v2727
        %v2792 = vmul.f32 %v2493, %v2728
        %v2793 = vmul.f32 %v2126, %v2729
        %v2794 = vmul.f32 %v2128, %v2730
        %v2795 = vmul.f32 %v2179, %v2731
        %v2796 = vmul.f32 %v2181, %v2732
        %v2797 = vmul.f32 %v2232, %v2733
        %v2798 = vmul.f32 %v2234, %v2734
        %v2799 = vmul.f32 %v2285, %v2735
        %v2800 = vmul.f32 %v2287, %v2736
        %v2801 = vmul.f32 %v2338, %v2737
        %v2802 = vmul.f32 %v2340, %v2738
        %v2803 = vmul.f32 %v2391, %v2739
        %v2804 = vmul.f32 %v2393, %v2740
        %v2805 = vmul.f32 %v2444, %v2741
        %v2806 = vmul.f32 %v2446, %v2742
        %v2807 = vmul.f32 %v2497, %v2743
        %v2808 = vmul.f32 %v2499, %v2744
        %v2809 = vmul.f32 %v2130, %v2745
        %v2810 = vmul.f32 %v2132, %v2746
        %v2811 = vmul.f32 %v2183, %v2747
        %v2812 = vmul.f32 %v2185, %v2748
        %v2813 = vmul.f32 %v2236, %v2749
        %v2814 = vmul.f32 %v2238, %v2750
        %v2815 = vmul.f32 %v2289, %v2751
        %v2816 = vmul.f32 %v2291, %v2752
        %v2817 = vmul.f32 %v2342, %v2753
        %v2818 = vmul.f32 %v2344, %v2754
        %v2819 = vmul.f32 %v2395, %v2755
        %v2820 = vmul.f32 %v2397, %v2756
        %v2821 = vmul.f32 %v2448, %v2757
        %v2822 = vmul.f32 %v2450, %v2758
        %v2823 = vmul.f32 %v2501, %v2759
        %v2824 = vmul.f32 %v2503, %v2760
        %v2825 = vmax.f32 %v2761, %v2762
        %v2826 = vmax.f32 %v2777, %v2778
        %v2827 = vmax.f32 %v2793, %v2794
        %v2828 = vmax.f32 %v2809, %v2810
        %v2829 = vmax.f32 %v2763, %v2764
        %v2830 = vmax.f32 %v2779, %v2780
        %v2831 = vmax.f32 %v2795, %v2796
        %v2832 = vmax.f32 %v2811, %v2812
        %v2833 = vmax.f32 %v2765, %v2766
        %v2834 = vmax.f32 %v2781, %v2782
        %v2835 = vmax.f32 %v2797, %v2798
        %v2836 = vmax.f32 %v2813, %v2814
        %v2837 = vmax.f32 %v2767, %v2768
        %v2838 = vmax.f32 %v2783, %v2784
        %v2839 = vmax.f32 %v2799, %v2800
        %v2840 = vmax.f32 %v2815, %v2816
        %v2841 = vmax.f32 %v2769, %v2770
        %v2842 = vmax.f32 %v2785, %v2786
        %v2843 = vmax.f32 %v2801, %v2802
        %v2844 = vmax.f32 %v2817, %v2818
        %v2845 = vmax.f32 %v2771, %v2772
        %v2846 = vmax.f32 %v2787, %v2788
        %v2847 = vmax.f32 %v2803, %v2804
        %v2848 = vmax.f32 %v2819, %v2820
        %v2849 = vmax.f32 %v2773, %v2774
        %v2850 = vmax.f32 %v2789, %v2790
        %v2851 = vmax.f32 %v2805, %v2806
        %v2852 = vmax.f32 %v2821, %v2822
        %v2853 = vmax.f32 %v2775, %v2776
        %v2854 = vmax.f32 %v2791, %v2792
        %v2855 = vmax.f32 %v2807, %v2808
        %v2856 = vmax.f32 %v2823, %v2824
        %v2857 = vld [vmem:[%s9] sm:$0xff]
        %v2858 = vld [vmem:[%s9 + $0x8] sm:$0xff]
        %v2859 = vld [vmem:[%s9 + $0x10] sm:$0xff]
        %v2860 = vld [vmem:[%s9 + $0x18] sm:$0xff]
        %v2861 = vld [vmem:[%s10] sm:$0xff]
        %v2862 = vld [vmem:[%s10 + $0x8] sm:$0xff]
        %v2863 = vld [vmem:[%s10 + $0x10] sm:$0xff]
        %v2864 = vld [vmem:[%s10 + $0x18] sm:$0xff]
        %v2865 = vld [vmem:[%s11] sm:$0xff]
        %v2866 = vld [vmem:[%s11 + $0x8] sm:$0xff]
        %v2867 = vld [vmem:[%s11 + $0x10] sm:$0xff]
        %v2868 = vld [vmem:[%s11 + $0x18] sm:$0xff]
        %v2869 = vld [vmem:[%s12] sm:$0xff]
        %v2870 = vld [vmem:[%s12 + $0x8] sm:$0xff]
        %v2871 = vld [vmem:[%s12 + $0x10] sm:$0xff]
        %v2872 = vld [vmem:[%s12 + $0x18] sm:$0xff]
        %v2873 = vld [vmem:[%s13] sm:$0xff]
        %v2874 = vld [vmem:[%s13 + $0x8] sm:$0xff]
        %v2875 = vld [vmem:[%s13 + $0x10] sm:$0xff]
        %v2876 = vld [vmem:[%s13 + $0x18] sm:$0xff]
        %v2877 = vld [vmem:[%s14] sm:$0xff]
        %v2878 = vld [vmem:[%s14 + $0x8] sm:$0xff]
        %v2879 = vld [vmem:[%s14 + $0x10] sm:$0xff]
        %v2880 = vld [vmem:[%s14 + $0x18] sm:$0xff]
        %v2881 = vpack.c.bf16 %v2858, %v2857
        %v2882 = vpack.c.bf16 %v2860, %v2859
        %v2883 = vpack.c.bf16 %v2826, %v2825
        %v2884 = vpack.c.bf16 %v2830, %v2829
        %v2885 = vpack.c.bf16 %v2834, %v2833
        %v2886 = vpack.c.bf16 %v2838, %v2837
        %v2887 = vpack.c.bf16 %v2842, %v2841
        %v2888 = vpack.c.bf16 %v2846, %v2845
        %v2889 = vpack.c.bf16 %v2850, %v2849
        %v2890 = vpack.c.bf16 %v2854, %v2853
        %v2891 = vpack.c.bf16 %v2828, %v2827
        %v2892 = vpack.c.bf16 %v2832, %v2831
        %v2893 = vpack.c.bf16 %v2836, %v2835
        %v2894 = vpack.c.bf16 %v2840, %v2839
        %v2895 = vpack.c.bf16 %v2844, %v2843
        %v2896 = vpack.c.bf16 %v2848, %v2847
        %v2897 = vpack.c.bf16 %v2852, %v2851
        %v2898 = vpack.c.bf16 %v2856, %v2855
        %2900 = vset.pattern.permute.xlu0 0
        %2901 = vperm.xlu0 %2900, %v2861
        %v2902 = vpop.permute.xlu0 %2901
        %2905 = vset.pattern.permute.xlu0 0
        %2906 = vperm.xlu0 %2905, %v2862
        %v2907 = vpop.permute.xlu0 %2906
        %2910 = vset.pattern.permute.xlu0 0
        %2911 = vperm.xlu0 %2910, %v2863
        %v2912 = vpop.permute.xlu0 %2911
        %2915 = vset.pattern.permute.xlu0 0
        %2916 = vperm.xlu0 %2915, %v2864
        %v2917 = vpop.permute.xlu0 %2916
        %vm2919 = vcmask 261120
        %v2921 = vsel %vm2919, %v2881, 0
        %v2924 = vsel %vm2919, %v2882, 0
        %2926 = vmatprep.subr.bf16.mxu0 %v2884
        %2927 = vmatpush1.bf16.msra.mxu0 %v2883
        %2928 = vmatprep.subr.bf16.mxu0 %v2892
        %2929 = vmatpush1.bf16.msra.mxu0 %v2891
        %2930 = vmatprep.subr.bf16.mxu0 0
        %2931 = vmatpush1.bf16.msra.mxu0 0
        %2932 = vmatprep.subr.bf16.mxu0 0
        %2933 = vmatpush1.bf16.msra.mxu0 0
        %2934 = vmatprep.subr.bf16.mxu0 0
        %2935 = vmatpush1.bf16.msra.mxu0 0
        %2936 = vmatprep.subr.bf16.mxu0 0
        %2937 = vmatpush1.bf16.msra.mxu0 0
        %2938 = vmatprep.subr.bf16.mxu0 0
        %2939 = vmatpush1.bf16.msra.mxu0 0
        %2940 = vmatprep.subr.bf16.mxu0 0
        %2941 = vmatpush1.bf16.msra.mxu0 0
        %2942 = vmatprep.subr.bf16.mxu0 0
        %2943 = vmatpush1.bf16.msra.mxu0 0
        %2944 = vmatprep.subr.bf16.mxu0 0
        %2945 = vmatpush1.bf16.msra.mxu0 0
        %2946 = vmatprep.subr.bf16.mxu0 0
        %2947 = vmatpush1.bf16.msra.mxu0 0
        %2948 = vmatprep.subr.bf16.mxu0 0
        %2949 = vmatpush1.bf16.msra.mxu0 0
        %2950 = vmatprep.subr.bf16.mxu0 0
        %2951 = vmatpush1.bf16.msra.mxu0 0
        %2952 = vmatprep.subr.bf16.mxu0 0
        %2953 = vmatpush1.bf16.msra.mxu0 0
        %2954 = vmatprep.subr.bf16.mxu0 0
        %2955 = vmatpush1.bf16.msra.mxu0 0
        %2956 = vmatprep.subr.bf16.mxu0 0
        %2957 = vmatpush1.bf16.msra.mxu0 0
        %2958 = vmatprep.mubr.bf16.mxu0 0
        %2959 = vmatmul.mubr.bf16.gmra.mrb[0].mxu0 %v2921
        %v2960 = vpop.f32.mrb[0].mxu0
        %v2961 = vadd.f32 %v2902, %v2960
        %v2962 = vpop.f32.mrb[0].mxu0
        %v2963 = vadd.f32 %v2902, %v2962
        %v2964 = vpop.f32.mrb[0].mxu0
        %v2965 = vadd.f32 %v2907, %v2964
        %v2966 = vpop.f32.mrb[0].mxu0
        %v2967 = vadd.f32 %v2907, %v2966
        %2968 = vmatprep.mubr.bf16.mxu0 0
        %2969 = vmatmul.mubr.bf16.gmra.mrb[0].mxu0 %v2924
        %v2970 = vpop.f32.mrb[0].mxu0
        %v2971 = vadd.f32 %v2912, %v2970
        %v2972 = vpop.f32.mrb[0].mxu0
        %v2973 = vadd.f32 %v2912, %v2972
        %v2974 = vpop.f32.mrb[0].mxu0
        %v2975 = vadd.f32 %v2917, %v2974
        %v2976 = vpop.f32.mrb[0].mxu0
        %v2977 = vadd.f32 %v2917, %v2976
        %2978 = vdwg.mxu0
        %2979 = vmatprep.subr.bf16.mxu0 %v2886
        %2980 = vmatpush1.bf16.msra.mxu0 %v2885
        %2981 = vmatprep.subr.bf16.mxu0 %v2894
        %2982 = vmatpush1.bf16.msra.mxu0 %v2893
        %2983 = vmatprep.subr.bf16.mxu0 0
        %2984 = vmatpush1.bf16.msra.mxu0 0
        %2985 = vmatprep.subr.bf16.mxu0 0
        %2986 = vmatpush1.bf16.msra.mxu0 0
        %2987 = vmatprep.subr.bf16.mxu0 0
        %2988 = vmatpush1.bf16.msra.mxu0 0
        %2989 = vmatprep.subr.bf16.mxu0 0
        %2990 = vmatpush1.bf16.msra.mxu0 0
        %2991 = vmatprep.subr.bf16.mxu0 0
        %2992 = vmatpush1.bf16.msra.mxu0 0
        %2993 = vmatprep.subr.bf16.mxu0 0
        %2994 = vmatpush1.bf16.msra.mxu0 0
        %2995 = vmatprep.subr.bf16.mxu0 0
        %2996 = vmatpush1.bf16.msra.mxu0 0
        %2997 = vmatprep.subr.bf16.mxu0 0
        %2998 = vmatpush1.bf16.msra.mxu0 0
        %2999 = vmatprep.subr.bf16.mxu0 0
        %3000 = vmatpush1.bf16.msra.mxu0 0
        %3001 = vmatprep.subr.bf16.mxu0 0
        %3002 = vmatpush1.bf16.msra.mxu0 0
        %3003 = vmatprep.subr.bf16.mxu0 0
        %3004 = vmatpush1.bf16.msra.mxu0 0
        %3005 = vmatprep.subr.bf16.mxu0 0
        %3006 = vmatpush1.bf16.msra.mxu0 0
        %3007 = vmatprep.subr.bf16.mxu0 0
        %3008 = vmatpush1.bf16.msra.mxu0 0
        %3009 = vmatprep.subr.bf16.mxu0 0
        %3010 = vmatpush1.bf16.msra.mxu0 0
        %3011 = vmatprep.mubr.bf16.mxu0 0
        %3012 = vmatmul.mubr.bf16.gmra.mrb[0].mxu0 %v2921
        %v3013 = vpop.f32.mrb[0].mxu0
        %v3014 = vadd.f32 %v2902, %v3013
        %v3015 = vpop.f32.mrb[0].mxu0
        %v3016 = vadd.f32 %v2902, %v3015
        %v3017 = vpop.f32.mrb[0].mxu0
        %v3018 = vadd.f32 %v2907, %v3017
        %v3019 = vpop.f32.mrb[0].mxu0
        %v3020 = vadd.f32 %v2907, %v3019
        %3021 = vmatprep.mubr.bf16.mxu0 0
        %3022 = vmatmul.mubr.bf16.gmra.mrb[0].mxu0 %v2924
        %v3023 = vpop.f32.mrb[0].mxu0
        %v3024 = vadd.f32 %v2912, %v3023
        %v3025 = vpop.f32.mrb[0].mxu0
        %v3026 = vadd.f32 %v2912, %v3025
        %v3027 = vpop.f32.mrb[0].mxu0
        %v3028 = vadd.f32 %v2917, %v3027
        %v3029 = vpop.f32.mrb[0].mxu0
        %v3030 = vadd.f32 %v2917, %v3029
        %3031 = vdwg.mxu0
        %3032 = vmatprep.subr.bf16.mxu0 %v2888
        %3033 = vmatpush1.bf16.msra.mxu0 %v2887
        %3034 = vmatprep.subr.bf16.mxu0 %v2896
        %3035 = vmatpush1.bf16.msra.mxu0 %v2895
        %3036 = vmatprep.subr.bf16.mxu0 0
        %3037 = vmatpush1.bf16.msra.mxu0 0
        %3038 = vmatprep.subr.bf16.mxu0 0
        %3039 = vmatpush1.bf16.msra.mxu0 0
        %3040 = vmatprep.subr.bf16.mxu0 0
        %3041 = vmatpush1.bf16.msra.mxu0 0
        %3042 = vmatprep.subr.bf16.mxu0 0
        %3043 = vmatpush1.bf16.msra.mxu0 0
        %3044 = vmatprep.subr.bf16.mxu0 0
        %3045 = vmatpush1.bf16.msra.mxu0 0
        %3046 = vmatprep.subr.bf16.mxu0 0
        %3047 = vmatpush1.bf16.msra.mxu0 0
        %3048 = vmatprep.subr.bf16.mxu0 0
        %3049 = vmatpush1.bf16.msra.mxu0 0
        %3050 = vmatprep.subr.bf16.mxu0 0
        %3051 = vmatpush1.bf16.msra.mxu0 0
        %3052 = vmatprep.subr.bf16.mxu0 0
        %3053 = vmatpush1.bf16.msra.mxu0 0
        %3054 = vmatprep.subr.bf16.mxu0 0
        %3055 = vmatpush1.bf16.msra.mxu0 0
        %3056 = vmatprep.subr.bf16.mxu0 0
        %3057 = vmatpush1.bf16.msra.mxu0 0
        %3058 = vmatprep.subr.bf16.mxu0 0
        %3059 = vmatpush1.bf16.msra.mxu0 0
        %3060 = vmatprep.subr.bf16.mxu0 0
        %3061 = vmatpush1.bf16.msra.mxu0 0
        %3062 = vmatprep.subr.bf16.mxu0 0
        %3063 = vmatpush1.bf16.msra.mxu0 0
        %3064 = vmatprep.mubr.bf16.mxu0 0
        %3065 = vmatmul.mubr.bf16.gmra.mrb[0].mxu0 %v2921
        %v3066 = vpop.f32.mrb[0].mxu0
        %v3067 = vadd.f32 %v2902, %v3066
        %v3068 = vpop.f32.mrb[0].mxu0
        %v3069 = vadd.f32 %v2902, %v3068
        %v3070 = vpop.f32.mrb[0].mxu0
        %v3071 = vadd.f32 %v2907, %v3070
        %v3072 = vpop.f32.mrb[0].mxu0
        %v3073 = vadd.f32 %v2907, %v3072
        %3074 = vmatprep.mubr.bf16.mxu0 0
        %3075 = vmatmul.mubr.bf16.gmra.mrb[0].mxu0 %v2924
        %v3076 = vpop.f32.mrb[0].mxu0
        %v3077 = vadd.f32 %v2912, %v3076
        %v3078 = vpop.f32.mrb[0].mxu0
        %v3079 = vadd.f32 %v2912, %v3078
        %v3080 = vpop.f32.mrb[0].mxu0
        %v3081 = vadd.f32 %v2917, %v3080
        %v3082 = vpop.f32.mrb[0].mxu0
        %v3083 = vadd.f32 %v2917, %v3082
        %3084 = vdwg.mxu0
        %3085 = vmatprep.subr.bf16.mxu0 %v2890
        %3086 = vmatpush1.bf16.msra.mxu0 %v2889
        %3087 = vmatprep.subr.bf16.mxu0 %v2898
        %3088 = vmatpush1.bf16.msra.mxu0 %v2897
        %3089 = vmatprep.subr.bf16.mxu0 0
        %3090 = vmatpush1.bf16.msra.mxu0 0
        %3091 = vmatprep.subr.bf16.mxu0 0
        %3092 = vmatpush1.bf16.msra.mxu0 0
        %3093 = vmatprep.subr.bf16.mxu0 0
        %3094 = vmatpush1.bf16.msra.mxu0 0
        %3095 = vmatprep.subr.bf16.mxu0 0
        %3096 = vmatpush1.bf16.msra.mxu0 0
        %3097 = vmatprep.subr.bf16.mxu0 0
        %3098 = vmatpush1.bf16.msra.mxu0 0
        %3099 = vmatprep.subr.bf16.mxu0 0
        %3100 = vmatpush1.bf16.msra.mxu0 0
        %3101 = vmatprep.subr.bf16.mxu0 0
        %3102 = vmatpush1.bf16.msra.mxu0 0
        %3103 = vmatprep.subr.bf16.mxu0 0
        %3104 = vmatpush1.bf16.msra.mxu0 0
        %3105 = vmatprep.subr.bf16.mxu0 0
        %3106 = vmatpush1.bf16.msra.mxu0 0
        %3107 = vmatprep.subr.bf16.mxu0 0
        %3108 = vmatpush1.bf16.msra.mxu0 0
        %3109 = vmatprep.subr.bf16.mxu0 0
        %3110 = vmatpush1.bf16.msra.mxu0 0
        %3111 = vmatprep.subr.bf16.mxu0 0
        %3112 = vmatpush1.bf16.msra.mxu0 0
        %3113 = vmatprep.subr.bf16.mxu0 0
        %3114 = vmatpush1.bf16.msra.mxu0 0
        %3115 = vmatprep.subr.bf16.mxu0 0
        %3116 = vmatpush1.bf16.msra.mxu0 0
        %3117 = vmatprep.mubr.bf16.mxu0 0
        %3118 = vmatmul.mubr.bf16.gmra.mrb[0].mxu0 %v2921
        %v3119 = vpop.f32.mrb[0].mxu0
        %v3120 = vadd.f32 %v2902, %v3119
        %v3121 = vpop.f32.mrb[0].mxu0
        %v3122 = vadd.f32 %v2902, %v3121
        %v3123 = vpop.f32.mrb[0].mxu0
        %v3124 = vadd.f32 %v2907, %v3123
        %v3125 = vpop.f32.mrb[0].mxu0
        %v3126 = vadd.f32 %v2907, %v3125
        %3127 = vmatprep.mubr.bf16.mxu0 0
        %3128 = vmatmul.mubr.bf16.gmra.mrb[0].mxu0 %v2924
        %v3129 = vpop.f32.mrb[0].mxu0
        %v3130 = vadd.f32 %v2912, %v3129
        %v3131 = vpop.f32.mrb[0].mxu0
        %v3132 = vadd.f32 %v2912, %v3131
        %v3133 = vpop.f32.mrb[0].mxu0
        %v3134 = vadd.f32 %v2917, %v3133
        %v3135 = vpop.f32.mrb[0].mxu0
        %v3136 = vadd.f32 %v2917, %v3135
        %3137 = vdwg.mxu0
        %v3138 = vmul.f32 %v2961, 0.5
        %v3139 = vmul.f32 %v2963, 0.5
        %v3140 = vmul.f32 %v3014, 0.5
        %v3141 = vmul.f32 %v3016, 0.5
        %v3142 = vmul.f32 %v3067, 0.5
        %v3143 = vmul.f32 %v3069, 0.5
        %v3144 = vmul.f32 %v3120, 0.5
        %v3145 = vmul.f32 %v3122, 0.5
        %v3146 = vmul.f32 %v2965, 0.5
        %v3147 = vmul.f32 %v2967, 0.5
        %v3148 = vmul.f32 %v3018, 0.5
        %v3149 = vmul.f32 %v3020, 0.5
        %v3150 = vmul.f32 %v3071, 0.5
        %v3151 = vmul.f32 %v3073, 0.5
        %v3152 = vmul.f32 %v3124, 0.5
        %v3153 = vmul.f32 %v3126, 0.5
        %v3154 = vmul.f32 %v2971, 0.5
        %v3155 = vmul.f32 %v2973, 0.5
        %v3156 = vmul.f32 %v3024, 0.5
        %v3157 = vmul.f32 %v3026, 0.5
        %v3158 = vmul.f32 %v3077, 0.5
        %v3159 = vmul.f32 %v3079, 0.5
        %v3160 = vmul.f32 %v3130, 0.5
        %v3161 = vmul.f32 %v3132, 0.5
        %v3162 = vmul.f32 %v2975, 0.5
        %v3163 = vmul.f32 %v2977, 0.5
        %v3164 = vmul.f32 %v3028, 0.5
        %v3165 = vmul.f32 %v3030, 0.5
        %v3166 = vmul.f32 %v3081, 0.5
        %v3167 = vmul.f32 %v3083, 0.5
        %v3168 = vmul.f32 %v3134, 0.5
        %v3169 = vmul.f32 %v3136, 0.5
        %v3170 = vtanh.pop %v3138
        %v3171 = vtanh.pop %v3139
        %v3172 = vtanh.pop %v3140
        %v3173 = vtanh.pop %v3141
        %v3174 = vtanh.pop %v3142
        %v3175 = vtanh.pop %v3143
        %v3176 = vtanh.pop %v3144
        %v3177 = vtanh.pop %v3145
        %v3178 = vtanh.pop %v3146
        %v3179 = vtanh.pop %v3147
        %v3180 = vtanh.pop %v3148
        %v3181 = vtanh.pop %v3149
        %v3182 = vtanh.pop %v3150
        %v3183 = vtanh.pop %v3151
        %v3184 = vtanh.pop %v3152
        %v3185 = vtanh.pop %v3153
        %v3186 = vtanh.pop %v3154
        %v3187 = vtanh.pop %v3155
        %v3188 = vtanh.pop %v3156
        %v3189 = vtanh.pop %v3157
        %v3190 = vtanh.pop %v3158
        %v3191 = vtanh.pop %v3159
        %v3192 = vtanh.pop %v3160
        %v3193 = vtanh.pop %v3161
        %v3194 = vtanh.pop %v3162
        %v3195 = vtanh.pop %v3163
        %v3196 = vtanh.pop %v3164
        %v3197 = vtanh.pop %v3165
        %v3198 = vtanh.pop %v3166
        %v3199 = vtanh.pop %v3167
        %v3200 = vtanh.pop %v3168
        %v3201 = vtanh.pop %v3169
        %v3202 = vadd.f32 %v3170, 1.0
        %v3203 = vadd.f32 %v3171, 1.0
        %v3204 = vadd.f32 %v3172, 1.0
        %v3205 = vadd.f32 %v3173, 1.0
        %v3206 = vadd.f32 %v3174, 1.0
        %v3207 = vadd.f32 %v3175, 1.0
        %v3208 = vadd.f32 %v3176, 1.0
        %v3209 = vadd.f32 %v3177, 1.0
        %v3210 = vadd.f32 %v3178, 1.0
        %v3211 = vadd.f32 %v3179, 1.0
        %v3212 = vadd.f32 %v3180, 1.0
        %v3213 = vadd.f32 %v3181, 1.0
        %v3214 = vadd.f32 %v3182, 1.0
        %v3215 = vadd.f32 %v3183, 1.0
        %v3216 = vadd.f32 %v3184, 1.0
        %v3217 = vadd.f32 %v3185, 1.0
        %v3218 = vadd.f32 %v3186, 1.0
        %v3219 = vadd.f32 %v3187, 1.0
        %v3220 = vadd.f32 %v3188, 1.0
        %v3221 = vadd.f32 %v3189, 1.0
        %v3222 = vadd.f32 %v3190, 1.0
        %v3223 = vadd.f32 %v3191, 1.0
        %v3224 = vadd.f32 %v3192, 1.0
        %v3225 = vadd.f32 %v3193, 1.0
        %v3226 = vadd.f32 %v3194, 1.0
        %v3227 = vadd.f32 %v3195, 1.0
        %v3228 = vadd.f32 %v3196, 1.0
        %v3229 = vadd.f32 %v3197, 1.0
        %v3230 = vadd.f32 %v3198, 1.0
        %v3231 = vadd.f32 %v3199, 1.0
        %v3232 = vadd.f32 %v3200, 1.0
        %v3233 = vadd.f32 %v3201, 1.0
        %v3234 = vmul.f32 %v3202, 0.5
        %v3235 = vmul.f32 %v3203, 0.5
        %v3236 = vmul.f32 %v3204, 0.5
        %v3237 = vmul.f32 %v3205, 0.5
        %v3238 = vmul.f32 %v3206, 0.5
        %v3239 = vmul.f32 %v3207, 0.5
        %v3240 = vmul.f32 %v3208, 0.5
        %v3241 = vmul.f32 %v3209, 0.5
        %v3242 = vmul.f32 %v3210, 0.5
        %v3243 = vmul.f32 %v3211, 0.5
        %v3244 = vmul.f32 %v3212, 0.5
        %v3245 = vmul.f32 %v3213, 0.5
        %v3246 = vmul.f32 %v3214, 0.5
        %v3247 = vmul.f32 %v3215, 0.5
        %v3248 = vmul.f32 %v3216, 0.5
        %v3249 = vmul.f32 %v3217, 0.5
        %v3250 = vmul.f32 %v3218, 0.5
        %v3251 = vmul.f32 %v3219, 0.5
        %v3252 = vmul.f32 %v3220, 0.5
        %v3253 = vmul.f32 %v3221, 0.5
        %v3254 = vmul.f32 %v3222, 0.5
        %v3255 = vmul.f32 %v3223, 0.5
        %v3256 = vmul.f32 %v3224, 0.5
        %v3257 = vmul.f32 %v3225, 0.5
        %v3258 = vmul.f32 %v3226, 0.5
        %v3259 = vmul.f32 %v3227, 0.5
        %v3260 = vmul.f32 %v3228, 0.5
        %v3261 = vmul.f32 %v3229, 0.5
        %v3262 = vmul.f32 %v3230, 0.5
        %v3263 = vmul.f32 %v3231, 0.5
        %v3264 = vmul.f32 %v3232, 0.5
        %v3265 = vmul.f32 %v3233, 0.5
        %v3266 = vmul.f32 %v2961, %v3234
        %v3267 = vmul.f32 %v2963, %v3235
        %v3268 = vmul.f32 %v3014, %v3236
        %v3269 = vmul.f32 %v3016, %v3237
        %v3270 = vmul.f32 %v3067, %v3238
        %v3271 = vmul.f32 %v3069, %v3239
        %v3272 = vmul.f32 %v3120, %v3240
        %v3273 = vmul.f32 %v3122, %v3241
        %v3274 = vmul.f32 %v2965, %v3242
        %v3275 = vmul.f32 %v2967, %v3243
        %v3276 = vmul.f32 %v3018, %v3244
        %v3277 = vmul.f32 %v3020, %v3245
        %v3278 = vmul.f32 %v3071, %v3246
        %v3279 = vmul.f32 %v3073, %v3247
        %v3280 = vmul.f32 %v3124, %v3248
        %v3281 = vmul.f32 %v3126, %v3249
        %v3282 = vmul.f32 %v2971, %v3250
        %v3283 = vmul.f32 %v2973, %v3251
        %v3284 = vmul.f32 %v3024, %v3252
        %v3285 = vmul.f32 %v3026, %v3253
        %v3286 = vmul.f32 %v3077, %v3254
        %v3287 = vmul.f32 %v3079, %v3255
        %v3288 = vmul.f32 %v3130, %v3256
        %v3289 = vmul.f32 %v3132, %v3257
        %v3290 = vmul.f32 %v2975, %v3258
        %v3291 = vmul.f32 %v2977, %v3259
        %v3292 = vmul.f32 %v3028, %v3260
        %v3293 = vmul.f32 %v3030, %v3261
        %v3294 = vmul.f32 %v3081, %v3262
        %v3295 = vmul.f32 %v3083, %v3263
        %v3296 = vmul.f32 %v3134, %v3264
        %v3297 = vmul.f32 %v3136, %v3265
        %v3298 = vmul.f32 %v2861, 0.5
        %v3299 = vmul.f32 %v2862, 0.5
        %v3300 = vmul.f32 %v2863, 0.5
        %v3301 = vmul.f32 %v2864, 0.5
        %v3302 = vtanh.pop %v3298
        %v3303 = vtanh.pop %v3299
        %v3304 = vtanh.pop %v3300
        %v3305 = vtanh.pop %v3301
        %v3306 = vadd.f32 %v3302, 1.0
        %v3307 = vadd.f32 %v3303, 1.0
        %v3308 = vadd.f32 %v3304, 1.0
        %v3309 = vadd.f32 %v3305, 1.0
        %v3310 = vmul.f32 %v3306, 0.5
        %v3311 = vmul.f32 %v3307, 0.5
        %v3312 = vmul.f32 %v3308, 0.5
        %v3313 = vmul.f32 %v3309, 0.5
        %v3314 = vmul.f32 %v2861, %v3310
        %v3315 = vmul.f32 %v2862, %v3311
        %v3316 = vmul.f32 %v2863, %v3312
        %v3317 = vmul.f32 %v2864, %v3313
        %3319 = vset.pattern.permute.xlu0 0
        %3320 = vperm.xlu0 %3319, %v3314
        %v3321 = vpop.permute.xlu0 %3320
        %3324 = vset.pattern.permute.xlu0 0
        %3325 = vperm.xlu0 %3324, %v3315
        %v3326 = vpop.permute.xlu0 %3325
        %3329 = vset.pattern.permute.xlu0 0
        %3330 = vperm.xlu0 %3329, %v3316
        %v3331 = vpop.permute.xlu0 %3330
        %3334 = vset.pattern.permute.xlu0 0
        %3335 = vperm.xlu0 %3334, %v3317
        %v3336 = vpop.permute.xlu0 %3335
        %3339 = vset.pattern.permute.xlu0 0
        %3340 = vperm.xlu0 %3339, %v2869
        %v3341 = vpop.permute.xlu0 %3340
        %3344 = vset.pattern.permute.xlu0 0
        %3345 = vperm.xlu0 %3344, %v2870
        %v3346 = vpop.permute.xlu0 %3345
        %3349 = vset.pattern.permute.xlu0 0
        %3350 = vperm.xlu0 %3349, %v2871
        %v3351 = vpop.permute.xlu0 %3350
        %3354 = vset.pattern.permute.xlu0 0
        %3355 = vperm.xlu0 %3354, %v2872
        %v3356 = vpop.permute.xlu0 %3355
        %3359 = vset.pattern.permute.xlu0 0
        %3360 = vperm.xlu0 %3359, %v2865
        %v3361 = vpop.permute.xlu0 %3360
        %3364 = vset.pattern.permute.xlu0 0
        %3365 = vperm.xlu0 %3364, %v2866
        %v3366 = vpop.permute.xlu0 %3365
        %3369 = vset.pattern.permute.xlu0 0
        %3370 = vperm.xlu0 %3369, %v2867
        %v3371 = vpop.permute.xlu0 %3370
        %3374 = vset.pattern.permute.xlu0 0
        %3375 = vperm.xlu0 %3374, %v2868
        %v3376 = vpop.permute.xlu0 %3375
        %v3378 = vmul.f32 %v3361, %v3321
        %v3379 = vmul.f32 %v3361, %v3266
        %v3380 = vmul.f32 %v3361, %v3267
        %v3381 = vmul.f32 %v3361, %v3268
        %v3382 = vmul.f32 %v3361, %v3269
        %v3383 = vmul.f32 %v3361, %v3270
        %v3384 = vmul.f32 %v3361, %v3271
        %v3385 = vmul.f32 %v3366, %v3326
        %v3386 = vmul.f32 %v3366, %v3274
        %v3387 = vmul.f32 %v3366, %v3275
        %v3388 = vmul.f32 %v3366, %v3276
        %v3389 = vmul.f32 %v3366, %v3277
        %v3390 = vmul.f32 %v3366, %v3278
        %v3391 = vmul.f32 %v3366, %v3279
        %v3392 = vmul.f32 %v3371, %v3331
        %v3393 = vmul.f32 %v3371, %v3282
        %v3394 = vmul.f32 %v3371, %v3283
        %v3395 = vmul.f32 %v3371, %v3284
        %v3396 = vmul.f32 %v3371, %v3285
        %v3397 = vmul.f32 %v3371, %v3286
        %v3398 = vmul.f32 %v3371, %v3287
        %v3399 = vmul.f32 %v3376, %v3336
        %v3400 = vmul.f32 %v3376, %v3290
        %v3401 = vmul.f32 %v3376, %v3291
        %v3402 = vmul.f32 %v3376, %v3292
        %v3403 = vmul.f32 %v3376, %v3293
        %v3404 = vmul.f32 %v3376, %v3294
        %v3405 = vmul.f32 %v3376, %v3295
        %v3406 = vadd.f32 %v3341, %v3378
        %v3407 = vadd.f32 %v3341, %v3379
        %v3408 = vadd.f32 %v3341, %v3380
        %v3409 = vadd.f32 %v3341, %v3381
        %v3410 = vadd.f32 %v3341, %v3382
        %v3411 = vadd.f32 %v3341, %v3383
        %v3412 = vadd.f32 %v3341, %v3384
        %v3413 = vadd.f32 %v3346, %v3385
        %v3414 = vadd.f32 %v3346, %v3386
        %v3415 = vadd.f32 %v3346, %v3387
        %v3416 = vadd.f32 %v3346, %v3388
        %v3417 = vadd.f32 %v3346, %v3389
        %v3418 = vadd.f32 %v3346, %v3390
        %v3419 = vadd.f32 %v3346, %v3391
        %v3420 = vadd.f32 %v3351, %v3392
        %v3421 = vadd.f32 %v3351, %v3393
        %v3422 = vadd.f32 %v3351, %v3394
        %v3423 = vadd.f32 %v3351, %v3395
        %v3424 = vadd.f32 %v3351, %v3396
        %v3425 = vadd.f32 %v3351, %v3397
        %v3426 = vadd.f32 %v3351, %v3398
        %v3427 = vadd.f32 %v3356, %v3399
        %v3428 = vadd.f32 %v3356, %v3400
        %v3429 = vadd.f32 %v3356, %v3401
        %v3430 = vadd.f32 %v3356, %v3402
        %v3431 = vadd.f32 %v3356, %v3403
        %v3432 = vadd.f32 %v3356, %v3404
        %v3433 = vadd.f32 %v3356, %v3405
        %3434 = vset.pattern.permute.xlu0 1
        %3435 = vperm.xlu0 %3434, %v2865
        %v3436 = vpop.permute.xlu0 %3435
        %3438 = vset.pattern.permute.xlu0 1
        %3439 = vperm.xlu0 %3438, %v2866
        %v3440 = vpop.permute.xlu0 %3439
        %3442 = vset.pattern.permute.xlu0 1
        %3443 = vperm.xlu0 %3442, %v2867
        %v3444 = vpop.permute.xlu0 %3443
        %3446 = vset.pattern.permute.xlu0 1
        %3447 = vperm.xlu0 %3446, %v2868
        %v3448 = vpop.permute.xlu0 %3447
        %v3450 = vmul.f32 %v3436, %v3266
        %v3451 = vmul.f32 %v3436, %v3267
        %v3452 = vmul.f32 %v3436, %v3268
        %v3453 = vmul.f32 %v3436, %v3269
        %v3454 = vmul.f32 %v3436, %v3270
        %v3455 = vmul.f32 %v3436, %v3271
        %v3456 = vmul.f32 %v3436, %v3272
        %v3457 = vmul.f32 %v3436, %v3273
        %v3458 = vmul.f32 %v3440, %v3274
        %v3459 = vmul.f32 %v3440, %v3275
        %v3460 = vmul.f32 %v3440, %v3276
        %v3461 = vmul.f32 %v3440, %v3277
        %v3462 = vmul.f32 %v3440, %v3278
        %v3463 = vmul.f32 %v3440, %v3279
        %v3464 = vmul.f32 %v3440, %v3280
        %v3465 = vmul.f32 %v3440, %v3281
        %v3466 = vmul.f32 %v3444, %v3282
        %v3467 = vmul.f32 %v3444, %v3283
        %v3468 = vmul.f32 %v3444, %v3284
        %v3469 = vmul.f32 %v3444, %v3285
        %v3470 = vmul.f32 %v3444, %v3286
        %v3471 = vmul.f32 %v3444, %v3287
        %v3472 = vmul.f32 %v3444, %v3288
        %v3473 = vmul.f32 %v3444, %v3289
        %v3474 = vmul.f32 %v3448, %v3290
        %v3475 = vmul.f32 %v3448, %v3291
        %v3476 = vmul.f32 %v3448, %v3292
        %v3477 = vmul.f32 %v3448, %v3293
        %v3478 = vmul.f32 %v3448, %v3294
        %v3479 = vmul.f32 %v3448, %v3295
        %v3480 = vmul.f32 %v3448, %v3296
        %v3481 = vmul.f32 %v3448, %v3297
        %v3482 = vadd.f32 %v3406, %v3450
        %v3483 = vadd.f32 %v3406, %v3451
        %v3484 = vadd.f32 %v3407, %v3452
        %v3485 = vadd.f32 %v3408, %v3453
        %v3486 = vadd.f32 %v3409, %v3454
        %v3487 = vadd.f32 %v3410, %v3455
        %v3488 = vadd.f32 %v3411, %v3456
        %v3489 = vadd.f32 %v3412, %v3457
        %v3490 = vadd.f32 %v3413, %v3458
        %v3491 = vadd.f32 %v3413, %v3459
        %v3492 = vadd.f32 %v3414, %v3460
        %v3493 = vadd.f32 %v3415, %v3461
        %v3494 = vadd.f32 %v3416, %v3462
        %v3495 = vadd.f32 %v3417, %v3463
        %v3496 = vadd.f32 %v3418, %v3464
        %v3497 = vadd.f32 %v3419, %v3465
        %v3498 = vadd.f32 %v3420, %v3466
        %v3499 = vadd.f32 %v3420, %v3467
        %v3500 = vadd.f32 %v3421, %v3468
        %v3501 = vadd.f32 %v3422, %v3469
        %v3502 = vadd.f32 %v3423, %v3470
        %v3503 = vadd.f32 %v3424, %v3471
        %v3504 = vadd.f32 %v3425, %v3472
        %v3505 = vadd.f32 %v3426, %v3473
        %v3506 = vadd.f32 %v3427, %v3474
        %v3507 = vadd.f32 %v3427, %v3475
        %v3508 = vadd.f32 %v3428, %v3476
        %v3509 = vadd.f32 %v3429, %v3477
        %v3510 = vadd.f32 %v3430, %v3478
        %v3511 = vadd.f32 %v3431, %v3479
        %v3512 = vadd.f32 %v3432, %v3480
        %v3513 = vadd.f32 %v3433, %v3481
        %3514 = vset.pattern.permute.xlu0 2
        %3515 = vperm.xlu0 %3514, %v2865
        %v3516 = vpop.permute.xlu0 %3515
        %3518 = vset.pattern.permute.xlu0 2
        %3519 = vperm.xlu0 %3518, %v2866
        %v3520 = vpop.permute.xlu0 %3519
        %3522 = vset.pattern.permute.xlu0 2
        %3523 = vperm.xlu0 %3522, %v2867
        %v3524 = vpop.permute.xlu0 %3523
        %3526 = vset.pattern.permute.xlu0 2
        %3527 = vperm.xlu0 %3526, %v2868
        %v3528 = vpop.permute.xlu0 %3527
        %v3530 = vmul.f32 %v3516, %v3268
        %v3531 = vmul.f32 %v3516, %v3269
        %v3532 = vmul.f32 %v3516, %v3270
        %v3533 = vmul.f32 %v3516, %v3271
        %v3534 = vmul.f32 %v3516, %v3272
        %v3535 = vmul.f32 %v3516, %v3273
        %v3536 = vmul.f32 %v3516, %v3321
        %v3537 = vmul.f32 %v3520, %v3276
        %v3538 = vmul.f32 %v3520, %v3277
        %v3539 = vmul.f32 %v3520, %v3278
        %v3540 = vmul.f32 %v3520, %v3279
        %v3541 = vmul.f32 %v3520, %v3280
        %v3542 = vmul.f32 %v3520, %v3281
        %v3543 = vmul.f32 %v3520, %v3326
        %v3544 = vmul.f32 %v3524, %v3284
        %v3545 = vmul.f32 %v3524, %v3285
        %v3546 = vmul.f32 %v3524, %v3286
        %v3547 = vmul.f32 %v3524, %v3287
        %v3548 = vmul.f32 %v3524, %v3288
        %v3549 = vmul.f32 %v3524, %v3289
        %v3550 = vmul.f32 %v3524, %v3331
        %v3551 = vmul.f32 %v3528, %v3292
        %v3552 = vmul.f32 %v3528, %v3293
        %v3553 = vmul.f32 %v3528, %v3294
        %v3554 = vmul.f32 %v3528, %v3295
        %v3555 = vmul.f32 %v3528, %v3296
        %v3556 = vmul.f32 %v3528, %v3297
        %v3557 = vmul.f32 %v3528, %v3336
        %v3558 = vadd.f32 %v3482, %v3530
        %v3559 = vadd.f32 %v3483, %v3531
        %v3560 = vadd.f32 %v3484, %v3532
        %v3561 = vadd.f32 %v3485, %v3533
        %v3562 = vadd.f32 %v3486, %v3534
        %v3563 = vadd.f32 %v3487, %v3535
        %v3564 = vadd.f32 %v3488, %v3536
        %v3565 = vadd.f32 %v3489, %v3536
        %v3566 = vadd.f32 %v3490, %v3537
        %v3567 = vadd.f32 %v3491, %v3538
        %v3568 = vadd.f32 %v3492, %v3539
        %v3569 = vadd.f32 %v3493, %v3540
        %v3570 = vadd.f32 %v3494, %v3541
        %v3571 = vadd.f32 %v3495, %v3542
        %v3572 = vadd.f32 %v3496, %v3543
        %v3573 = vadd.f32 %v3497, %v3543
        %v3574 = vadd.f32 %v3498, %v3544
        %v3575 = vadd.f32 %v3499, %v3545
        %v3576 = vadd.f32 %v3500, %v3546
        %v3577 = vadd.f32 %v3501, %v3547
        %v3578 = vadd.f32 %v3502, %v3548
        %v3579 = vadd.f32 %v3503, %v3549
        %v3580 = vadd.f32 %v3504, %v3550
        %v3581 = vadd.f32 %v3505, %v3550
        %v3582 = vadd.f32 %v3506, %v3551
        %v3583 = vadd.f32 %v3507, %v3552
        %v3584 = vadd.f32 %v3508, %v3553
        %v3585 = vadd.f32 %v3509, %v3554
        %v3586 = vadd.f32 %v3510, %v3555
        %v3587 = vadd.f32 %v3511, %v3556
        %v3588 = vadd.f32 %v3512, %v3557
        %v3589 = vadd.f32 %v3513, %v3557
        %v3590 = vmul.f32 %v3558, 0.5
        %v3591 = vmul.f32 %v3559, 0.5
        %v3592 = vmul.f32 %v3560, 0.5
        %v3593 = vmul.f32 %v3561, 0.5
        %v3594 = vmul.f32 %v3562, 0.5
        %v3595 = vmul.f32 %v3563, 0.5
        %v3596 = vmul.f32 %v3564, 0.5
        %v3597 = vmul.f32 %v3565, 0.5
        %v3598 = vmul.f32 %v3566, 0.5
        %v3599 = vmul.f32 %v3567, 0.5
        %v3600 = vmul.f32 %v3568, 0.5
        %v3601 = vmul.f32 %v3569, 0.5
        %v3602 = vmul.f32 %v3570, 0.5
        %v3603 = vmul.f32 %v3571, 0.5
        %v3604 = vmul.f32 %v3572, 0.5
        %v3605 = vmul.f32 %v3573, 0.5
        %v3606 = vmul.f32 %v3574, 0.5
        %v3607 = vmul.f32 %v3575, 0.5
        %v3608 = vmul.f32 %v3576, 0.5
        %v3609 = vmul.f32 %v3577, 0.5
        %v3610 = vmul.f32 %v3578, 0.5
        %v3611 = vmul.f32 %v3579, 0.5
        %v3612 = vmul.f32 %v3580, 0.5
        %v3613 = vmul.f32 %v3581, 0.5
        %v3614 = vmul.f32 %v3582, 0.5
        %v3615 = vmul.f32 %v3583, 0.5
        %v3616 = vmul.f32 %v3584, 0.5
        %v3617 = vmul.f32 %v3585, 0.5
        %v3618 = vmul.f32 %v3586, 0.5
        %v3619 = vmul.f32 %v3587, 0.5
        %v3620 = vmul.f32 %v3588, 0.5
        %v3621 = vmul.f32 %v3589, 0.5
        %v3622 = vtanh.pop %v3590
        %v3623 = vtanh.pop %v3591
        %v3624 = vtanh.pop %v3592
        %v3625 = vtanh.pop %v3593
        %v3626 = vtanh.pop %v3594
        %v3627 = vtanh.pop %v3595
        %v3628 = vtanh.pop %v3596
        %v3629 = vtanh.pop %v3597
        %v3630 = vtanh.pop %v3598
        %v3631 = vtanh.pop %v3599
        %v3632 = vtanh.pop %v3600
        %v3633 = vtanh.pop %v3601
        %v3634 = vtanh.pop %v3602
        %v3635 = vtanh.pop %v3603
        %v3636 = vtanh.pop %v3604
        %v3637 = vtanh.pop %v3605
        %v3638 = vtanh.pop %v3606
        %v3639 = vtanh.pop %v3607
        %v3640 = vtanh.pop %v3608
        %v3641 = vtanh.pop %v3609
        %v3642 = vtanh.pop %v3610
        %v3643 = vtanh.pop %v3611
        %v3644 = vtanh.pop %v3612
        %v3645 = vtanh.pop %v3613
        %v3646 = vtanh.pop %v3614
        %v3647 = vtanh.pop %v3615
        %v3648 = vtanh.pop %v3616
        %v3649 = vtanh.pop %v3617
        %v3650 = vtanh.pop %v3618
        %v3651 = vtanh.pop %v3619
        %v3652 = vtanh.pop %v3620
        %v3653 = vtanh.pop %v3621
        %v3654 = vadd.f32 %v3622, 1.0
        %v3655 = vadd.f32 %v3623, 1.0
        %v3656 = vadd.f32 %v3624, 1.0
        %v3657 = vadd.f32 %v3625, 1.0
        %v3658 = vadd.f32 %v3626, 1.0
        %v3659 = vadd.f32 %v3627, 1.0
        %v3660 = vadd.f32 %v3628, 1.0
        %v3661 = vadd.f32 %v3629, 1.0
        %v3662 = vadd.f32 %v3630, 1.0
        %v3663 = vadd.f32 %v3631, 1.0
        %v3664 = vadd.f32 %v3632, 1.0
        %v3665 = vadd.f32 %v3633, 1.0
        %v3666 = vadd.f32 %v3634, 1.0
        %v3667 = vadd.f32 %v3635, 1.0
        %v3668 = vadd.f32 %v3636, 1.0
        %v3669 = vadd.f32 %v3637, 1.0
        %v3670 = vadd.f32 %v3638, 1.0
        %v3671 = vadd.f32 %v3639, 1.0
        %v3672 = vadd.f32 %v3640, 1.0
        %v3673 = vadd.f32 %v3641, 1.0
        %v3674 = vadd.f32 %v3642, 1.0
        %v3675 = vadd.f32 %v3643, 1.0
        %v3676 = vadd.f32 %v3644, 1.0
        %v3677 = vadd.f32 %v3645, 1.0
        %v3678 = vadd.f32 %v3646, 1.0
        %v3679 = vadd.f32 %v3647, 1.0
        %v3680 = vadd.f32 %v3648, 1.0
        %v3681 = vadd.f32 %v3649, 1.0
        %v3682 = vadd.f32 %v3650, 1.0
        %v3683 = vadd.f32 %v3651, 1.0
        %v3684 = vadd.f32 %v3652, 1.0
        %v3685 = vadd.f32 %v3653, 1.0
        %v3686 = vmul.f32 %v3654, 0.5
        %v3687 = vmul.f32 %v3655, 0.5
        %v3688 = vmul.f32 %v3656, 0.5
        %v3689 = vmul.f32 %v3657, 0.5
        %v3690 = vmul.f32 %v3658, 0.5
        %v3691 = vmul.f32 %v3659, 0.5
        %v3692 = vmul.f32 %v3660, 0.5
        %v3693 = vmul.f32 %v3661, 0.5
        %v3694 = vmul.f32 %v3662, 0.5
        %v3695 = vmul.f32 %v3663, 0.5
        %v3696 = vmul.f32 %v3664, 0.5
        %v3697 = vmul.f32 %v3665, 0.5
        %v3698 = vmul.f32 %v3666, 0.5
        %v3699 = vmul.f32 %v3667, 0.5
        %v3700 = vmul.f32 %v3668, 0.5
        %v3701 = vmul.f32 %v3669, 0.5
        %v3702 = vmul.f32 %v3670, 0.5
        %v3703 = vmul.f32 %v3671, 0.5
        %v3704 = vmul.f32 %v3672, 0.5
        %v3705 = vmul.f32 %v3673, 0.5
        %v3706 = vmul.f32 %v3674, 0.5
        %v3707 = vmul.f32 %v3675, 0.5
        %v3708 = vmul.f32 %v3676, 0.5
        %v3709 = vmul.f32 %v3677, 0.5
        %v3710 = vmul.f32 %v3678, 0.5
        %v3711 = vmul.f32 %v3679, 0.5
        %v3712 = vmul.f32 %v3680, 0.5
        %v3713 = vmul.f32 %v3681, 0.5
        %v3714 = vmul.f32 %v3682, 0.5
        %v3715 = vmul.f32 %v3683, 0.5
        %v3716 = vmul.f32 %v3684, 0.5
        %v3717 = vmul.f32 %v3685, 0.5
        %v3718 = vmul.f32 %v3558, %v3686
        %v3719 = vmul.f32 %v3559, %v3687
        %v3720 = vmul.f32 %v3560, %v3688
        %v3721 = vmul.f32 %v3561, %v3689
        %v3722 = vmul.f32 %v3562, %v3690
        %v3723 = vmul.f32 %v3563, %v3691
        %v3724 = vmul.f32 %v3564, %v3692
        %v3725 = vmul.f32 %v3565, %v3693
        %v3726 = vmul.f32 %v3566, %v3694
        %v3727 = vmul.f32 %v3567, %v3695
        %v3728 = vmul.f32 %v3568, %v3696
        %v3729 = vmul.f32 %v3569, %v3697
        %v3730 = vmul.f32 %v3570, %v3698
        %v3731 = vmul.f32 %v3571, %v3699
        %v3732 = vmul.f32 %v3572, %v3700
        %v3733 = vmul.f32 %v3573, %v3701
        %v3734 = vmul.f32 %v3574, %v3702
        %v3735 = vmul.f32 %v3575, %v3703
        %v3736 = vmul.f32 %v3576, %v3704
        %v3737 = vmul.f32 %v3577, %v3705
        %v3738 = vmul.f32 %v3578, %v3706
        %v3739 = vmul.f32 %v3579, %v3707
        %v3740 = vmul.f32 %v3580, %v3708
        %v3741 = vmul.f32 %v3581, %v3709
        %v3742 = vmul.f32 %v3582, %v3710
        %v3743 = vmul.f32 %v3583, %v3711
        %v3744 = vmul.f32 %v3584, %v3712
        %v3745 = vmul.f32 %v3585, %v3713
        %v3746 = vmul.f32 %v3586, %v3714
        %v3747 = vmul.f32 %v3587, %v3715
        %v3748 = vmul.f32 %v3588, %v3716
        %v3749 = vmul.f32 %v3589, %v3717
        %v3750 = vpack.c.bf16 %v2874, %v2873
        %v3751 = vpack.c.bf16 %v2876, %v2875
        %v3752 = vpack.c.bf16 %v3726, %v3718
        %v3753 = vpack.c.bf16 %v3727, %v3719
        %v3754 = vpack.c.bf16 %v3728, %v3720
        %v3755 = vpack.c.bf16 %v3729, %v3721
        %v3756 = vpack.c.bf16 %v3730, %v3722
        %v3757 = vpack.c.bf16 %v3731, %v3723
        %v3758 = vpack.c.bf16 %v3732, %v3724
        %v3759 = vpack.c.bf16 %v3733, %v3725
        %v3760 = vpack.c.bf16 %v3742, %v3734
        %v3761 = vpack.c.bf16 %v3743, %v3735
        %v3762 = vpack.c.bf16 %v3744, %v3736
        %v3763 = vpack.c.bf16 %v3745, %v3737
        %v3764 = vpack.c.bf16 %v3746, %v3738
        %v3765 = vpack.c.bf16 %v3747, %v3739
        %v3766 = vpack.c.bf16 %v3748, %v3740
        %v3767 = vpack.c.bf16 %v3749, %v3741
        %3769 = vset.pattern.permute.xlu0 0
        %3770 = vperm.xlu0 %3769, %v2877
        %v3771 = vpop.permute.xlu0 %3770
        %3774 = vset.pattern.permute.xlu0 0
        %3775 = vperm.xlu0 %3774, %v2878
        %v3776 = vpop.permute.xlu0 %3775
        %3779 = vset.pattern.permute.xlu0 0
        %3780 = vperm.xlu0 %3779, %v2879
        %v3781 = vpop.permute.xlu0 %3780
        %3784 = vset.pattern.permute.xlu0 0
        %3785 = vperm.xlu0 %3784, %v2880
        %v3786 = vpop.permute.xlu0 %3785
        %v3789 = vsel %vm2919, %v3750, 0
        %v3792 = vsel %vm2919, %v3751, 0
        %3794 = vmatprep.subr.bf16.mxu0 %v3753
        %3795 = vmatpush1.bf16.msra.mxu0 %v3752
        %3796 = vmatprep.subr.bf16.mxu0 %v3761
        %3797 = vmatpush1.bf16.msra.mxu0 %v3760
        %3798 = vmatprep.subr.bf16.mxu0 0
        %3799 = vmatpush1.bf16.msra.mxu0 0
        %3800 = vmatprep.subr.bf16.mxu0 0
        %3801 = vmatpush1.bf16.msra.mxu0 0
        %3802 = vmatprep.subr.bf16.mxu0 0
        %3803 = vmatpush1.bf16.msra.mxu0 0
        %3804 = vmatprep.subr.bf16.mxu0 0
        %3805 = vmatpush1.bf16.msra.mxu0 0
        %3806 = vmatprep.subr.bf16.mxu0 0
        %3807 = vmatpush1.bf16.msra.mxu0 0
        %3808 = vmatprep.subr.bf16.mxu0 0
        %3809 = vmatpush1.bf16.msra.mxu0 0
        %3810 = vmatprep.subr.bf16.mxu0 0
        %3811 = vmatpush1.bf16.msra.mxu0 0
        %3812 = vmatprep.subr.bf16.mxu0 0
        %3813 = vmatpush1.bf16.msra.mxu0 0
        %3814 = vmatprep.subr.bf16.mxu0 0
        %3815 = vmatpush1.bf16.msra.mxu0 0
        %3816 = vmatprep.subr.bf16.mxu0 0
        %3817 = vmatpush1.bf16.msra.mxu0 0
        %3818 = vmatprep.subr.bf16.mxu0 0
        %3819 = vmatpush1.bf16.msra.mxu0 0
        %3820 = vmatprep.subr.bf16.mxu0 0
        %3821 = vmatpush1.bf16.msra.mxu0 0
        %3822 = vmatprep.subr.bf16.mxu0 0
        %3823 = vmatpush1.bf16.msra.mxu0 0
        %3824 = vmatprep.subr.bf16.mxu0 0
        %3825 = vmatpush1.bf16.msra.mxu0 0
        %3826 = vmatprep.mubr.bf16.mxu0 0
        %3827 = vmatmul.mubr.bf16.gmra.mrb[0].mxu0 %v3789
        %v3828 = vpop.f32.mrb[0].mxu0
        %v3829 = vadd.f32 %v3771, %v3828
        %v3830 = vpop.f32.mrb[0].mxu0
        %v3831 = vadd.f32 %v3771, %v3830
        %v3832 = vpop.f32.mrb[0].mxu0
        %v3833 = vadd.f32 %v3776, %v3832
        %v3834 = vpop.f32.mrb[0].mxu0
        %v3835 = vadd.f32 %v3776, %v3834
        %3836 = vmatprep.mubr.bf16.mxu0 0
        %3837 = vmatmul.mubr.bf16.gmra.mrb[0].mxu0 %v3792
        %v3838 = vpop.f32.mrb[0].mxu0
        %v3839 = vadd.f32 %v3781, %v3838
        %v3840 = vpop.f32.mrb[0].mxu0
        %v3841 = vadd.f32 %v3781, %v3840
        %v3842 = vpop.f32.mrb[0].mxu0
        %v3843 = vadd.f32 %v3786, %v3842
        %v3844 = vpop.f32.mrb[0].mxu0
        %v3845 = vadd.f32 %v3786, %v3844
        %3846 = vdwg.mxu0
        %3847 = vmatprep.subr.bf16.mxu0 %v3755
        %3848 = vmatpush1.bf16.msra.mxu0 %v3754
        %3849 = vmatprep.subr.bf16.mxu0 %v3763
        %3850 = vmatpush1.bf16.msra.mxu0 %v3762
        %3851 = vmatprep.subr.bf16.mxu0 0
        %3852 = vmatpush1.bf16.msra.mxu0 0
        %3853 = vmatprep.subr.bf16.mxu0 0
        %3854 = vmatpush1.bf16.msra.mxu0 0
        %3855 = vmatprep.subr.bf16.mxu0 0
        %3856 = vmatpush1.bf16.msra.mxu0 0
        %3857 = vmatprep.subr.bf16.mxu0 0
        %3858 = vmatpush1.bf16.msra.mxu0 0
        %3859 = vmatprep.subr.bf16.mxu0 0
        %3860 = vmatpush1.bf16.msra.mxu0 0
        %3861 = vmatprep.subr.bf16.mxu0 0
        %3862 = vmatpush1.bf16.msra.mxu0 0
        %3863 = vmatprep.subr.bf16.mxu0 0
        %3864 = vmatpush1.bf16.msra.mxu0 0
        %3865 = vmatprep.subr.bf16.mxu0 0
        %3866 = vmatpush1.bf16.msra.mxu0 0
        %3867 = vmatprep.subr.bf16.mxu0 0
        %3868 = vmatpush1.bf16.msra.mxu0 0
        %3869 = vmatprep.subr.bf16.mxu0 0
        %3870 = vmatpush1.bf16.msra.mxu0 0
        %3871 = vmatprep.subr.bf16.mxu0 0
        %3872 = vmatpush1.bf16.msra.mxu0 0
        %3873 = vmatprep.subr.bf16.mxu0 0
        %3874 = vmatpush1.bf16.msra.mxu0 0
        %3875 = vmatprep.subr.bf16.mxu0 0
        %3876 = vmatpush1.bf16.msra.mxu0 0
        %3877 = vmatprep.subr.bf16.mxu0 0
        %3878 = vmatpush1.bf16.msra.mxu0 0
        %3879 = vmatprep.mubr.bf16.mxu0 0
        %3880 = vmatmul.mubr.bf16.gmra.mrb[0].mxu0 %v3789
        %v3881 = vpop.f32.mrb[0].mxu0
        %v3882 = vadd.f32 %v3771, %v3881
        %v3883 = vpop.f32.mrb[0].mxu0
        %v3884 = vadd.f32 %v3771, %v3883
        %v3885 = vpop.f32.mrb[0].mxu0
        %v3886 = vadd.f32 %v3776, %v3885
        %v3887 = vpop.f32.mrb[0].mxu0
        %v3888 = vadd.f32 %v3776, %v3887
        %3889 = vmatprep.mubr.bf16.mxu0 0
        %3890 = vmatmul.mubr.bf16.gmra.mrb[0].mxu0 %v3792
        %v3891 = vpop.f32.mrb[0].mxu0
        %v3892 = vadd.f32 %v3781, %v3891
        %v3893 = vpop.f32.mrb[0].mxu0
        %v3894 = vadd.f32 %v3781, %v3893
        %v3895 = vpop.f32.mrb[0].mxu0
        %v3896 = vadd.f32 %v3786, %v3895
        %v3897 = vpop.f32.mrb[0].mxu0
        %v3898 = vadd.f32 %v3786, %v3897
        %3899 = vdwg.mxu0
        %3900 = vmatprep.subr.bf16.mxu0 %v3757
        %3901 = vmatpush1.bf16.msra.mxu0 %v3756
        %3902 = vmatprep.subr.bf16.mxu0 %v3765
        %3903 = vmatpush1.bf16.msra.mxu0 %v3764
        %3904 = vmatprep.subr.bf16.mxu0 0
        %3905 = vmatpush1.bf16.msra.mxu0 0
        %3906 = vmatprep.subr.bf16.mxu0 0
        %3907 = vmatpush1.bf16.msra.mxu0 0
        %3908 = vmatprep.subr.bf16.mxu0 0
        %3909 = vmatpush1.bf16.msra.mxu0 0
        %3910 = vmatprep.subr.bf16.mxu0 0
        %3911 = vmatpush1.bf16.msra.mxu0 0
        %3912 = vmatprep.subr.bf16.mxu0 0
        %3913 = vmatpush1.bf16.msra.mxu0 0
        %3914 = vmatprep.subr.bf16.mxu0 0
        %3915 = vmatpush1.bf16.msra.mxu0 0
        %3916 = vmatprep.subr.bf16.mxu0 0
        %3917 = vmatpush1.bf16.msra.mxu0 0
        %3918 = vmatprep.subr.bf16.mxu0 0
        %3919 = vmatpush1.bf16.msra.mxu0 0
        %3920 = vmatprep.subr.bf16.mxu0 0
        %3921 = vmatpush1.bf16.msra.mxu0 0
        %3922 = vmatprep.subr.bf16.mxu0 0
        %3923 = vmatpush1.bf16.msra.mxu0 0
        %3924 = vmatprep.subr.bf16.mxu0 0
        %3925 = vmatpush1.bf16.msra.mxu0 0
        %3926 = vmatprep.subr.bf16.mxu0 0
        %3927 = vmatpush1.bf16.msra.mxu0 0
        %3928 = vmatprep.subr.bf16.mxu0 0
        %3929 = vmatpush1.bf16.msra.mxu0 0
        %3930 = vmatprep.subr.bf16.mxu0 0
        %3931 = vmatpush1.bf16.msra.mxu0 0
        %3932 = vmatprep.mubr.bf16.mxu0 0
        %3933 = vmatmul.mubr.bf16.gmra.mrb[0].mxu0 %v3789
        %v3934 = vpop.f32.mrb[0].mxu0
        %v3935 = vadd.f32 %v3771, %v3934
        %v3936 = vpop.f32.mrb[0].mxu0
        %v3937 = vadd.f32 %v3771, %v3936
        %v3938 = vpop.f32.mrb[0].mxu0
        %v3939 = vadd.f32 %v3776, %v3938
        %v3940 = vpop.f32.mrb[0].mxu0
        %v3941 = vadd.f32 %v3776, %v3940
        %3942 = vmatprep.mubr.bf16.mxu0 0
        %3943 = vmatmul.mubr.bf16.gmra.mrb[0].mxu0 %v3792
        %v3944 = vpop.f32.mrb[0].mxu0
        %v3945 = vadd.f32 %v3781, %v3944
        %v3946 = vpop.f32.mrb[0].mxu0
        %v3947 = vadd.f32 %v3781, %v3946
        %v3948 = vpop.f32.mrb[0].mxu0
        %v3949 = vadd.f32 %v3786, %v3948
        %v3950 = vpop.f32.mrb[0].mxu0
        %v3951 = vadd.f32 %v3786, %v3950
        %3952 = vdwg.mxu0
        %3953 = vmatprep.subr.bf16.mxu0 %v3759
        %3954 = vmatpush1.bf16.msra.mxu0 %v3758
        %3955 = vmatprep.subr.bf16.mxu0 %v3767
        %3956 = vmatpush1.bf16.msra.mxu0 %v3766
        %3957 = vmatprep.subr.bf16.mxu0 0
        %3958 = vmatpush1.bf16.msra.mxu0 0
        %3959 = vmatprep.subr.bf16.mxu0 0
        %3960 = vmatpush1.bf16.msra.mxu0 0
        %3961 = vmatprep.subr.bf16.mxu0 0
        %3962 = vmatpush1.bf16.msra.mxu0 0
        %3963 = vmatprep.subr.bf16.mxu0 0
        %3964 = vmatpush1.bf16.msra.mxu0 0
        %3965 = vmatprep.subr.bf16.mxu0 0
        %3966 = vmatpush1.bf16.msra.mxu0 0
        %3967 = vmatprep.subr.bf16.mxu0 0
        %3968 = vmatpush1.bf16.msra.mxu0 0
        %3969 = vmatprep.subr.bf16.mxu0 0
        %3970 = vmatpush1.bf16.msra.mxu0 0
        %3971 = vmatprep.subr.bf16.mxu0 0
        %3972 = vmatpush1.bf16.msra.mxu0 0
        %3973 = vmatprep.subr.bf16.mxu0 0
        %3974 = vmatpush1.bf16.msra.mxu0 0
        %3975 = vmatprep.subr.bf16.mxu0 0
        %3976 = vmatpush1.bf16.msra.mxu0 0
        %3977 = vmatprep.subr.bf16.mxu0 0
        %3978 = vmatpush1.bf16.msra.mxu0 0
        %3979 = vmatprep.subr.bf16.mxu0 0
        %3980 = vmatpush1.bf16.msra.mxu0 0
        %3981 = vmatprep.subr.bf16.mxu0 0
        %3982 = vmatpush1.bf16.msra.mxu0 0
        %3983 = vmatprep.subr.bf16.mxu0 0
        %3984 = vmatpush1.bf16.msra.mxu0 0
        %3985 = vmatprep.mubr.bf16.mxu0 0
        %3986 = vmatmul.mubr.bf16.gmra.mrb[0].mxu0 %v3789
        %v3987 = vpop.f32.mrb[0].mxu0
        %v3988 = vadd.f32 %v3771, %v3987
        %v3989 = vpop.f32.mrb[0].mxu0
        %v3990 = vadd.f32 %v3771, %v3989
        %v3991 = vpop.f32.mrb[0].mxu0
        %v3992 = vadd.f32 %v3776, %v3991
        %v3993 = vpop.f32.mrb[0].mxu0
        %v3994 = vadd.f32 %v3776, %v3993
        %3995 = vmatprep.mubr.bf16.mxu0 0
        %3996 = vmatmul.mubr.bf16.gmra.mrb[0].mxu0 %v3792
        %v3997 = vpop.f32.mrb[0].mxu0
        %v3998 = vadd.f32 %v3781, %v3997
        %v3999 = vpop.f32.mrb[0].mxu0
        %v4000 = vadd.f32 %v3781, %v3999
        %v4001 = vpop.f32.mrb[0].mxu0
        %v4002 = vadd.f32 %v3786, %v4001
        %v4003 = vpop.f32.mrb[0].mxu0
        %v4004 = vadd.f32 %v3786, %v4003
        %4005 = vdwg.mxu0
        %v4006 = vmul.f32 %v3829, 0.5
        %v4007 = vmul.f32 %v3831, 0.5
        %v4008 = vmul.f32 %v3882, 0.5
        %v4009 = vmul.f32 %v3884, 0.5
        %v4010 = vmul.f32 %v3935, 0.5
        %v4011 = vmul.f32 %v3937, 0.5
        %v4012 = vmul.f32 %v3988, 0.5
        %v4013 = vmul.f32 %v3990, 0.5
        %v4014 = vmul.f32 %v3833, 0.5
        %v4015 = vmul.f32 %v3835, 0.5
        %v4016 = vmul.f32 %v3886, 0.5
        %v4017 = vmul.f32 %v3888, 0.5
        %v4018 = vmul.f32 %v3939, 0.5
        %v4019 = vmul.f32 %v3941, 0.5
        %v4020 = vmul.f32 %v3992, 0.5
        %v4021 = vmul.f32 %v3994, 0.5
        %v4022 = vmul.f32 %v3839, 0.5
        %v4023 = vmul.f32 %v3841, 0.5
        %v4024 = vmul.f32 %v3892, 0.5
        %v4025 = vmul.f32 %v3894, 0.5
        %v4026 = vmul.f32 %v3945, 0.5
        %v4027 = vmul.f32 %v3947, 0.5
        %v4028 = vmul.f32 %v3998, 0.5
        %v4029 = vmul.f32 %v4000, 0.5
        %v4030 = vmul.f32 %v3843, 0.5
        %v4031 = vmul.f32 %v3845, 0.5
        %v4032 = vmul.f32 %v3896, 0.5
        %v4033 = vmul.f32 %v3898, 0.5
        %v4034 = vmul.f32 %v3949, 0.5
        %v4035 = vmul.f32 %v3951, 0.5
        %v4036 = vmul.f32 %v4002, 0.5
        %v4037 = vmul.f32 %v4004, 0.5
        %v4038 = vtanh.pop %v4006
        %v4039 = vtanh.pop %v4007
        %v4040 = vtanh.pop %v4008
        %v4041 = vtanh.pop %v4009
        %v4042 = vtanh.pop %v4010
        %v4043 = vtanh.pop %v4011
        %v4044 = vtanh.pop %v4012
        %v4045 = vtanh.pop %v4013
        %v4046 = vtanh.pop %v4014
        %v4047 = vtanh.pop %v4015
        %v4048 = vtanh.pop %v4016
        %v4049 = vtanh.pop %v4017
        %v4050 = vtanh.pop %v4018
        %v4051 = vtanh.pop %v4019
        %v4052 = vtanh.pop %v4020
        %v4053 = vtanh.pop %v4021
        %v4054 = vtanh.pop %v4022
        %v4055 = vtanh.pop %v4023
        %v4056 = vtanh.pop %v4024
        %v4057 = vtanh.pop %v4025
        %v4058 = vtanh.pop %v4026
        %v4059 = vtanh.pop %v4027
        %v4060 = vtanh.pop %v4028
        %v4061 = vtanh.pop %v4029
        %v4062 = vtanh.pop %v4030
        %v4063 = vtanh.pop %v4031
        %v4064 = vtanh.pop %v4032
        %v4065 = vtanh.pop %v4033
        %v4066 = vtanh.pop %v4034
        %v4067 = vtanh.pop %v4035
        %v4068 = vtanh.pop %v4036
        %v4069 = vtanh.pop %v4037
        %v4070 = vadd.f32 %v4038, 1.0
        %v4071 = vadd.f32 %v4039, 1.0
        %v4072 = vadd.f32 %v4040, 1.0
        %v4073 = vadd.f32 %v4041, 1.0
        %v4074 = vadd.f32 %v4042, 1.0
        %v4075 = vadd.f32 %v4043, 1.0
        %v4076 = vadd.f32 %v4044, 1.0
        %v4077 = vadd.f32 %v4045, 1.0
        %v4078 = vadd.f32 %v4046, 1.0
        %v4079 = vadd.f32 %v4047, 1.0
        %v4080 = vadd.f32 %v4048, 1.0
        %v4081 = vadd.f32 %v4049, 1.0
        %v4082 = vadd.f32 %v4050, 1.0
        %v4083 = vadd.f32 %v4051, 1.0
        %v4084 = vadd.f32 %v4052, 1.0
        %v4085 = vadd.f32 %v4053, 1.0
        %v4086 = vadd.f32 %v4054, 1.0
        %v4087 = vadd.f32 %v4055, 1.0
        %v4088 = vadd.f32 %v4056, 1.0
        %v4089 = vadd.f32 %v4057, 1.0
        %v4090 = vadd.f32 %v4058, 1.0
        %v4091 = vadd.f32 %v4059, 1.0
        %v4092 = vadd.f32 %v4060, 1.0
        %v4093 = vadd.f32 %v4061, 1.0
        %v4094 = vadd.f32 %v4062, 1.0
        %v4095 = vadd.f32 %v4063, 1.0
        %v4096 = vadd.f32 %v4064, 1.0
        %v4097 = vadd.f32 %v4065, 1.0
        %v4098 = vadd.f32 %v4066, 1.0
        %v4099 = vadd.f32 %v4067, 1.0
        %v4100 = vadd.f32 %v4068, 1.0
        %v4101 = vadd.f32 %v4069, 1.0
        %v4102 = vmul.f32 %v4070, 0.5
        %v4103 = vmul.f32 %v4071, 0.5
        %v4104 = vmul.f32 %v4072, 0.5
        %v4105 = vmul.f32 %v4073, 0.5
        %v4106 = vmul.f32 %v4074, 0.5
        %v4107 = vmul.f32 %v4075, 0.5
        %v4108 = vmul.f32 %v4076, 0.5
        %v4109 = vmul.f32 %v4077, 0.5
        %v4110 = vmul.f32 %v4078, 0.5
        %v4111 = vmul.f32 %v4079, 0.5
        %v4112 = vmul.f32 %v4080, 0.5
        %v4113 = vmul.f32 %v4081, 0.5
        %v4114 = vmul.f32 %v4082, 0.5
        %v4115 = vmul.f32 %v4083, 0.5
        %v4116 = vmul.f32 %v4084, 0.5
        %v4117 = vmul.f32 %v4085, 0.5
        %v4118 = vmul.f32 %v4086, 0.5
        %v4119 = vmul.f32 %v4087, 0.5
        %v4120 = vmul.f32 %v4088, 0.5
        %v4121 = vmul.f32 %v4089, 0.5
        %v4122 = vmul.f32 %v4090, 0.5
        %v4123 = vmul.f32 %v4091, 0.5
        %v4124 = vmul.f32 %v4092, 0.5
        %v4125 = vmul.f32 %v4093, 0.5
        %v4126 = vmul.f32 %v4094, 0.5
        %v4127 = vmul.f32 %v4095, 0.5
        %v4128 = vmul.f32 %v4096, 0.5
        %v4129 = vmul.f32 %v4097, 0.5
        %v4130 = vmul.f32 %v4098, 0.5
        %v4131 = vmul.f32 %v4099, 0.5
        %v4132 = vmul.f32 %v4100, 0.5
        %v4133 = vmul.f32 %v4101, 0.5
        %v4134 = vmul.f32 %v3829, %v4102
        %v4135 = vmul.f32 %v3831, %v4103
        %v4136 = vmul.f32 %v3882, %v4104
        %v4137 = vmul.f32 %v3884, %v4105
        %v4138 = vmul.f32 %v3935, %v4106
        %v4139 = vmul.f32 %v3937, %v4107
        %v4140 = vmul.f32 %v3988, %v4108
        %v4141 = vmul.f32 %v3990, %v4109
        %v4142 = vmul.f32 %v3833, %v4110
        %v4143 = vmul.f32 %v3835, %v4111
        %v4144 = vmul.f32 %v3886, %v4112
        %v4145 = vmul.f32 %v3888, %v4113
        %v4146 = vmul.f32 %v3939, %v4114
        %v4147 = vmul.f32 %v3941, %v4115
        %v4148 = vmul.f32 %v3992, %v4116
        %v4149 = vmul.f32 %v3994, %v4117
        %v4150 = vmul.f32 %v3839, %v4118
        %v4151 = vmul.f32 %v3841, %v4119
        %v4152 = vmul.f32 %v3892, %v4120
        %v4153 = vmul.f32 %v3894, %v4121
        %v4154 = vmul.f32 %v3945, %v4122
        %v4155 = vmul.f32 %v3947, %v4123
        %v4156 = vmul.f32 %v3998, %v4124
        %v4157 = vmul.f32 %v4000, %v4125
        %v4158 = vmul.f32 %v3843, %v4126
        %v4159 = vmul.f32 %v3845, %v4127
        %v4160 = vmul.f32 %v3896, %v4128
        %v4161 = vmul.f32 %v3898, %v4129
        %v4162 = vmul.f32 %v3949, %v4130
        %v4163 = vmul.f32 %v3951, %v4131
        %v4164 = vmul.f32 %v4002, %v4132
        %v4165 = vmul.f32 %v4004, %v4133
        %v4166 = vadd.f32 %v4134, %v2825
        %v4167 = vadd.f32 %v4135, %v2829
        %v4168 = vadd.f32 %v4136, %v2833
        %v4169 = vadd.f32 %v4137, %v2837
        %v4170 = vadd.f32 %v4138, %v2841
        %v4171 = vadd.f32 %v4139, %v2845
        %v4172 = vadd.f32 %v4140, %v2849
        %v4173 = vadd.f32 %v4141, %v2853
        %v4174 = vadd.f32 %v4142, %v2826
        %v4175 = vadd.f32 %v4143, %v2830
        %v4176 = vadd.f32 %v4144, %v2834
        %v4177 = vadd.f32 %v4145, %v2838
        %v4178 = vadd.f32 %v4146, %v2842
        %v4179 = vadd.f32 %v4147, %v2846
        %v4180 = vadd.f32 %v4148, %v2850
        %v4181 = vadd.f32 %v4149, %v2854
        %v4182 = vadd.f32 %v4150, %v2827
        %v4183 = vadd.f32 %v4151, %v2831
        %v4184 = vadd.f32 %v4152, %v2835
        %v4185 = vadd.f32 %v4153, %v2839
        %v4186 = vadd.f32 %v4154, %v2843
        %v4187 = vadd.f32 %v4155, %v2847
        %v4188 = vadd.f32 %v4156, %v2851
        %v4189 = vadd.f32 %v4157, %v2855
        %v4190 = vadd.f32 %v4158, %v2828
        %v4191 = vadd.f32 %v4159, %v2832
        %v4192 = vadd.f32 %v4160, %v2836
        %v4193 = vadd.f32 %v4161, %v2840
        %v4194 = vadd.f32 %v4162, %v2844
        %v4195 = vadd.f32 %v4163, %v2848
        %v4196 = vadd.f32 %v4164, %v2852
        %v4197 = vadd.f32 %v4165, %v2856
        %v4198 = vmul.f32 %v4166, 0.5
        %v4199 = vmul.f32 %v4167, 0.5
        %v4200 = vmul.f32 %v4168, 0.5
        %v4201 = vmul.f32 %v4169, 0.5
        %v4202 = vmul.f32 %v4170, 0.5
        %v4203 = vmul.f32 %v4171, 0.5
        %v4204 = vmul.f32 %v4172, 0.5
        %v4205 = vmul.f32 %v4173, 0.5
        %v4206 = vmul.f32 %v4174, 0.5
        %v4207 = vmul.f32 %v4175, 0.5
        %v4208 = vmul.f32 %v4176, 0.5
        %v4209 = vmul.f32 %v4177, 0.5
        %v4210 = vmul.f32 %v4178, 0.5
        %v4211 = vmul.f32 %v4179, 0.5
        %v4212 = vmul.f32 %v4180, 0.5
        %v4213 = vmul.f32 %v4181, 0.5
        %v4214 = vmul.f32 %v4182, 0.5
        %v4215 = vmul.f32 %v4183, 0.5
        %v4216 = vmul.f32 %v4184, 0.5
        %v4217 = vmul.f32 %v4185, 0.5
        %v4218 = vmul.f32 %v4186, 0.5
        %v4219 = vmul.f32 %v4187, 0.5
        %v4220 = vmul.f32 %v4188, 0.5
        %v4221 = vmul.f32 %v4189, 0.5
        %v4222 = vmul.f32 %v4190, 0.5
        %v4223 = vmul.f32 %v4191, 0.5
        %v4224 = vmul.f32 %v4192, 0.5
        %v4225 = vmul.f32 %v4193, 0.5
        %v4226 = vmul.f32 %v4194, 0.5
        %v4227 = vmul.f32 %v4195, 0.5
        %v4228 = vmul.f32 %v4196, 0.5
        %v4229 = vmul.f32 %v4197, 0.5
        %v4230 = vtanh.pop %v4198
        %v4231 = vtanh.pop %v4199
        %v4232 = vtanh.pop %v4200
        %v4233 = vtanh.pop %v4201
        %v4234 = vtanh.pop %v4202
        %v4235 = vtanh.pop %v4203
        %v4236 = vtanh.pop %v4204
        %v4237 = vtanh.pop %v4205
        %v4238 = vtanh.pop %v4206
        %v4239 = vtanh.pop %v4207
        %v4240 = vtanh.pop %v4208
        %v4241 = vtanh.pop %v4209
        %v4242 = vtanh.pop %v4210
        %v4243 = vtanh.pop %v4211
        %v4244 = vtanh.pop %v4212
        %v4245 = vtanh.pop %v4213
        %v4246 = vtanh.pop %v4214
        %v4247 = vtanh.pop %v4215
        %v4248 = vtanh.pop %v4216
        %v4249 = vtanh.pop %v4217
        %v4250 = vtanh.pop %v4218
        %v4251 = vtanh.pop %v4219
        %v4252 = vtanh.pop %v4220
        %v4253 = vtanh.pop %v4221
        %v4254 = vtanh.pop %v4222
        %v4255 = vtanh.pop %v4223
        %v4256 = vtanh.pop %v4224
        %v4257 = vtanh.pop %v4225
        %v4258 = vtanh.pop %v4226
        %v4259 = vtanh.pop %v4227
        %v4260 = vtanh.pop %v4228
        %v4261 = vtanh.pop %v4229
        %v4262 = vadd.f32 %v4230, 1.0
        %v4263 = vadd.f32 %v4231, 1.0
        %v4264 = vadd.f32 %v4232, 1.0
        %v4265 = vadd.f32 %v4233, 1.0
        %v4266 = vadd.f32 %v4234, 1.0
        %v4267 = vadd.f32 %v4235, 1.0
        %v4268 = vadd.f32 %v4236, 1.0
        %v4269 = vadd.f32 %v4237, 1.0
        %v4270 = vadd.f32 %v4238, 1.0
        %v4271 = vadd.f32 %v4239, 1.0
        %v4272 = vadd.f32 %v4240, 1.0
        %v4273 = vadd.f32 %v4241, 1.0
        %v4274 = vadd.f32 %v4242, 1.0
        %v4275 = vadd.f32 %v4243, 1.0
        %v4276 = vadd.f32 %v4244, 1.0
        %v4277 = vadd.f32 %v4245, 1.0
        %v4278 = vadd.f32 %v4246, 1.0
        %v4279 = vadd.f32 %v4247, 1.0
        %v4280 = vadd.f32 %v4248, 1.0
        %v4281 = vadd.f32 %v4249, 1.0
        %v4282 = vadd.f32 %v4250, 1.0
        %v4283 = vadd.f32 %v4251, 1.0
        %v4284 = vadd.f32 %v4252, 1.0
        %v4285 = vadd.f32 %v4253, 1.0
        %v4286 = vadd.f32 %v4254, 1.0
        %v4287 = vadd.f32 %v4255, 1.0
        %v4288 = vadd.f32 %v4256, 1.0
        %v4289 = vadd.f32 %v4257, 1.0
        %v4290 = vadd.f32 %v4258, 1.0
        %v4291 = vadd.f32 %v4259, 1.0
        %v4292 = vadd.f32 %v4260, 1.0
        %v4293 = vadd.f32 %v4261, 1.0
        %v4294 = vmul.f32 %v4262, 0.5
        %v4295 = vmul.f32 %v4263, 0.5
        %v4296 = vmul.f32 %v4264, 0.5
        %v4297 = vmul.f32 %v4265, 0.5
        %v4298 = vmul.f32 %v4266, 0.5
        %v4299 = vmul.f32 %v4267, 0.5
        %v4300 = vmul.f32 %v4268, 0.5
        %v4301 = vmul.f32 %v4269, 0.5
        %v4302 = vmul.f32 %v4270, 0.5
        %v4303 = vmul.f32 %v4271, 0.5
        %v4304 = vmul.f32 %v4272, 0.5
        %v4305 = vmul.f32 %v4273, 0.5
        %v4306 = vmul.f32 %v4274, 0.5
        %v4307 = vmul.f32 %v4275, 0.5
        %v4308 = vmul.f32 %v4276, 0.5
        %v4309 = vmul.f32 %v4277, 0.5
        %v4310 = vmul.f32 %v4278, 0.5
        %v4311 = vmul.f32 %v4279, 0.5
        %v4312 = vmul.f32 %v4280, 0.5
        %v4313 = vmul.f32 %v4281, 0.5
        %v4314 = vmul.f32 %v4282, 0.5
        %v4315 = vmul.f32 %v4283, 0.5
        %v4316 = vmul.f32 %v4284, 0.5
        %v4317 = vmul.f32 %v4285, 0.5
        %v4318 = vmul.f32 %v4286, 0.5
        %v4319 = vmul.f32 %v4287, 0.5
        %v4320 = vmul.f32 %v4288, 0.5
        %v4321 = vmul.f32 %v4289, 0.5
        %v4322 = vmul.f32 %v4290, 0.5
        %v4323 = vmul.f32 %v4291, 0.5
        %v4324 = vmul.f32 %v4292, 0.5
        %v4325 = vmul.f32 %v4293, 0.5
        %v4326 = vmul.f32 %v4166, %v4294
        %v4327 = vmul.f32 %v4167, %v4295
        %v4328 = vmul.f32 %v4168, %v4296
        %v4329 = vmul.f32 %v4169, %v4297
        %v4330 = vmul.f32 %v4170, %v4298
        %v4331 = vmul.f32 %v4171, %v4299
        %v4332 = vmul.f32 %v4172, %v4300
        %v4333 = vmul.f32 %v4173, %v4301
        %v4334 = vmul.f32 %v4174, %v4302
        %v4335 = vmul.f32 %v4175, %v4303
        %v4336 = vmul.f32 %v4176, %v4304
        %v4337 = vmul.f32 %v4177, %v4305
        %v4338 = vmul.f32 %v4178, %v4306
        %v4339 = vmul.f32 %v4179, %v4307
        %v4340 = vmul.f32 %v4180, %v4308
        %v4341 = vmul.f32 %v4181, %v4309
        %v4342 = vmul.f32 %v4182, %v4310
        %v4343 = vmul.f32 %v4183, %v4311
        %v4344 = vmul.f32 %v4184, %v4312
        %v4345 = vmul.f32 %v4185, %v4313
        %v4346 = vmul.f32 %v4186, %v4314
        %v4347 = vmul.f32 %v4187, %v4315
        %v4348 = vmul.f32 %v4188, %v4316
        %v4349 = vmul.f32 %v4189, %v4317
        %v4350 = vmul.f32 %v4190, %v4318
        %v4351 = vmul.f32 %v4191, %v4319
        %v4352 = vmul.f32 %v4192, %v4320
        %v4353 = vmul.f32 %v4193, %v4321
        %v4354 = vmul.f32 %v4194, %v4322
        %v4355 = vmul.f32 %v4195, %v4323
        %v4356 = vmul.f32 %v4196, %v4324
        %v4357 = vmul.f32 %v4197, %v4325
        %4358 = vst [vmem:[%s592] sm:$0xff] %v4326
        %4359 = vst [vmem:[%s592 + $0x8] sm:$0xff] %v4334
        %4360 = vst [vmem:[%s592 + $0x10] sm:$0xff] %v4342
        %4361 = vst [vmem:[%s592 + $0x18] sm:$0xff] %v4350
        %s4362 = scalar_lea.vmem %s592, 32 [#allocation3]
        %4363 = vst [vmem:[%s4362] sm:$0xff] %v4327
        %4364 = vst [vmem:[%s4362 + $0x8] sm:$0xff] %v4335
        %4365 = vst [vmem:[%s4362 + $0x10] sm:$0xff] %v4343
        %4366 = vst [vmem:[%s4362 + $0x18] sm:$0xff] %v4351
        %s4367 = scalar_lea.vmem %s592, 64 [#allocation3]
        %4368 = vst [vmem:[%s4367] sm:$0xff] %v4328
        %4369 = vst [vmem:[%s4367 + $0x8] sm:$0xff] %v4336
        %4370 = vst [vmem:[%s4367 + $0x10] sm:$0xff] %v4344
        %4371 = vst [vmem:[%s4367 + $0x18] sm:$0xff] %v4352
        %s4372 = scalar_lea.vmem %s592, 96 [#allocation3]
        %4373 = vst [vmem:[%s4372] sm:$0xff] %v4329
        %4374 = vst [vmem:[%s4372 + $0x8] sm:$0xff] %v4337
        %4375 = vst [vmem:[%s4372 + $0x10] sm:$0xff] %v4345
        %4376 = vst [vmem:[%s4372 + $0x18] sm:$0xff] %v4353
        %s4377 = scalar_lea.vmem %s592, 128 [#allocation3]
        %4378 = vst [vmem:[%s4377] sm:$0xff] %v4330
        %4379 = vst [vmem:[%s4377 + $0x8] sm:$0xff] %v4338
        %4380 = vst [vmem:[%s4377 + $0x10] sm:$0xff] %v4346
        %4381 = vst [vmem:[%s4377 + $0x18] sm:$0xff] %v4354
        %s4382 = scalar_lea.vmem %s592, 160 [#allocation3]
        %4383 = vst [vmem:[%s4382] sm:$0xff] %v4331
        %4384 = vst [vmem:[%s4382 + $0x8] sm:$0xff] %v4339
        %4385 = vst [vmem:[%s4382 + $0x10] sm:$0xff] %v4347
        %4386 = vst [vmem:[%s4382 + $0x18] sm:$0xff] %v4355
        %s4387 = scalar_lea.vmem %s592, 192 [#allocation3]
        %4388 = vst [vmem:[%s4387] sm:$0xff] %v4332
        %4389 = vst [vmem:[%s4387 + $0x8] sm:$0xff] %v4340
        %4390 = vst [vmem:[%s4387 + $0x10] sm:$0xff] %v4348
        %4391 = vst [vmem:[%s4387 + $0x18] sm:$0xff] %v4356
        %s4392 = scalar_lea.vmem %s592, 224 [#allocation3]
        %4393 = vst [vmem:[%s4392] sm:$0xff] %v4333
        %4394 = vst [vmem:[%s4392 + $0x8] sm:$0xff] %v4341
        %4395 = vst [vmem:[%s4392 + $0x10] sm:$0xff] %v4349
        %4396 = vst [vmem:[%s4392 + $0x18] sm:$0xff] %v4357
        %s4397 = sand.u32 %s357, 1
        %s4398 = scalar_lea.sflag [#allocation4], %s4397
        %s4399 = sand.u32 %s357, 1
        %s4400 = smul.addr %s4399, 256
        %s4401 = scalar_lea.vmem [#allocation3], %s4400
        // Predicated region
        $region122: #{tpu_custom_call.1} parent=116 // pred_check
          %p4402 = pneg %p367
        $region123: #{tpu_custom_call.1} parent=116 // pred_check_branch
          %4404 = sbr.rel (%p4402) target = $region125
        $region124: #{tpu_custom_call.1} parent=116 // pred_region
          %s4406 = ssub.s32 4096, 4096
          %4407 = vsyncadd %s4398, %s4406
          %s4408 = smul.addr %s29, 128
          %s4409 = scalar_lea.hbm %s15, %s4408
          %s4410 = sshll.u32 %s4401, 4
          %s4411 = int_to_ptr.vmem [resolvable:$true] %s4410
          %4416 = dma.vmem_to_hbm [thread:$0]  %s4411, 4096, %s4409, %s4398, 128, 256, 8
        $region125: #{tpu_custom_call.1} parent=116 // pred_fallthru
          _
      $region117: #{tpu_custom_call.1} parent=5 // pred_fallthru
        _
      %p4417 = scmp.le.s32.totalorder 2, %s24
      // Predicated region
      $region126: #{tpu_custom_call.1} parent=5 // pred_check
        %p4418 = pneg %p4417
      $region127: #{tpu_custom_call.1} parent=5 // pred_check_branch
        %4420 = sbr.rel (%p4418) target = $region129
      $region128: #{tpu_custom_call.1} parent=5 // pred_region
        %s4421 = ssub.s32 %s24, 2
        // Predicated region
        $region130: #{tpu_custom_call.1} parent=128 // pred_check
          %p4422 = pneg %p373
        $region131: #{tpu_custom_call.1} parent=128 // pred_check_branch
          %4424 = sbr.rel (%p4422) target = $region133
        $region132: #{tpu_custom_call.1} parent=128 // pred_region
          %s4425 = sand.u32 %s358, 1
          %s4426 = scalar_lea.sflag [#allocation4], %s4425
          %s4427 = sand.u32 %s358, 1
          %s4428 = smul.addr %s4427, 256
          %s4429 = scalar_lea.vmem [#allocation3], %s4428
          %4430 = dma.done %s4426, 4096
        $region133: #{tpu_custom_call.1} parent=128 // pred_fallthru
          _
      $region129: #{tpu_custom_call.1} parent=5 // pred_fallthru
        _
    $region6: #{tpu_custom_call.1} parent=1 // loop_footer
      %s28 = sadd.s32 1, %s24
    $region7: #{tpu_custom_call.1} parent=1 // loop_footer_branch
      %23 = sbr.rel target = $region3
    $region8: #{tpu_custom_call.1} parent=1 // loop_exit
      _
    %4431 = vsyncpa [#allocation4], 1
    %s4432 = scalar_lea.sflag [#allocation4], 1
    %4433 = vsyncpa %s4432, 1

</llo_original>
